<compile_context>
chip_gen: v7x
topology: tpu7x:2x2x1
jax: 0.10.0
libtpu: 0.0.40
codegen_flags: <defaults>
</compile_context>

<pallas_src>
import jax
import jax.numpy as jnp
from jax.experimental import pallas as pl
from jax.experimental.pallas import tpu as pltpu

VOCAB = 5000
SEQ = 30
EMB = 256
K = SEQ * EMB          # 7680
HID = 1024
OUT = 4

NSPLIT = 2             # split HID across cores (megacore-parallel axis)
HID_HALF = HID // NSPLIT   # 512
TK = 3840              # K tile -> K // TK = 2 reduction steps, divisible by 128


def mlp_kernel(x_ref, w1_ref, b1_ref, w2_ref, o_ref, acc_ref):
    """relu(x_bf16) @ W1_bf16 (f32 acc) -> +b1 -> relu -> @ W2[half] -> partial (B,OUT)."""
    k = pl.program_id(1)

    @pl.when(k == 0)
    def _():
        acc_ref[...] = jnp.zeros_like(acc_ref)

    # Hot path: ReLU on the bf16 activation tile + bf16 MXU matmul into f32 accumulator.
    x_tile = jnp.maximum(x_ref[...], 0.0)
    acc_ref[...] += jnp.dot(x_tile, w1_ref[...], preferred_element_type=jnp.float32)

    @pl.when(k == pl.num_programs(1) - 1)
    def _():
        h = jnp.maximum(acc_ref[...] + b1_ref[...], 0.0)          # (B, HID_HALF) f32
        partial = jnp.dot(h, w2_ref[...], preferred_element_type=jnp.float32)  # (B, OUT)
        o_ref[...] = partial[None].astype(o_ref.dtype)            # (1, B, OUT)


def simple_model_forward(tokens, emb_table, w1, b1, w2, b2):
    """tokens: (B, SEQ) int32. Returns (B, OUT) float32. Same math as the PyTorch module."""
    B = tokens.shape[0]

    # Embedding gather (glue; padding_idx=0 handled by zeroed row 0 of emb_table).
    x = jnp.take(emb_table, tokens, axis=0)                 # (B, SEQ, EMB) f32
    x_flat = x.reshape(B, K).astype(jnp.bfloat16)           # stream activations as bf16

    # Weight streaming in bf16 (in a real deployment w1 would be stored bf16 already).
    w1_bf = w1.astype(jnp.bfloat16)                         # (K, HID)
    b1_2d = b1.reshape(1, HID)                              # f32, tiny, resident

    nk = K // TK
    partials = pl.pallas_call(
        mlp_kernel,
        out_shape=jax.ShapeDtypeStruct((NSPLIT, B, OUT), jnp.float32),
        grid_spec=pltpu.PrefetchScalarGridSpec(
            num_scalar_prefetch=0,
            grid=(NSPLIT, nk),                                       # (HID half, K tile)
            in_specs=[
                pl.BlockSpec((B, TK), lambda j, k: (0, k)),          # x_flat K-tile (bf16)
                pl.BlockSpec((TK, HID_HALF), lambda j, k: (k, j)),   # W1 (K, HID/2) tile (bf16)
                pl.BlockSpec((1, HID_HALF), lambda j, k: (0, j)),    # b1 half (f32)
                pl.BlockSpec((HID_HALF, OUT), lambda j, k: (j, 0)),  # W2 half (f32)
            ],
            out_specs=pl.BlockSpec((1, B, OUT), lambda j, k: (j, 0, 0)),
            scratch_shapes=[pltpu.VMEM((B, HID_HALF), jnp.float32)],  # f32 accumulator
        ),
        compiler_params=pltpu.CompilerParams(
            # HID-half axis is independent (megacore-shardable on v7x); K is a reduction.
            dimension_semantics=("parallel", "arbitrary"),
            # ~7.9 MB of double-buffered tiles + residents; 32 MiB is safe on v5e/v6e/v7x.
            vmem_limit_bytes=32 * 1024 * 1024,
        ),
    )(x_flat, w1_bf, b1_2d, w2)

    # W2 contraction spans both HID halves -> sum partials; add b2 exactly once.
    return partials.sum(axis=0) + b2.reshape(1, OUT)


def init_params(key):
    k_emb, k_w1, k_b1, k_w2, k_b2 = jax.random.split(key, 5)
    emb_table = jax.random.normal(k_emb, (VOCAB, EMB), jnp.float32) * 0.02
    emb_table = emb_table.at[0].set(0.0)  # padding_idx=0
    # nn.Linear default init scale ~ 1/sqrt(fan_in); stored as (in, out) vs PyTorch's (out, in).
    w1 = jax.random.uniform(k_w1, (K, HID), jnp.float32, -1.0, 1.0) / jnp.sqrt(K)
    b1 = jax.random.uniform(k_b1, (HID,), jnp.float32, -1.0, 1.0) / jnp.sqrt(K)
    w2 = jax.random.uniform(k_w2, (HID, OUT), jnp.float32, -1.0, 1.0) / jnp.sqrt(HID)
    b2 = jax.random.uniform(k_b2, (OUT,), jnp.float32, -1.0, 1.0) / jnp.sqrt(HID)
    return emb_table, w1, b1, w2, b2


if __name__ == "__main__":
    key = jax.random.PRNGKey(0)
    params = init_params(key)

    B = 2
    tok_key = jax.random.fold_in(key, 123)
    tokens = jax.random.randint(tok_key, (B, SEQ), 0, VOCAB, dtype=jnp.int32)

    out = simple_model_forward(tokens, *params)
    out = jax.block_until_ready(out)

    # Reference in plain JAX using the same bf16-rounded streamed operands (the kernel
    # streams x/W1 in bf16 with f32 accumulation), so tolerances stay tight.
    emb_table, w1, b1, w2, b2 = params
    x_ref = jnp.take(emb_table, tokens, axis=0).reshape(B, K)
    x_bf = x_ref.astype(jnp.bfloat16).astype(jnp.float32)
    w1_bf = w1.astype(jnp.bfloat16).astype(jnp.float32)
    h_ref = jnp.maximum(jnp.maximum(x_bf, 0.0) @ w1_bf + b1, 0.0)
    ref = h_ref @ w2 + b2

    assert out.shape == (B, OUT)
    assert jnp.allclose(out, ref, atol=5e-3, rtol=5e-2), (
        f"max abs diff {jnp.max(jnp.abs(out - ref))}")

    print("KERNEL_OK")
</pallas_src>

<mosaic_0001>
module attributes {stable_mosaic.version = 11 : i64} {
  func.func @mlp_kernel(%arg0: i32, %arg1: i32, %arg2: memref<2x3840xbf16, #tpu.memory_space<vmem>>, %arg3: memref<3840x512xbf16, #tpu.memory_space<vmem>>, %arg4: memref<1x512xf32, #tpu.memory_space<vmem>>, %arg5: memref<512x4xf32, #tpu.memory_space<vmem>>, %arg6: memref<1x2x4xf32, #tpu.memory_space<vmem>>, %arg7: memref<2x512xf32, #tpu.memory_space<vmem>>) attributes {dimension_semantics = [#tpu.dimension_semantics<parallel>, #tpu.dimension_semantics<arbitrary>], iteration_bounds = array<i64: 2, 2>, scalar_prefetch = 0 : i64, scratch_operands = 1 : i64, tpu.core_type = #tpu.core_type<tc>, window_params = [{transform_indices = @transform_0, window_bounds = array<i64: 2, 3840>}, {transform_indices = @transform_1, window_bounds = array<i64: 3840, 512>}, {transform_indices = @transform_2, window_bounds = array<i64: 1, 512>}, {transform_indices = @transform_3, window_bounds = array<i64: 512, 4>}, {transform_indices = @transform_4, window_bounds = array<i64: 1, 2, 4>}]} {
    %c0_i32 = arith.constant 0 : i32
    %0 = arith.cmpi eq, %arg1, %c0_i32 : i32
    %1 = arith.extui %0 : i1 to i32
    %c0_i32_0 = arith.constant 0 : i32
    %2 = arith.cmpi ne, %1, %c0_i32_0 : i32
    scf.if %2 {
      %cst_10 = arith.constant 0.000000e+00 : f32
      %14 = vector.broadcast %cst_10 : f32 to vector<2x512xf32>
      %c0_11 = arith.constant 0 : index
      %c0_12 = arith.constant 0 : index
      %15 = vector.load %arg7[%c0_11, %c0_12] : memref<2x512xf32, #tpu.memory_space<vmem>>, vector<2x512xf32>
      tpu.vector_store %arg7[%c0_11, %c0_12], %14 {strides = array<i32>} : memref<2x512xf32, #tpu.memory_space<vmem>>, vector<2x512xf32>,
    } else {
    }
    %c0 = arith.constant 0 : index
    %c0_1 = arith.constant 0 : index
    %3 = vector.load %arg2[%c0, %c0_1] : memref<2x3840xbf16, #tpu.memory_space<vmem>>, vector<2x3840xbf16>
    %cst = arith.constant 0.000000e+00 : bf16
    %4 = vector.broadcast %cst : bf16 to vector<2x3840xbf16>
    %5 = arith.maximumf %3, %4 : vector<2x3840xbf16>
    %c0_2 = arith.constant 0 : index
    %c0_3 = arith.constant 0 : index
    %6 = vector.load %arg7[%c0_2, %c0_3] : memref<2x512xf32, #tpu.memory_space<vmem>>, vector<2x512xf32>
    %c0_4 = arith.constant 0 : index
    %c0_5 = arith.constant 0 : index
    %7 = vector.load %arg3[%c0_4, %c0_5] : memref<3840x512xbf16, #tpu.memory_space<vmem>>, vector<3840x512xbf16>
    %cst_6 = arith.constant dense<0.000000e+00> : vector<2x512xf32>
    %8 = tpu.matmul %5, %7, %cst_6 {dimension_numbers = #tpu.dot_dimension_numbers<[1], [0], [0], [1], [0, 0, 1, 1], [], []>} : vector<2x3840xbf16>, vector<3840x512xbf16>, vector<2x512xf32> -> vector<2x512xf32>
    %9 = arith.addf %6, %8 : vector<2x512xf32>
    %c0_7 = arith.constant 0 : index
    %c0_8 = arith.constant 0 : index
    %10 = vector.load %arg7[%c0_7, %c0_8] : memref<2x512xf32, #tpu.memory_space<vmem>>, vector<2x512xf32>
    tpu.vector_store %arg7[%c0_7, %c0_8], %9 {strides = array<i32>} : memref<2x512xf32, #tpu.memory_space<vmem>>, vector<2x512xf32>,
    %c1_i32 = arith.constant 1 : i32
    %11 = arith.cmpi eq, %arg1, %c1_i32 : i32
    %12 = arith.extui %11 : i1 to i32
    %c0_i32_9 = arith.constant 0 : i32
    %13 = arith.cmpi ne, %12, %c0_i32_9 : i32
    scf.if %13 {
      %c0_10 = arith.constant 0 : index
      %c0_11 = arith.constant 0 : index
      %14 = vector.load %arg7[%c0_10, %c0_11] : memref<2x512xf32, #tpu.memory_space<vmem>>, vector<2x512xf32>
      %c0_12 = arith.constant 0 : index
      %c0_13 = arith.constant 0 : index
      %15 = vector.load %arg4[%c0_12, %c0_13] : memref<1x512xf32, #tpu.memory_space<vmem>>, vector<1x512xf32>
      %16 = vector.broadcast %15 : vector<1x512xf32> to vector<2x512xf32>
      %17 = arith.addf %14, %16 : vector<2x512xf32>
      %cst_14 = arith.constant 0.000000e+00 : f32
      %18 = vector.broadcast %cst_14 : f32 to vector<2x512xf32>
      %19 = arith.maximumf %17, %18 : vector<2x512xf32>
      %c0_15 = arith.constant 0 : index
      %c0_16 = arith.constant 0 : index
      %20 = vector.load %arg5[%c0_15, %c0_16] : memref<512x4xf32, #tpu.memory_space<vmem>>, vector<512x4xf32>
      %cst_17 = arith.constant dense<0.000000e+00> : vector<2x4xf32>
      %21 = tpu.matmul %19, %20, %cst_17 {dimension_numbers = #tpu.dot_dimension_numbers<[1], [0], [0], [1], [0, 0, 1, 1], [], []>} : vector<2x512xf32>, vector<512x4xf32>, vector<2x4xf32> -> vector<2x4xf32>
      %22 = vector.shape_cast %21 : vector<2x4xf32> to vector<1x2x4xf32>
      %c0_18 = arith.constant 0 : index
      %c0_19 = arith.constant 0 : index
      %c0_20 = arith.constant 0 : index
      %23 = vector.load %arg6[%c0_18, %c0_19, %c0_20] : memref<1x2x4xf32, #tpu.memory_space<vmem>>, vector<1x2x4xf32>
      tpu.vector_store %arg6[%c0_18, %c0_19, %c0_20], %22 {strides = array<i32>} : memref<1x2x4xf32, #tpu.memory_space<vmem>>, vector<1x2x4xf32>,
    } else {
    }
    return
  }
  func.func @transform_0(%arg0: i32, %arg1: i32) -> (i32, i32) {
    %c0_i32 = arith.constant 0 : i32
    %c0_i32_0 = arith.constant 0 : i32
    return %c0_i32, %arg1 : i32, i32
  }
  func.func @transform_1(%arg0: i32, %arg1: i32) -> (i32, i32) {
    %c0_i32 = arith.constant 0 : i32
    return %arg1, %arg0 : i32, i32
  }
  func.func @transform_2(%arg0: i32, %arg1: i32) -> (i32, i32) {
    %c0_i32 = arith.constant 0 : i32
    %c0_i32_0 = arith.constant 0 : i32
    return %c0_i32, %arg0 : i32, i32
  }
  func.func @transform_3(%arg0: i32, %arg1: i32) -> (i32, i32) {
    %c0_i32 = arith.constant 0 : i32
    %c0_i32_0 = arith.constant 0 : i32
    return %arg0, %c0_i32 : i32, i32
  }
  func.func @transform_4(%arg0: i32, %arg1: i32) -> (i32, i32, i32) {
    %c0_i32 = arith.constant 0 : i32
    %c0_i32_0 = arith.constant 0 : i32
    %c0_i32_1 = arith.constant 0 : i32
    return %arg0, %c0_i32, %c0_i32_0 : i32, i32, i32
  }
}

</mosaic_0001>

<llo_original>
// kernel: tpu_custom_call.1
$region0: #{tpu_custom_call.1}
  #allocation0 [shape = 'u32[]', space=smem, size = 0x4, offset = 0x4, fixed_abs, tag = 'smem constant byte address 0x4 - core index']
  #allocation1 [shape = 'u32[144,128]{1,0:T(1,128)}', space=vmem, size = 0x12000, scoped, tag = 'internal scratch']
  #allocation2 [shape = 'f32[2,512]{1,0:T(2,128)}', space=vmem, size = 0x1000, scoped, tag = 'scratch operand']
  %s0 = inlined_call_operand.hbm [shape: bf16[2,7680], index: 0, kind: input, shape index: {}]
  %s1 = inlined_call_operand.hbm [shape: bf16[7680,1024], index: 1, kind: input, shape index: {}]
  %s2 = inlined_call_operand.hbm [shape: f32[1,1024], index: 2, kind: input, shape index: {}]
  %s3 = inlined_call_operand.vmem [shape: f32[1024,4], index: 3, kind: input, shape index: {}]
  %s4 = inlined_call_operand.hbm [shape: f32[2,2,4], index: 4, kind: output, shape index: {}]
  %s5 = sld [smem:[#allocation0]]
  $region69: #{tpu_custom_call.1} parent=0
    _
  %s7 = ssub.s32 1, %s5
  %s8 = scalar_select 0, %s7, %s5
  $region1: #{tpu_custom_call.1} parent=0
    #allocation3 [shape = 'u8[30720]{0}', space=vmem, size = 0x7800, scoped, tag = 'input window, operand 0']
    #allocation4 [shape = 's32[2]{0}', space=sflag, size = 0x8, scoped, tag = 'scoped memory for tpu_custom_call.1']
    #allocation5 [shape = 's32[2]{0}', space=sflag, size = 0x8, scoped, tag = 'scoped memory for tpu_custom_call.1']
    #allocation6 [shape = 'u8[7864320]{0}', space=vmem, size = 0x780000, scoped, tag = 'input window, operand 1']
    #allocation7 [shape = 's32[2]{0}', space=sflag, size = 0x8, scoped, tag = 'scoped memory for tpu_custom_call.1']
    #allocation8 [shape = 'u8[4096]{0}', space=vmem, size = 0x1000, scoped, tag = 'input window, operand 2']
    #allocation9 [shape = 'u8[2048]{0}', space=vmem, size = 0x800, scoped, tag = 'output window, operand 0']
    %9 = vsyncpa [#allocation4], 0
    %s10 = scalar_lea.sflag [#allocation4], 1
    %11 = vsyncpa %s10, 0
    %12 = vsyncpa [#allocation7], 0
    %s13 = scalar_lea.sflag [#allocation7], 1
    %14 = vsyncpa %s13, 0
    %15 = vsyncpa [#allocation5], 0
    %s16 = scalar_lea.sflag [#allocation5], 1
    %17 = vsyncpa %s16, 0
    loop: start=0, step=1, limit=6
    $region2: #{tpu_custom_call.1} parent=1 // loop_pre_header
      _
    $region3: #{tpu_custom_call.1} parent=1 // loop_header
      %s19 = sphi 0, %s23
      %p20 = scmp.ge.s32.totalorder %s19, 6
      %s26 = sphi 0, %s38
      %s27 = sphi 0, %s34
      %s28 = sphi 0, %s26
      %s29 = sphi 0, %s27
      %s30 = sphi 0, %s28
      %s31 = sphi 0, %s29
      %s41 = sphi 0, %s43
      %s44 = sphi 0, %s41
      %s45 = sphi 0, %s44
      %s61 = sphi 0, %s45
      %s69 = sphi 0, %s71
      %s72 = sphi 0, %s69
      %s73 = sphi 0, %s72
      %s89 = sphi 0, %s73
      %s95 = sphi 0, %s97
      %s98 = sphi 0, %s95
      %s99 = sphi 0, %s98
      %s115 = sphi 0, %s99
      %s121 = sphi 0, %s123
      %s124 = sphi 0, %s121
      %s125 = sphi 0, %s124
      %s141 = sphi 0, %s125
      %s147 = sphi 0, %s149
      %s150 = sphi 0, %s147
      %s151 = sphi 0, %s150
      %s167 = sphi 0, %s151
    $region4: #{tpu_custom_call.1} parent=1 // loop_header_branch
      %22 = sbr.rel (%p20) target = $region8
    $region5: #{tpu_custom_call.1} parent=1 // loop_body
      %s24 = ssub.s32 %s19, 1
      %s25 = ssub.s32 %s19, 2
      %s32 = sadd.s32 1, %s27
      %p33 = scmp.ge.s32.totalorder %s32, 2
      %s34 = scalar_select %p33, 0, %s32
      %s35 = sadd.s32 1, %s26
      %s36 = scalar_select %p33, %s35, %s26
      %p37 = scmp.ge.s32.totalorder %s36, 2
      %s38 = scalar_select %p37, 0, %s36
      %s39 = ssub.s32 %s27, %s34
      %p40 = scmp.eq.s32.totalorder %s39, 0
      %s42 = sadd.s32 %s41, 1
      %s43 = scalar_select %p40, %s41, %s42
      %p46 = pneg %p40
      %p47 = scmp.eq.s32.totalorder %s19, 3
      %p48 = por %p46, %p47
      %p49 = scmp.ne.s32.totalorder %s41, %s44
      %p50 = scmp.eq.s32.totalorder %s19, 0
      %p51 = por %p49, %p50
      %p52 = scmp.ne.s32.totalorder %s41, %s44
      %p53 = scmp.eq.s32.totalorder %s24, 3
      %p54 = por %p52, %p53
      %p55 = scmp.ne.s32.totalorder %s44, %s45
      %p56 = scmp.eq.s32.totalorder %s24, 0
      %p57 = por %p55, %p56
      %p58 = scmp.ne.s32.totalorder %s44, %s45
      %p59 = scmp.eq.s32.totalorder %s25, 3
      %p60 = por %p58, %p59
      %p62 = scmp.ne.s32.totalorder %s45, %s61
      %p63 = scmp.eq.s32.totalorder %s25, 0
      %p64 = por %p62, %p63
      %s65 = ssub.s32 %s27, %s34
      %s66 = ssub.s32 %s26, %s38
      %s67 = sor.u32 %s65, %s66
      %p68 = scmp.eq.s32.totalorder %s67, 0
      %s70 = sadd.s32 %s69, 1
      %s71 = scalar_select %p68, %s69, %s70
      %p74 = pneg %p68
      %p75 = scmp.eq.s32.totalorder %s19, 3
      %p76 = por %p74, %p75
      %p77 = scmp.ne.s32.totalorder %s69, %s72
      %p78 = scmp.eq.s32.totalorder %s19, 0
      %p79 = por %p77, %p78
      %p80 = scmp.ne.s32.totalorder %s69, %s72
      %p81 = scmp.eq.s32.totalorder %s24, 3
      %p82 = por %p80, %p81
      %p83 = scmp.ne.s32.totalorder %s72, %s73
      %p84 = scmp.eq.s32.totalorder %s24, 0
      %p85 = por %p83, %p84
      %p86 = scmp.ne.s32.totalorder %s72, %s73
      %p87 = scmp.eq.s32.totalorder %s25, 3
      %p88 = por %p86, %p87
      %p90 = scmp.ne.s32.totalorder %s73, %s89
      %p91 = scmp.eq.s32.totalorder %s25, 0
      %p92 = por %p90, %p91
      %s93 = ssub.s32 %s26, %s38
      %p94 = scmp.eq.s32.totalorder %s93, 0
      %s96 = sadd.s32 %s95, 1
      %s97 = scalar_select %p94, %s95, %s96
      %p100 = pneg %p94
      %p101 = scmp.eq.s32.totalorder %s19, 3
      %p102 = por %p100, %p101
      %p103 = scmp.ne.s32.totalorder %s95, %s98
      %p104 = scmp.eq.s32.totalorder %s19, 0
      %p105 = por %p103, %p104
      %p106 = scmp.ne.s32.totalorder %s95, %s98
      %p107 = scmp.eq.s32.totalorder %s24, 3
      %p108 = por %p106, %p107
      %p109 = scmp.ne.s32.totalorder %s98, %s99
      %p110 = scmp.eq.s32.totalorder %s24, 0
      %p111 = por %p109, %p110
      %p112 = scmp.ne.s32.totalorder %s98, %s99
      %p113 = scmp.eq.s32.totalorder %s25, 3
      %p114 = por %p112, %p113
      %p116 = scmp.ne.s32.totalorder %s99, %s115
      %p117 = scmp.eq.s32.totalorder %s25, 0
      %p118 = por %p116, %p117
      %s119 = ssub.s32 %s26, %s38
      %p120 = scmp.eq.s32.totalorder %s119, 0
      %s122 = sadd.s32 %s121, 1
      %s123 = scalar_select %p120, %s121, %s122
      %p126 = pneg %p120
      %p127 = scmp.eq.s32.totalorder %s19, 3
      %p128 = por %p126, %p127
      %p129 = scmp.ne.s32.totalorder %s121, %s124
      %p130 = scmp.eq.s32.totalorder %s19, 0
      %p131 = por %p129, %p130
      %p132 = scmp.ne.s32.totalorder %s121, %s124
      %p133 = scmp.eq.s32.totalorder %s24, 3
      %p134 = por %p132, %p133
      %p135 = scmp.ne.s32.totalorder %s124, %s125
      %p136 = scmp.eq.s32.totalorder %s24, 0
      %p137 = por %p135, %p136
      %p138 = scmp.ne.s32.totalorder %s124, %s125
      %p139 = scmp.eq.s32.totalorder %s25, 3
      %p140 = por %p138, %p139
      %p142 = scmp.ne.s32.totalorder %s125, %s141
      %p143 = scmp.eq.s32.totalorder %s25, 0
      %p144 = por %p142, %p143
      %s145 = ssub.s32 %s26, %s38
      %p146 = scmp.eq.s32.totalorder %s145, 0
      %s148 = sadd.s32 %s147, 1
      %s149 = scalar_select %p146, %s147, %s148
      %p152 = pneg %p146
      %p153 = scmp.eq.s32.totalorder %s19, 3
      %p154 = por %p152, %p153
      %p155 = scmp.ne.s32.totalorder %s147, %s150
      %p156 = scmp.eq.s32.totalorder %s19, 0
      %p157 = por %p155, %p156
      %p158 = scmp.ne.s32.totalorder %s147, %s150
      %p159 = scmp.eq.s32.totalorder %s24, 3
      %p160 = por %p158, %p159
      %p161 = scmp.ne.s32.totalorder %s150, %s151
      %p162 = scmp.eq.s32.totalorder %s24, 0
      %p163 = por %p161, %p162
      %p164 = scmp.ne.s32.totalorder %s150, %s151
      %p165 = scmp.eq.s32.totalorder %s25, 3
      %p166 = por %p164, %p165
      %p168 = scmp.ne.s32.totalorder %s151, %s167
      %p169 = scmp.eq.s32.totalorder %s25, 0
      %p170 = por %p168, %p169
      %p171 = scmp.le.s32.totalorder 1, %s19
      %p172 = scmp.lt.s32.totalorder %s19, 5
      %p173 = pnand %p171, %p172
      %p174 = pneg %p173
      // Predicated region
      $region9: #{tpu_custom_call.1} parent=5 // pred_check
        _
      $region10: #{tpu_custom_call.1} parent=5 // pred_check_branch
        %176 = sbr.rel (%p173) target = $region12
      $region11: #{tpu_custom_call.1} parent=5 // pred_region
        %s177 = ssub.s32 %s19, 1
      $region12: #{tpu_custom_call.1} parent=5 // pred_fallthru
        _
      %p178 = scmp.lt.s32.totalorder %s19, 4
      // Predicated region
      $region13: #{tpu_custom_call.1} parent=5 // pred_check
        %p179 = pneg %p178
      $region14: #{tpu_custom_call.1} parent=5 // pred_check_branch
        %181 = sbr.rel (%p179) target = $region16
      $region15: #{tpu_custom_call.1} parent=5 // pred_region
        // Predicated region
        $region17: #{tpu_custom_call.1} parent=15 // pred_check
          %p182 = pneg %p51
        $region18: #{tpu_custom_call.1} parent=15 // pred_check_branch
          %184 = sbr.rel (%p182) target = $region20
        $region19: #{tpu_custom_call.1} parent=15 // pred_region
          %s185 = sand.u32 %s41, 1
          %s186 = scalar_lea.sflag [#allocation4], %s185
          %s187 = sand.u32 %s41, 1
          %s188 = smul.addr %s187, 30
          %s189 = scalar_lea.vmem [#allocation3], %s188
          %s190 = smul.u32 30, %s27
          %s192 = ssub.s32 480, 480
          %193 = vsyncadd %s186, %s192
          %s194 = smul.addr %s190, 16
          %s195 = scalar_lea.hbm %s0, %s194
          %s197 = sshll.u32 %s189, 4
          %s198 = int_to_ptr.vmem [resolvable:$true] %s197
          %200 = dma.hbm_to_vmem [thread:$0]  %s195, 480, %s198, %s186
        $region20: #{tpu_custom_call.1} parent=15 // pred_fallthru
          _
        // Predicated region
        $region21: #{tpu_custom_call.1} parent=15 // pred_check
          %p201 = pneg %p79
        $region22: #{tpu_custom_call.1} parent=15 // pred_check_branch
          %203 = sbr.rel (%p201) target = $region24
        $region23: #{tpu_custom_call.1} parent=15 // pred_region
          %s204 = sand.u32 %s19, 1
          %s205 = scalar_lea.sflag [#allocation7], %s204
          %s206 = sand.u32 %s69, 1
          %s207 = smul.addr %s206, 7680
          %s208 = scalar_lea.vmem [#allocation6], %s207
          %s209 = smul.u32 480, %s27
          %s210 = smul.u32 4, %s26
          %s212 = ssub.s32 122880, 122880
          %213 = vsyncadd %s205, %s212
          %s214 = smul.addr %s209, 8
          %s215 = sadd.s32 %s210, %s214
          %s216 = smul.addr %s215, 64
          %s217 = scalar_lea.hbm %s1, %s216
          %s218 = sshll.u32 %s208, 4
          %s219 = int_to_ptr.vmem [resolvable:$true] %s218
          %224 = dma.hbm_to_vmem [thread:$0]  %s217, 122880, %s219, %s205, 512, 256, 16
        $region24: #{tpu_custom_call.1} parent=15 // pred_fallthru
          _
        // Predicated region
        $region25: #{tpu_custom_call.1} parent=15 // pred_check
          %p225 = pneg %p105
        $region26: #{tpu_custom_call.1} parent=15 // pred_check_branch
          %227 = sbr.rel (%p225) target = $region28
        $region27: #{tpu_custom_call.1} parent=15 // pred_region
          %s228 = sand.u32 %s19, 1
          %s229 = scalar_lea.sflag [#allocation7], %s228
          %s230 = sand.u32 %s95, 1
          %s231 = smul.addr %s230, 4
          %s232 = scalar_lea.vmem [#allocation8], %s231
          %s233 = smul.u32 4, %s26
          %s235 = ssub.s32 64, 64
          %236 = vsyncadd %s229, %s235
          %s237 = smul.addr %s233, 16
          %s238 = scalar_lea.hbm %s2, %s237
          %s240 = sshll.u32 %s232, 4
          %s241 = int_to_ptr.vmem [resolvable:$true] %s240
          %243 = dma.hbm_to_vmem [thread:$0]  %s238, 64, %s241, %s229
        $region28: #{tpu_custom_call.1} parent=15 // pred_fallthru
          _
        // Predicated region
        $region29: #{tpu_custom_call.1} parent=15 // pred_check
          %p244 = pneg %p131
        $region30: #{tpu_custom_call.1} parent=15 // pred_check_branch
          %246 = sbr.rel (%p244) target = $region32
        $region31: #{tpu_custom_call.1} parent=15 // pred_region
          %s247 = smul.u32 64, %s26
          %p248 = scmp.lt.s32.totalorder %s247, 127
          %s249 = scalar_select %p248, %s247, 127
          %s250 = smul.addr %s249, 8
          %s251 = scalar_lea.vmem %s3, %s250
          %s252 = smul.u32 64, %s26
        $region32: #{tpu_custom_call.1} parent=15 // pred_fallthru
          _
      $region16: #{tpu_custom_call.1} parent=5 // pred_fallthru
        _
      %p253 = scmp.le.s32.totalorder 1, %s19
      %p254 = scmp.lt.s32.totalorder %s19, 5
      %p255 = pnand %p253, %p254
      %p256 = pneg %p255
      // Predicated region
      $region33: #{tpu_custom_call.1} parent=5 // pred_check
        _
      $region34: #{tpu_custom_call.1} parent=5 // pred_check_branch
        %258 = sbr.rel (%p255) target = $region36
      $region35: #{tpu_custom_call.1} parent=5 // pred_region
        %s259 = ssub.s32 %s19, 1
        %s260 = sand.u32 %s44, 1
        %s261 = scalar_lea.sflag [#allocation4], %s260
        %s262 = sand.u32 %s44, 1
        %s263 = smul.addr %s262, 30
        %s264 = scalar_lea.vmem [#allocation3], %s263
        // Predicated region
        $region37: #{tpu_custom_call.1} parent=35 // pred_check
          %p265 = pneg %p57
        $region38: #{tpu_custom_call.1} parent=35 // pred_check_branch
          %267 = sbr.rel (%p265) target = $region40
        $region39: #{tpu_custom_call.1} parent=35 // pred_region
          %268 = dma.done %s261, 480
        $region40: #{tpu_custom_call.1} parent=35 // pred_fallthru
          _
        %s269 = sand.u32 %s24, 1
        %s270 = scalar_lea.sflag [#allocation7], %s269
        %s271 = sand.u32 %s72, 1
        %s272 = smul.addr %s271, 7680
        %s273 = scalar_lea.vmem [#allocation6], %s272
        // Predicated region
        $region41: #{tpu_custom_call.1} parent=35 // pred_check
          %p274 = pneg %p85
        $region42: #{tpu_custom_call.1} parent=35 // pred_check_branch
          %276 = sbr.rel (%p274) target = $region44
        $region43: #{tpu_custom_call.1} parent=35 // pred_region
          %277 = dma.done %s270, 122880
        $region44: #{tpu_custom_call.1} parent=35 // pred_fallthru
          _
        %s278 = sand.u32 %s24, 1
        %s279 = scalar_lea.sflag [#allocation7], %s278
        %s280 = sand.u32 %s98, 1
        %s281 = smul.addr %s280, 4
        %s282 = scalar_lea.vmem [#allocation8], %s281
        // Predicated region
        $region45: #{tpu_custom_call.1} parent=35 // pred_check
          %p283 = pneg %p111
        $region46: #{tpu_custom_call.1} parent=35 // pred_check_branch
          %285 = sbr.rel (%p283) target = $region48
        $region47: #{tpu_custom_call.1} parent=35 // pred_region
          %286 = dma.done %s279, 64
        $region48: #{tpu_custom_call.1} parent=35 // pred_fallthru
          _
        %s287 = sand.u32 %s44, 1
        %s288 = scalar_lea.sflag [#allocation4], %s287
        %s289 = sand.u32 %s44, 1
        %s290 = smul.addr %s289, 30
        %s291 = scalar_lea.vmem [#allocation3], %s290
        %p292 = pneg %p57
        %p293 = pneg %p54
        %s294 = sand.u32 %s24, 1
        %s295 = scalar_lea.sflag [#allocation7], %s294
        %s296 = sand.u32 %s72, 1
        %s297 = smul.addr %s296, 7680
        %s298 = scalar_lea.vmem [#allocation6], %s297
        %p299 = pneg %p85
        %p300 = pneg %p82
        %s301 = sand.u32 %s24, 1
        %s302 = scalar_lea.sflag [#allocation7], %s301
        %s303 = sand.u32 %s98, 1
        %s304 = smul.addr %s303, 4
        %s305 = scalar_lea.vmem [#allocation8], %s304
        %p306 = pneg %p111
        %p307 = pneg %p108
        %s308 = smul.u32 64, %s28
        %p309 = scmp.lt.s32.totalorder %s308, 127
        %s310 = scalar_select %p309, %s308, 127
        %s311 = smul.addr %s310, 8
        %s312 = scalar_lea.vmem %s3, %s311
        %p313 = pneg %p137
        %p314 = pneg %p134
        %p315 = pneg %p163
        %p316 = pneg %p160
        %s317 = sand.u32 %s150, 1
        %s318 = scalar_lea.sflag [#allocation5], %s317
        %s319 = sand.u32 %s150, 1
        %s320 = smul.addr %s319, 2
        %s321 = scalar_lea.vmem [#allocation9], %s320
        %s322 = smul.u32 30, %s29
        %s323 = smul.u32 480, %s29
        %s324 = smul.u32 4, %s28
        %s325 = smul.u32 4, %s28
        %s326 = smul.u32 64, %s28
        %p327 = scmp.lt.s32.totalorder %s326, 127
        %s328 = scalar_select %p327, %s326, 127
        %s329 = smul.addr %s328, 8
        %s330 = scalar_lea.vmem %s3, %s329
        %s331 = smul.u32 64, %s28
        %p333 = scmp.eq.s32.totalorder %s29, 0
        // Predicated region
        $region49: #{tpu_custom_call.1} parent=35 // pred_check
          %p334 = pneg %p333
        $region50: #{tpu_custom_call.1} parent=35 // pred_check_branch
          %336 = sbr.rel (%p334) target = $region52
        $region51: #{tpu_custom_call.1} parent=35 // pred_region
          %337 = vst [vmem:[#allocation2] sm:$0xff] 0.0
        $region52: #{tpu_custom_call.1} parent=35 // pred_fallthru
          _
        %v338 = vld [vmem:[%s264] sm:$0xff]
        %v339 = vld [vmem:[%s264 + $0x8] sm:$0xff]
        %v340 = vld [vmem:[%s264 + $0x10] sm:$0xff]
        %v341 = vld [vmem:[%s264 + $0x18] sm:$0x3f]
        %v342 = vmax.bf16 %v338, 0
        %v343 = vmax.bf16 %v339, 0
        %v344 = vmax.bf16 %v340, 0
        %v345 = vmax.bf16 %v341, 0
        %v346 = vld [vmem:[#allocation2] sm:$0xff]
        %v347 = vld [vmem:[%s273] sm:$0xff]
        %v348 = vld [vmem:[%s273 + $0x8] sm:$0xff]
        %v349 = vld [vmem:[%s273 + $0x10] sm:$0xff]
        %v350 = vld [vmem:[%s273 + $0x18] sm:$0xff]
        %v351 = vld [vmem:[%s273 + $0x20] sm:$0xff]
        %v352 = vld [vmem:[%s273 + $0x28] sm:$0xff]
        %v353 = vld [vmem:[%s273 + $0x30] sm:$0xff]
        %v354 = vld [vmem:[%s273 + $0x38] sm:$0xff]
        %v355 = vld [vmem:[%s273 + $0x40] sm:$0xff]
        %v356 = vld [vmem:[%s273 + $0x48] sm:$0xff]
        %v357 = vld [vmem:[%s273 + $0x50] sm:$0xff]
        %v358 = vld [vmem:[%s273 + $0x58] sm:$0xff]
        %v359 = vld [vmem:[%s273 + $0x60] sm:$0xff]
        %v360 = vld [vmem:[%s273 + $0x68] sm:$0xff]
        %v361 = vld [vmem:[%s273 + $0x70] sm:$0xff]
        %v362 = vld [vmem:[%s273 + $0x78] sm:$0xff]
        %v363 = vld [vmem:[%s273 + $0x80] sm:$0xff]
        %v364 = vld [vmem:[%s273 + $0x88] sm:$0xff]
        %v365 = vld [vmem:[%s273 + $0x90] sm:$0xff]
        %v366 = vld [vmem:[%s273 + $0x98] sm:$0xff]
        %v367 = vld [vmem:[%s273 + $0xa0] sm:$0xff]
        %v368 = vld [vmem:[%s273 + $0xa8] sm:$0xff]
        %v369 = vld [vmem:[%s273 + $0xb0] sm:$0xff]
        %v370 = vld [vmem:[%s273 + $0xb8] sm:$0xff]
        %v371 = vld [vmem:[%s273 + $0xc0] sm:$0xff]
        %v372 = vld [vmem:[%s273 + $0xc8] sm:$0xff]
        %v373 = vld [vmem:[%s273 + $0xd0] sm:$0xff]
        %v374 = vld [vmem:[%s273 + $0xd8] sm:$0xff]
        %v375 = vld [vmem:[%s273 + $0xe0] sm:$0xff]
        %v376 = vld [vmem:[%s273 + $0xe8] sm:$0xff]
        %v377 = vld [vmem:[%s273 + $0xf0] sm:$0xff]
        %v378 = vld [vmem:[%s273 + $0xf8] sm:$0xff]
        %v379 = vld [vmem:[%s273 + $0x100] sm:$0xff]
        %v380 = vld [vmem:[%s273 + $0x108] sm:$0xff]
        %v381 = vld [vmem:[%s273 + $0x110] sm:$0xff]
        %v382 = vld [vmem:[%s273 + $0x118] sm:$0xff]
        %v383 = vld [vmem:[%s273 + $0x120] sm:$0xff]
        %v384 = vld [vmem:[%s273 + $0x128] sm:$0xff]
        %v385 = vld [vmem:[%s273 + $0x130] sm:$0xff]
        %v386 = vld [vmem:[%s273 + $0x138] sm:$0xff]
        %v387 = vld [vmem:[%s273 + $0x140] sm:$0xff]
        %v388 = vld [vmem:[%s273 + $0x148] sm:$0xff]
        %v389 = vld [vmem:[%s273 + $0x150] sm:$0xff]
        %v390 = vld [vmem:[%s273 + $0x158] sm:$0xff]
        %v391 = vld [vmem:[%s273 + $0x160] sm:$0xff]
        %v392 = vld [vmem:[%s273 + $0x168] sm:$0xff]
        %v393 = vld [vmem:[%s273 + $0x170] sm:$0xff]
        %v394 = vld [vmem:[%s273 + $0x178] sm:$0xff]
        %v395 = vld [vmem:[%s273 + $0x180] sm:$0xff]
        %v396 = vld [vmem:[%s273 + $0x188] sm:$0xff]
        %v397 = vld [vmem:[%s273 + $0x190] sm:$0xff]
        %v398 = vld [vmem:[%s273 + $0x198] sm:$0xff]
        %v399 = vld [vmem:[%s273 + $0x1a0] sm:$0xff]
        %v400 = vld [vmem:[%s273 + $0x1a8] sm:$0xff]
        %v401 = vld [vmem:[%s273 + $0x1b0] sm:$0xff]
        %v402 = vld [vmem:[%s273 + $0x1b8] sm:$0xff]
        %v403 = vld [vmem:[%s273 + $0x1c0] sm:$0xff]
        %v404 = vld [vmem:[%s273 + $0x1c8] sm:$0xff]
        %v405 = vld [vmem:[%s273 + $0x1d0] sm:$0xff]
        %v406 = vld [vmem:[%s273 + $0x1d8] sm:$0xff]
        %v407 = vld [vmem:[%s273 + $0x1e0] sm:$0xff]
        %v408 = vld [vmem:[%s273 + $0x1e8] sm:$0xff]
        %v409 = vld [vmem:[%s273 + $0x1f0] sm:$0xff]
        %v410 = vld [vmem:[%s273 + $0x1f8] sm:$0xff]
        %v411 = vld [vmem:[%s273 + $0x200] sm:$0xff]
        %v412 = vld [vmem:[%s273 + $0x208] sm:$0xff]
        %v413 = vld [vmem:[%s273 + $0x210] sm:$0xff]
        %v414 = vld [vmem:[%s273 + $0x218] sm:$0xff]
        %v415 = vld [vmem:[%s273 + $0x220] sm:$0xff]
        %v416 = vld [vmem:[%s273 + $0x228] sm:$0xff]
        %v417 = vld [vmem:[%s273 + $0x230] sm:$0xff]
        %v418 = vld [vmem:[%s273 + $0x238] sm:$0xff]
        %v419 = vld [vmem:[%s273 + $0x240] sm:$0xff]
        %v420 = vld [vmem:[%s273 + $0x248] sm:$0xff]
        %v421 = vld [vmem:[%s273 + $0x250] sm:$0xff]
        %v422 = vld [vmem:[%s273 + $0x258] sm:$0xff]
        %v423 = vld [vmem:[%s273 + $0x260] sm:$0xff]
        %v424 = vld [vmem:[%s273 + $0x268] sm:$0xff]
        %v425 = vld [vmem:[%s273 + $0x270] sm:$0xff]
        %v426 = vld [vmem:[%s273 + $0x278] sm:$0xff]
        %v427 = vld [vmem:[%s273 + $0x280] sm:$0xff]
        %v428 = vld [vmem:[%s273 + $0x288] sm:$0xff]
        %v429 = vld [vmem:[%s273 + $0x290] sm:$0xff]
        %v430 = vld [vmem:[%s273 + $0x298] sm:$0xff]
        %v431 = vld [vmem:[%s273 + $0x2a0] sm:$0xff]
        %v432 = vld [vmem:[%s273 + $0x2a8] sm:$0xff]
        %v433 = vld [vmem:[%s273 + $0x2b0] sm:$0xff]
        %v434 = vld [vmem:[%s273 + $0x2b8] sm:$0xff]
        %v435 = vld [vmem:[%s273 + $0x2c0] sm:$0xff]
        %v436 = vld [vmem:[%s273 + $0x2c8] sm:$0xff]
        %v437 = vld [vmem:[%s273 + $0x2d0] sm:$0xff]
        %v438 = vld [vmem:[%s273 + $0x2d8] sm:$0xff]
        %v439 = vld [vmem:[%s273 + $0x2e0] sm:$0xff]
        %v440 = vld [vmem:[%s273 + $0x2e8] sm:$0xff]
        %v441 = vld [vmem:[%s273 + $0x2f0] sm:$0xff]
        %v442 = vld [vmem:[%s273 + $0x2f8] sm:$0xff]
        %v443 = vld [vmem:[%s273 + $0x300] sm:$0xff]
        %v444 = vld [vmem:[%s273 + $0x308] sm:$0xff]
        %v445 = vld [vmem:[%s273 + $0x310] sm:$0xff]
        %v446 = vld [vmem:[%s273 + $0x318] sm:$0xff]
        %v447 = vld [vmem:[%s273 + $0x320] sm:$0xff]
        %v448 = vld [vmem:[%s273 + $0x328] sm:$0xff]
        %v449 = vld [vmem:[%s273 + $0x330] sm:$0xff]
        %v450 = vld [vmem:[%s273 + $0x338] sm:$0xff]
        %v451 = vld [vmem:[%s273 + $0x340] sm:$0xff]
        %v452 = vld [vmem:[%s273 + $0x348] sm:$0xff]
        %v453 = vld [vmem:[%s273 + $0x350] sm:$0xff]
        %v454 = vld [vmem:[%s273 + $0x358] sm:$0xff]
        %v455 = vld [vmem:[%s273 + $0x360] sm:$0xff]
        %v456 = vld [vmem:[%s273 + $0x368] sm:$0xff]
        %v457 = vld [vmem:[%s273 + $0x370] sm:$0xff]
        %v458 = vld [vmem:[%s273 + $0x378] sm:$0xff]
        %v459 = vld [vmem:[%s273 + $0x380] sm:$0xff]
        %v460 = vld [vmem:[%s273 + $0x388] sm:$0xff]
        %v461 = vld [vmem:[%s273 + $0x390] sm:$0xff]
        %v462 = vld [vmem:[%s273 + $0x398] sm:$0xff]
        %v463 = vld [vmem:[%s273 + $0x3a0] sm:$0xff]
        %v464 = vld [vmem:[%s273 + $0x3a8] sm:$0xff]
        %v465 = vld [vmem:[%s273 + $0x3b0] sm:$0xff]
        %v466 = vld [vmem:[%s273 + $0x3b8] sm:$0xff]
        %v467 = vld [vmem:[%s273 + $0x3c0] sm:$0xff]
        %v468 = vld [vmem:[%s273 + $0x3c8] sm:$0xff]
        %v469 = vld [vmem:[%s273 + $0x3d0] sm:$0xff]
        %v470 = vld [vmem:[%s273 + $0x3d8] sm:$0xff]
        %v471 = vld [vmem:[%s273 + $0x3e0] sm:$0xff]
        %v472 = vld [vmem:[%s273 + $0x3e8] sm:$0xff]
        %v473 = vld [vmem:[%s273 + $0x3f0] sm:$0xff]
        %v474 = vld [vmem:[%s273 + $0x3f8] sm:$0xff]
        %v475 = vld [vmem:[%s273 + $0x400] sm:$0xff]
        %v476 = vld [vmem:[%s273 + $0x408] sm:$0xff]
        %v477 = vld [vmem:[%s273 + $0x410] sm:$0xff]
        %v478 = vld [vmem:[%s273 + $0x418] sm:$0xff]
        %v479 = vld [vmem:[%s273 + $0x420] sm:$0xff]
        %v480 = vld [vmem:[%s273 + $0x428] sm:$0xff]
        %v481 = vld [vmem:[%s273 + $0x430] sm:$0xff]
        %v482 = vld [vmem:[%s273 + $0x438] sm:$0xff]
        %v483 = vld [vmem:[%s273 + $0x440] sm:$0xff]
        %v484 = vld [vmem:[%s273 + $0x448] sm:$0xff]
        %v485 = vld [vmem:[%s273 + $0x450] sm:$0xff]
        %v486 = vld [vmem:[%s273 + $0x458] sm:$0xff]
        %v487 = vld [vmem:[%s273 + $0x460] sm:$0xff]
        %v488 = vld [vmem:[%s273 + $0x468] sm:$0xff]
        %v489 = vld [vmem:[%s273 + $0x470] sm:$0xff]
        %v490 = vld [vmem:[%s273 + $0x478] sm:$0xff]
        %v491 = vld [vmem:[%s273 + $0x480] sm:$0xff]
        %v492 = vld [vmem:[%s273 + $0x488] sm:$0xff]
        %v493 = vld [vmem:[%s273 + $0x490] sm:$0xff]
        %v494 = vld [vmem:[%s273 + $0x498] sm:$0xff]
        %v495 = vld [vmem:[%s273 + $0x4a0] sm:$0xff]
        %v496 = vld [vmem:[%s273 + $0x4a8] sm:$0xff]
        %v497 = vld [vmem:[%s273 + $0x4b0] sm:$0xff]
        %v498 = vld [vmem:[%s273 + $0x4b8] sm:$0xff]
        %v499 = vld [vmem:[%s273 + $0x4c0] sm:$0xff]
        %v500 = vld [vmem:[%s273 + $0x4c8] sm:$0xff]
        %v501 = vld [vmem:[%s273 + $0x4d0] sm:$0xff]
        %v502 = vld [vmem:[%s273 + $0x4d8] sm:$0xff]
        %v503 = vld [vmem:[%s273 + $0x4e0] sm:$0xff]
        %v504 = vld [vmem:[%s273 + $0x4e8] sm:$0xff]
        %v505 = vld [vmem:[%s273 + $0x4f0] sm:$0xff]
        %v506 = vld [vmem:[%s273 + $0x4f8] sm:$0xff]
        %v507 = vld [vmem:[%s273 + $0x500] sm:$0xff]
        %v508 = vld [vmem:[%s273 + $0x508] sm:$0xff]
        %v509 = vld [vmem:[%s273 + $0x510] sm:$0xff]
        %v510 = vld [vmem:[%s273 + $0x518] sm:$0xff]
        %v511 = vld [vmem:[%s273 + $0x520] sm:$0xff]
        %v512 = vld [vmem:[%s273 + $0x528] sm:$0xff]
        %v513 = vld [vmem:[%s273 + $0x530] sm:$0xff]
        %v514 = vld [vmem:[%s273 + $0x538] sm:$0xff]
        %v515 = vld [vmem:[%s273 + $0x540] sm:$0xff]
        %v516 = vld [vmem:[%s273 + $0x548] sm:$0xff]
        %v517 = vld [vmem:[%s273 + $0x550] sm:$0xff]
        %v518 = vld [vmem:[%s273 + $0x558] sm:$0xff]
        %v519 = vld [vmem:[%s273 + $0x560] sm:$0xff]
        %v520 = vld [vmem:[%s273 + $0x568] sm:$0xff]
        %v521 = vld [vmem:[%s273 + $0x570] sm:$0xff]
        %v522 = vld [vmem:[%s273 + $0x578] sm:$0xff]
        %v523 = vld [vmem:[%s273 + $0x580] sm:$0xff]
        %v524 = vld [vmem:[%s273 + $0x588] sm:$0xff]
        %v525 = vld [vmem:[%s273 + $0x590] sm:$0xff]
        %v526 = vld [vmem:[%s273 + $0x598] sm:$0xff]
        %v527 = vld [vmem:[%s273 + $0x5a0] sm:$0xff]
        %v528 = vld [vmem:[%s273 + $0x5a8] sm:$0xff]
        %v529 = vld [vmem:[%s273 + $0x5b0] sm:$0xff]
        %v530 = vld [vmem:[%s273 + $0x5b8] sm:$0xff]
        %v531 = vld [vmem:[%s273 + $0x5c0] sm:$0xff]
        %v532 = vld [vmem:[%s273 + $0x5c8] sm:$0xff]
        %v533 = vld [vmem:[%s273 + $0x5d0] sm:$0xff]
        %v534 = vld [vmem:[%s273 + $0x5d8] sm:$0xff]
        %v535 = vld [vmem:[%s273 + $0x5e0] sm:$0xff]
        %v536 = vld [vmem:[%s273 + $0x5e8] sm:$0xff]
        %v537 = vld [vmem:[%s273 + $0x5f0] sm:$0xff]
        %v538 = vld [vmem:[%s273 + $0x5f8] sm:$0xff]
        %v539 = vld [vmem:[%s273 + $0x600] sm:$0xff]
        %v540 = vld [vmem:[%s273 + $0x608] sm:$0xff]
        %v541 = vld [vmem:[%s273 + $0x610] sm:$0xff]
        %v542 = vld [vmem:[%s273 + $0x618] sm:$0xff]
        %v543 = vld [vmem:[%s273 + $0x620] sm:$0xff]
        %v544 = vld [vmem:[%s273 + $0x628] sm:$0xff]
        %v545 = vld [vmem:[%s273 + $0x630] sm:$0xff]
        %v546 = vld [vmem:[%s273 + $0x638] sm:$0xff]
        %v547 = vld [vmem:[%s273 + $0x640] sm:$0xff]
        %v548 = vld [vmem:[%s273 + $0x648] sm:$0xff]
        %v549 = vld [vmem:[%s273 + $0x650] sm:$0xff]
        %v550 = vld [vmem:[%s273 + $0x658] sm:$0xff]
        %v551 = vld [vmem:[%s273 + $0x660] sm:$0xff]
        %v552 = vld [vmem:[%s273 + $0x668] sm:$0xff]
        %v553 = vld [vmem:[%s273 + $0x670] sm:$0xff]
        %v554 = vld [vmem:[%s273 + $0x678] sm:$0xff]
        %v555 = vld [vmem:[%s273 + $0x680] sm:$0xff]
        %v556 = vld [vmem:[%s273 + $0x688] sm:$0xff]
        %v557 = vld [vmem:[%s273 + $0x690] sm:$0xff]
        %v558 = vld [vmem:[%s273 + $0x698] sm:$0xff]
        %v559 = vld [vmem:[%s273 + $0x6a0] sm:$0xff]
        %v560 = vld [vmem:[%s273 + $0x6a8] sm:$0xff]
        %v561 = vld [vmem:[%s273 + $0x6b0] sm:$0xff]
        %v562 = vld [vmem:[%s273 + $0x6b8] sm:$0xff]
        %v563 = vld [vmem:[%s273 + $0x6c0] sm:$0xff]
        %v564 = vld [vmem:[%s273 + $0x6c8] sm:$0xff]
        %v565 = vld [vmem:[%s273 + $0x6d0] sm:$0xff]
        %v566 = vld [vmem:[%s273 + $0x6d8] sm:$0xff]
        %v567 = vld [vmem:[%s273 + $0x6e0] sm:$0xff]
        %v568 = vld [vmem:[%s273 + $0x6e8] sm:$0xff]
        %v569 = vld [vmem:[%s273 + $0x6f0] sm:$0xff]
        %v570 = vld [vmem:[%s273 + $0x6f8] sm:$0xff]
        %v571 = vld [vmem:[%s273 + $0x700] sm:$0xff]
        %v572 = vld [vmem:[%s273 + $0x708] sm:$0xff]
        %v573 = vld [vmem:[%s273 + $0x710] sm:$0xff]
        %v574 = vld [vmem:[%s273 + $0x718] sm:$0xff]
        %v575 = vld [vmem:[%s273 + $0x720] sm:$0xff]
        %v576 = vld [vmem:[%s273 + $0x728] sm:$0xff]
        %v577 = vld [vmem:[%s273 + $0x730] sm:$0xff]
        %v578 = vld [vmem:[%s273 + $0x738] sm:$0xff]
        %v579 = vld [vmem:[%s273 + $0x740] sm:$0xff]
        %v580 = vld [vmem:[%s273 + $0x748] sm:$0xff]
        %v581 = vld [vmem:[%s273 + $0x750] sm:$0xff]
        %v582 = vld [vmem:[%s273 + $0x758] sm:$0xff]
        %v583 = vld [vmem:[%s273 + $0x760] sm:$0xff]
        %v584 = vld [vmem:[%s273 + $0x768] sm:$0xff]
        %v585 = vld [vmem:[%s273 + $0x770] sm:$0xff]
        %v586 = vld [vmem:[%s273 + $0x778] sm:$0xff]
        %v587 = vld [vmem:[%s273 + $0x780] sm:$0xff]
        %v588 = vld [vmem:[%s273 + $0x788] sm:$0xff]
        %v589 = vld [vmem:[%s273 + $0x790] sm:$0xff]
        %v590 = vld [vmem:[%s273 + $0x798] sm:$0xff]
        %v591 = vld [vmem:[%s273 + $0x7a0] sm:$0xff]
        %v592 = vld [vmem:[%s273 + $0x7a8] sm:$0xff]
        %v593 = vld [vmem:[%s273 + $0x7b0] sm:$0xff]
        %v594 = vld [vmem:[%s273 + $0x7b8] sm:$0xff]
        %v595 = vld [vmem:[%s273 + $0x7c0] sm:$0xff]
        %v596 = vld [vmem:[%s273 + $0x7c8] sm:$0xff]
        %v597 = vld [vmem:[%s273 + $0x7d0] sm:$0xff]
        %v598 = vld [vmem:[%s273 + $0x7d8] sm:$0xff]
        %v599 = vld [vmem:[%s273 + $0x7e0] sm:$0xff]
        %v600 = vld [vmem:[%s273 + $0x7e8] sm:$0xff]
        %v601 = vld [vmem:[%s273 + $0x7f0] sm:$0xff]
        %v602 = vld [vmem:[%s273 + $0x7f8] sm:$0xff]
        %v603 = vld [vmem:[%s273 + $0x800] sm:$0xff]
        %v604 = vld [vmem:[%s273 + $0x808] sm:$0xff]
        %v605 = vld [vmem:[%s273 + $0x810] sm:$0xff]
        %v606 = vld [vmem:[%s273 + $0x818] sm:$0xff]
        %v607 = vld [vmem:[%s273 + $0x820] sm:$0xff]
        %v608 = vld [vmem:[%s273 + $0x828] sm:$0xff]
        %v609 = vld [vmem:[%s273 + $0x830] sm:$0xff]
        %v610 = vld [vmem:[%s273 + $0x838] sm:$0xff]
        %v611 = vld [vmem:[%s273 + $0x840] sm:$0xff]
        %v612 = vld [vmem:[%s273 + $0x848] sm:$0xff]
        %v613 = vld [vmem:[%s273 + $0x850] sm:$0xff]
        %v614 = vld [vmem:[%s273 + $0x858] sm:$0xff]
        %v615 = vld [vmem:[%s273 + $0x860] sm:$0xff]
        %v616 = vld [vmem:[%s273 + $0x868] sm:$0xff]
        %v617 = vld [vmem:[%s273 + $0x870] sm:$0xff]
        %v618 = vld [vmem:[%s273 + $0x878] sm:$0xff]
        %v619 = vld [vmem:[%s273 + $0x880] sm:$0xff]
        %v620 = vld [vmem:[%s273 + $0x888] sm:$0xff]
        %v621 = vld [vmem:[%s273 + $0x890] sm:$0xff]
        %v622 = vld [vmem:[%s273 + $0x898] sm:$0xff]
        %v623 = vld [vmem:[%s273 + $0x8a0] sm:$0xff]
        %v624 = vld [vmem:[%s273 + $0x8a8] sm:$0xff]
        %v625 = vld [vmem:[%s273 + $0x8b0] sm:$0xff]
        %v626 = vld [vmem:[%s273 + $0x8b8] sm:$0xff]
        %v627 = vld [vmem:[%s273 + $0x8c0] sm:$0xff]
        %v628 = vld [vmem:[%s273 + $0x8c8] sm:$0xff]
        %v629 = vld [vmem:[%s273 + $0x8d0] sm:$0xff]
        %v630 = vld [vmem:[%s273 + $0x8d8] sm:$0xff]
        %v631 = vld [vmem:[%s273 + $0x8e0] sm:$0xff]
        %v632 = vld [vmem:[%s273 + $0x8e8] sm:$0xff]
        %v633 = vld [vmem:[%s273 + $0x8f0] sm:$0xff]
        %v634 = vld [vmem:[%s273 + $0x8f8] sm:$0xff]
        %v635 = vld [vmem:[%s273 + $0x900] sm:$0xff]
        %v636 = vld [vmem:[%s273 + $0x908] sm:$0xff]
        %v637 = vld [vmem:[%s273 + $0x910] sm:$0xff]
        %v638 = vld [vmem:[%s273 + $0x918] sm:$0xff]
        %v639 = vld [vmem:[%s273 + $0x920] sm:$0xff]
        %v640 = vld [vmem:[%s273 + $0x928] sm:$0xff]
        %v641 = vld [vmem:[%s273 + $0x930] sm:$0xff]
        %v642 = vld [vmem:[%s273 + $0x938] sm:$0xff]
        %v643 = vld [vmem:[%s273 + $0x940] sm:$0xff]
        %v644 = vld [vmem:[%s273 + $0x948] sm:$0xff]
        %v645 = vld [vmem:[%s273 + $0x950] sm:$0xff]
        %v646 = vld [vmem:[%s273 + $0x958] sm:$0xff]
        %v647 = vld [vmem:[%s273 + $0x960] sm:$0xff]
        %v648 = vld [vmem:[%s273 + $0x968] sm:$0xff]
        %v649 = vld [vmem:[%s273 + $0x970] sm:$0xff]
        %v650 = vld [vmem:[%s273 + $0x978] sm:$0xff]
        %v651 = vld [vmem:[%s273 + $0x980] sm:$0xff]
        %v652 = vld [vmem:[%s273 + $0x988] sm:$0xff]
        %v653 = vld [vmem:[%s273 + $0x990] sm:$0xff]
        %v654 = vld [vmem:[%s273 + $0x998] sm:$0xff]
        %v655 = vld [vmem:[%s273 + $0x9a0] sm:$0xff]
        %v656 = vld [vmem:[%s273 + $0x9a8] sm:$0xff]
        %v657 = vld [vmem:[%s273 + $0x9b0] sm:$0xff]
        %v658 = vld [vmem:[%s273 + $0x9b8] sm:$0xff]
        %v659 = vld [vmem:[%s273 + $0x9c0] sm:$0xff]
        %v660 = vld [vmem:[%s273 + $0x9c8] sm:$0xff]
        %v661 = vld [vmem:[%s273 + $0x9d0] sm:$0xff]
        %v662 = vld [vmem:[%s273 + $0x9d8] sm:$0xff]
        %v663 = vld [vmem:[%s273 + $0x9e0] sm:$0xff]
        %v664 = vld [vmem:[%s273 + $0x9e8] sm:$0xff]
        %v665 = vld [vmem:[%s273 + $0x9f0] sm:$0xff]
        %v666 = vld [vmem:[%s273 + $0x9f8] sm:$0xff]
        %v667 = vld [vmem:[%s273 + $0xa00] sm:$0xff]
        %v668 = vld [vmem:[%s273 + $0xa08] sm:$0xff]
        %v669 = vld [vmem:[%s273 + $0xa10] sm:$0xff]
        %v670 = vld [vmem:[%s273 + $0xa18] sm:$0xff]
        %v671 = vld [vmem:[%s273 + $0xa20] sm:$0xff]
        %v672 = vld [vmem:[%s273 + $0xa28] sm:$0xff]
        %v673 = vld [vmem:[%s273 + $0xa30] sm:$0xff]
        %v674 = vld [vmem:[%s273 + $0xa38] sm:$0xff]
        %v675 = vld [vmem:[%s273 + $0xa40] sm:$0xff]
        %v676 = vld [vmem:[%s273 + $0xa48] sm:$0xff]
        %v677 = vld [vmem:[%s273 + $0xa50] sm:$0xff]
        %v678 = vld [vmem:[%s273 + $0xa58] sm:$0xff]
        %v679 = vld [vmem:[%s273 + $0xa60] sm:$0xff]
        %v680 = vld [vmem:[%s273 + $0xa68] sm:$0xff]
        %v681 = vld [vmem:[%s273 + $0xa70] sm:$0xff]
        %v682 = vld [vmem:[%s273 + $0xa78] sm:$0xff]
        %v683 = vld [vmem:[%s273 + $0xa80] sm:$0xff]
        %v684 = vld [vmem:[%s273 + $0xa88] sm:$0xff]
        %v685 = vld [vmem:[%s273 + $0xa90] sm:$0xff]
        %v686 = vld [vmem:[%s273 + $0xa98] sm:$0xff]
        %v687 = vld [vmem:[%s273 + $0xaa0] sm:$0xff]
        %v688 = vld [vmem:[%s273 + $0xaa8] sm:$0xff]
        %v689 = vld [vmem:[%s273 + $0xab0] sm:$0xff]
        %v690 = vld [vmem:[%s273 + $0xab8] sm:$0xff]
        %v691 = vld [vmem:[%s273 + $0xac0] sm:$0xff]
        %v692 = vld [vmem:[%s273 + $0xac8] sm:$0xff]
        %v693 = vld [vmem:[%s273 + $0xad0] sm:$0xff]
        %v694 = vld [vmem:[%s273 + $0xad8] sm:$0xff]
        %v695 = vld [vmem:[%s273 + $0xae0] sm:$0xff]
        %v696 = vld [vmem:[%s273 + $0xae8] sm:$0xff]
        %v697 = vld [vmem:[%s273 + $0xaf0] sm:$0xff]
        %v698 = vld [vmem:[%s273 + $0xaf8] sm:$0xff]
        %v699 = vld [vmem:[%s273 + $0xb00] sm:$0xff]
        %v700 = vld [vmem:[%s273 + $0xb08] sm:$0xff]
        %v701 = vld [vmem:[%s273 + $0xb10] sm:$0xff]
        %v702 = vld [vmem:[%s273 + $0xb18] sm:$0xff]
        %v703 = vld [vmem:[%s273 + $0xb20] sm:$0xff]
        %v704 = vld [vmem:[%s273 + $0xb28] sm:$0xff]
        %v705 = vld [vmem:[%s273 + $0xb30] sm:$0xff]
        %v706 = vld [vmem:[%s273 + $0xb38] sm:$0xff]
        %v707 = vld [vmem:[%s273 + $0xb40] sm:$0xff]
        %v708 = vld [vmem:[%s273 + $0xb48] sm:$0xff]
        %v709 = vld [vmem:[%s273 + $0xb50] sm:$0xff]
        %v710 = vld [vmem:[%s273 + $0xb58] sm:$0xff]
        %v711 = vld [vmem:[%s273 + $0xb60] sm:$0xff]
        %v712 = vld [vmem:[%s273 + $0xb68] sm:$0xff]
        %v713 = vld [vmem:[%s273 + $0xb70] sm:$0xff]
        %v714 = vld [vmem:[%s273 + $0xb78] sm:$0xff]
        %v715 = vld [vmem:[%s273 + $0xb80] sm:$0xff]
        %v716 = vld [vmem:[%s273 + $0xb88] sm:$0xff]
        %v717 = vld [vmem:[%s273 + $0xb90] sm:$0xff]
        %v718 = vld [vmem:[%s273 + $0xb98] sm:$0xff]
        %v719 = vld [vmem:[%s273 + $0xba0] sm:$0xff]
        %v720 = vld [vmem:[%s273 + $0xba8] sm:$0xff]
        %v721 = vld [vmem:[%s273 + $0xbb0] sm:$0xff]
        %v722 = vld [vmem:[%s273 + $0xbb8] sm:$0xff]
        %v723 = vld [vmem:[%s273 + $0xbc0] sm:$0xff]
        %v724 = vld [vmem:[%s273 + $0xbc8] sm:$0xff]
        %v725 = vld [vmem:[%s273 + $0xbd0] sm:$0xff]
        %v726 = vld [vmem:[%s273 + $0xbd8] sm:$0xff]
        %v727 = vld [vmem:[%s273 + $0xbe0] sm:$0xff]
        %v728 = vld [vmem:[%s273 + $0xbe8] sm:$0xff]
        %v729 = vld [vmem:[%s273 + $0xbf0] sm:$0xff]
        %v730 = vld [vmem:[%s273 + $0xbf8] sm:$0xff]
        %v731 = vld [vmem:[%s273 + $0xc00] sm:$0xff]
        %v732 = vld [vmem:[%s273 + $0xc08] sm:$0xff]
        %v733 = vld [vmem:[%s273 + $0xc10] sm:$0xff]
        %v734 = vld [vmem:[%s273 + $0xc18] sm:$0xff]
        %v735 = vld [vmem:[%s273 + $0xc20] sm:$0xff]
        %v736 = vld [vmem:[%s273 + $0xc28] sm:$0xff]
        %v737 = vld [vmem:[%s273 + $0xc30] sm:$0xff]
        %v738 = vld [vmem:[%s273 + $0xc38] sm:$0xff]
        %v739 = vld [vmem:[%s273 + $0xc40] sm:$0xff]
        %v740 = vld [vmem:[%s273 + $0xc48] sm:$0xff]
        %v741 = vld [vmem:[%s273 + $0xc50] sm:$0xff]
        %v742 = vld [vmem:[%s273 + $0xc58] sm:$0xff]
        %v743 = vld [vmem:[%s273 + $0xc60] sm:$0xff]
        %v744 = vld [vmem:[%s273 + $0xc68] sm:$0xff]
        %v745 = vld [vmem:[%s273 + $0xc70] sm:$0xff]
        %v746 = vld [vmem:[%s273 + $0xc78] sm:$0xff]
        %v747 = vld [vmem:[%s273 + $0xc80] sm:$0xff]
        %v748 = vld [vmem:[%s273 + $0xc88] sm:$0xff]
        %v749 = vld [vmem:[%s273 + $0xc90] sm:$0xff]
        %v750 = vld [vmem:[%s273 + $0xc98] sm:$0xff]
        %v751 = vld [vmem:[%s273 + $0xca0] sm:$0xff]
        %v752 = vld [vmem:[%s273 + $0xca8] sm:$0xff]
        %v753 = vld [vmem:[%s273 + $0xcb0] sm:$0xff]
        %v754 = vld [vmem:[%s273 + $0xcb8] sm:$0xff]
        %v755 = vld [vmem:[%s273 + $0xcc0] sm:$0xff]
        %v756 = vld [vmem:[%s273 + $0xcc8] sm:$0xff]
        %v757 = vld [vmem:[%s273 + $0xcd0] sm:$0xff]
        %v758 = vld [vmem:[%s273 + $0xcd8] sm:$0xff]
        %v759 = vld [vmem:[%s273 + $0xce0] sm:$0xff]
        %v760 = vld [vmem:[%s273 + $0xce8] sm:$0xff]
        %v761 = vld [vmem:[%s273 + $0xcf0] sm:$0xff]
        %v762 = vld [vmem:[%s273 + $0xcf8] sm:$0xff]
        %v763 = vld [vmem:[%s273 + $0xd00] sm:$0xff]
        %v764 = vld [vmem:[%s273 + $0xd08] sm:$0xff]
        %v765 = vld [vmem:[%s273 + $0xd10] sm:$0xff]
        %v766 = vld [vmem:[%s273 + $0xd18] sm:$0xff]
        %v767 = vld [vmem:[%s273 + $0xd20] sm:$0xff]
        %v768 = vld [vmem:[%s273 + $0xd28] sm:$0xff]
        %v769 = vld [vmem:[%s273 + $0xd30] sm:$0xff]
        %v770 = vld [vmem:[%s273 + $0xd38] sm:$0xff]
        %v771 = vld [vmem:[%s273 + $0xd40] sm:$0xff]
        %v772 = vld [vmem:[%s273 + $0xd48] sm:$0xff]
        %v773 = vld [vmem:[%s273 + $0xd50] sm:$0xff]
        %v774 = vld [vmem:[%s273 + $0xd58] sm:$0xff]
        %v775 = vld [vmem:[%s273 + $0xd60] sm:$0xff]
        %v776 = vld [vmem:[%s273 + $0xd68] sm:$0xff]
        %v777 = vld [vmem:[%s273 + $0xd70] sm:$0xff]
        %v778 = vld [vmem:[%s273 + $0xd78] sm:$0xff]
        %v779 = vld [vmem:[%s273 + $0xd80] sm:$0xff]
        %v780 = vld [vmem:[%s273 + $0xd88] sm:$0xff]
        %v781 = vld [vmem:[%s273 + $0xd90] sm:$0xff]
        %v782 = vld [vmem:[%s273 + $0xd98] sm:$0xff]
        %v783 = vld [vmem:[%s273 + $0xda0] sm:$0xff]
        %v784 = vld [vmem:[%s273 + $0xda8] sm:$0xff]
        %v785 = vld [vmem:[%s273 + $0xdb0] sm:$0xff]
        %v786 = vld [vmem:[%s273 + $0xdb8] sm:$0xff]
        %v787 = vld [vmem:[%s273 + $0xdc0] sm:$0xff]
        %v788 = vld [vmem:[%s273 + $0xdc8] sm:$0xff]
        %v789 = vld [vmem:[%s273 + $0xdd0] sm:$0xff]
        %v790 = vld [vmem:[%s273 + $0xdd8] sm:$0xff]
        %v791 = vld [vmem:[%s273 + $0xde0] sm:$0xff]
        %v792 = vld [vmem:[%s273 + $0xde8] sm:$0xff]
        %v793 = vld [vmem:[%s273 + $0xdf0] sm:$0xff]
        %v794 = vld [vmem:[%s273 + $0xdf8] sm:$0xff]
        %v795 = vld [vmem:[%s273 + $0xe00] sm:$0xff]
        %v796 = vld [vmem:[%s273 + $0xe08] sm:$0xff]
        %v797 = vld [vmem:[%s273 + $0xe10] sm:$0xff]
        %v798 = vld [vmem:[%s273 + $0xe18] sm:$0xff]
        %v799 = vld [vmem:[%s273 + $0xe20] sm:$0xff]
        %v800 = vld [vmem:[%s273 + $0xe28] sm:$0xff]
        %v801 = vld [vmem:[%s273 + $0xe30] sm:$0xff]
        %v802 = vld [vmem:[%s273 + $0xe38] sm:$0xff]
        %v803 = vld [vmem:[%s273 + $0xe40] sm:$0xff]
        %v804 = vld [vmem:[%s273 + $0xe48] sm:$0xff]
        %v805 = vld [vmem:[%s273 + $0xe50] sm:$0xff]
        %v806 = vld [vmem:[%s273 + $0xe58] sm:$0xff]
        %v807 = vld [vmem:[%s273 + $0xe60] sm:$0xff]
        %v808 = vld [vmem:[%s273 + $0xe68] sm:$0xff]
        %v809 = vld [vmem:[%s273 + $0xe70] sm:$0xff]
        %v810 = vld [vmem:[%s273 + $0xe78] sm:$0xff]
        %v811 = vld [vmem:[%s273 + $0xe80] sm:$0xff]
        %v812 = vld [vmem:[%s273 + $0xe88] sm:$0xff]
        %v813 = vld [vmem:[%s273 + $0xe90] sm:$0xff]
        %v814 = vld [vmem:[%s273 + $0xe98] sm:$0xff]
        %v815 = vld [vmem:[%s273 + $0xea0] sm:$0xff]
        %v816 = vld [vmem:[%s273 + $0xea8] sm:$0xff]
        %v817 = vld [vmem:[%s273 + $0xeb0] sm:$0xff]
        %v818 = vld [vmem:[%s273 + $0xeb8] sm:$0xff]
        %v819 = vld [vmem:[%s273 + $0xec0] sm:$0xff]
        %v820 = vld [vmem:[%s273 + $0xec8] sm:$0xff]
        %v821 = vld [vmem:[%s273 + $0xed0] sm:$0xff]
        %v822 = vld [vmem:[%s273 + $0xed8] sm:$0xff]
        %v823 = vld [vmem:[%s273 + $0xee0] sm:$0xff]
        %v824 = vld [vmem:[%s273 + $0xee8] sm:$0xff]
        %v825 = vld [vmem:[%s273 + $0xef0] sm:$0xff]
        %v826 = vld [vmem:[%s273 + $0xef8] sm:$0xff]
        %v827 = vld [vmem:[%s273 + $0xf00] sm:$0xff]
        %v828 = vld [vmem:[%s273 + $0xf08] sm:$0xff]
        %v829 = vld [vmem:[%s273 + $0xf10] sm:$0xff]
        %v830 = vld [vmem:[%s273 + $0xf18] sm:$0xff]
        %v831 = vld [vmem:[%s273 + $0xf20] sm:$0xff]
        %v832 = vld [vmem:[%s273 + $0xf28] sm:$0xff]
        %v833 = vld [vmem:[%s273 + $0xf30] sm:$0xff]
        %v834 = vld [vmem:[%s273 + $0xf38] sm:$0xff]
        %v835 = vld [vmem:[%s273 + $0xf40] sm:$0xff]
        %v836 = vld [vmem:[%s273 + $0xf48] sm:$0xff]
        %v837 = vld [vmem:[%s273 + $0xf50] sm:$0xff]
        %v838 = vld [vmem:[%s273 + $0xf58] sm:$0xff]
        %v839 = vld [vmem:[%s273 + $0xf60] sm:$0xff]
        %v840 = vld [vmem:[%s273 + $0xf68] sm:$0xff]
        %v841 = vld [vmem:[%s273 + $0xf70] sm:$0xff]
        %v842 = vld [vmem:[%s273 + $0xf78] sm:$0xff]
        %v843 = vld [vmem:[%s273 + $0xf80] sm:$0xff]
        %v844 = vld [vmem:[%s273 + $0xf88] sm:$0xff]
        %v845 = vld [vmem:[%s273 + $0xf90] sm:$0xff]
        %v846 = vld [vmem:[%s273 + $0xf98] sm:$0xff]
        %v847 = vld [vmem:[%s273 + $0xfa0] sm:$0xff]
        %v848 = vld [vmem:[%s273 + $0xfa8] sm:$0xff]
        %v849 = vld [vmem:[%s273 + $0xfb0] sm:$0xff]
        %v850 = vld [vmem:[%s273 + $0xfb8] sm:$0xff]
        %v851 = vld [vmem:[%s273 + $0xfc0] sm:$0xff]
        %v852 = vld [vmem:[%s273 + $0xfc8] sm:$0xff]
        %v853 = vld [vmem:[%s273 + $0xfd0] sm:$0xff]
        %v854 = vld [vmem:[%s273 + $0xfd8] sm:$0xff]
        %v855 = vld [vmem:[%s273 + $0xfe0] sm:$0xff]
        %v856 = vld [vmem:[%s273 + $0xfe8] sm:$0xff]
        %v857 = vld [vmem:[%s273 + $0xff0] sm:$0xff]
        %v858 = vld [vmem:[%s273 + $0xff8] sm:$0xff]
        %v859 = vld [vmem:[%s273 + $0x1000] sm:$0xff]
        %v860 = vld [vmem:[%s273 + $0x1008] sm:$0xff]
        %v861 = vld [vmem:[%s273 + $0x1010] sm:$0xff]
        %v862 = vld [vmem:[%s273 + $0x1018] sm:$0xff]
        %v863 = vld [vmem:[%s273 + $0x1020] sm:$0xff]
        %v864 = vld [vmem:[%s273 + $0x1028] sm:$0xff]
        %v865 = vld [vmem:[%s273 + $0x1030] sm:$0xff]
        %v866 = vld [vmem:[%s273 + $0x1038] sm:$0xff]
        %v867 = vld [vmem:[%s273 + $0x1040] sm:$0xff]
        %v868 = vld [vmem:[%s273 + $0x1048] sm:$0xff]
        %v869 = vld [vmem:[%s273 + $0x1050] sm:$0xff]
        %v870 = vld [vmem:[%s273 + $0x1058] sm:$0xff]
        %v871 = vld [vmem:[%s273 + $0x1060] sm:$0xff]
        %v872 = vld [vmem:[%s273 + $0x1068] sm:$0xff]
        %v873 = vld [vmem:[%s273 + $0x1070] sm:$0xff]
        %v874 = vld [vmem:[%s273 + $0x1078] sm:$0xff]
        %v875 = vld [vmem:[%s273 + $0x1080] sm:$0xff]
        %v876 = vld [vmem:[%s273 + $0x1088] sm:$0xff]
        %v877 = vld [vmem:[%s273 + $0x1090] sm:$0xff]
        %v878 = vld [vmem:[%s273 + $0x1098] sm:$0xff]
        %v879 = vld [vmem:[%s273 + $0x10a0] sm:$0xff]
        %v880 = vld [vmem:[%s273 + $0x10a8] sm:$0xff]
        %v881 = vld [vmem:[%s273 + $0x10b0] sm:$0xff]
        %v882 = vld [vmem:[%s273 + $0x10b8] sm:$0xff]
        %v883 = vld [vmem:[%s273 + $0x10c0] sm:$0xff]
        %v884 = vld [vmem:[%s273 + $0x10c8] sm:$0xff]
        %v885 = vld [vmem:[%s273 + $0x10d0] sm:$0xff]
        %v886 = vld [vmem:[%s273 + $0x10d8] sm:$0xff]
        %v887 = vld [vmem:[%s273 + $0x10e0] sm:$0xff]
        %v888 = vld [vmem:[%s273 + $0x10e8] sm:$0xff]
        %v889 = vld [vmem:[%s273 + $0x10f0] sm:$0xff]
        %v890 = vld [vmem:[%s273 + $0x10f8] sm:$0xff]
        %v891 = vld [vmem:[%s273 + $0x1100] sm:$0xff]
        %v892 = vld [vmem:[%s273 + $0x1108] sm:$0xff]
        %v893 = vld [vmem:[%s273 + $0x1110] sm:$0xff]
        %v894 = vld [vmem:[%s273 + $0x1118] sm:$0xff]
        %v895 = vld [vmem:[%s273 + $0x1120] sm:$0xff]
        %v896 = vld [vmem:[%s273 + $0x1128] sm:$0xff]
        %v897 = vld [vmem:[%s273 + $0x1130] sm:$0xff]
        %v898 = vld [vmem:[%s273 + $0x1138] sm:$0xff]
        %v899 = vld [vmem:[%s273 + $0x1140] sm:$0xff]
        %v900 = vld [vmem:[%s273 + $0x1148] sm:$0xff]
        %v901 = vld [vmem:[%s273 + $0x1150] sm:$0xff]
        %v902 = vld [vmem:[%s273 + $0x1158] sm:$0xff]
        %v903 = vld [vmem:[%s273 + $0x1160] sm:$0xff]
        %v904 = vld [vmem:[%s273 + $0x1168] sm:$0xff]
        %v905 = vld [vmem:[%s273 + $0x1170] sm:$0xff]
        %v906 = vld [vmem:[%s273 + $0x1178] sm:$0xff]
        %v907 = vld [vmem:[%s273 + $0x1180] sm:$0xff]
        %v908 = vld [vmem:[%s273 + $0x1188] sm:$0xff]
        %v909 = vld [vmem:[%s273 + $0x1190] sm:$0xff]
        %v910 = vld [vmem:[%s273 + $0x1198] sm:$0xff]
        %v911 = vld [vmem:[%s273 + $0x11a0] sm:$0xff]
        %v912 = vld [vmem:[%s273 + $0x11a8] sm:$0xff]
        %v913 = vld [vmem:[%s273 + $0x11b0] sm:$0xff]
        %v914 = vld [vmem:[%s273 + $0x11b8] sm:$0xff]
        %v915 = vld [vmem:[%s273 + $0x11c0] sm:$0xff]
        %v916 = vld [vmem:[%s273 + $0x11c8] sm:$0xff]
        %v917 = vld [vmem:[%s273 + $0x11d0] sm:$0xff]
        %v918 = vld [vmem:[%s273 + $0x11d8] sm:$0xff]
        %v919 = vld [vmem:[%s273 + $0x11e0] sm:$0xff]
        %v920 = vld [vmem:[%s273 + $0x11e8] sm:$0xff]
        %v921 = vld [vmem:[%s273 + $0x11f0] sm:$0xff]
        %v922 = vld [vmem:[%s273 + $0x11f8] sm:$0xff]
        %v923 = vld [vmem:[%s273 + $0x1200] sm:$0xff]
        %v924 = vld [vmem:[%s273 + $0x1208] sm:$0xff]
        %v925 = vld [vmem:[%s273 + $0x1210] sm:$0xff]
        %v926 = vld [vmem:[%s273 + $0x1218] sm:$0xff]
        %v927 = vld [vmem:[%s273 + $0x1220] sm:$0xff]
        %v928 = vld [vmem:[%s273 + $0x1228] sm:$0xff]
        %v929 = vld [vmem:[%s273 + $0x1230] sm:$0xff]
        %v930 = vld [vmem:[%s273 + $0x1238] sm:$0xff]
        %v931 = vld [vmem:[%s273 + $0x1240] sm:$0xff]
        %v932 = vld [vmem:[%s273 + $0x1248] sm:$0xff]
        %v933 = vld [vmem:[%s273 + $0x1250] sm:$0xff]
        %v934 = vld [vmem:[%s273 + $0x1258] sm:$0xff]
        %v935 = vld [vmem:[%s273 + $0x1260] sm:$0xff]
        %v936 = vld [vmem:[%s273 + $0x1268] sm:$0xff]
        %v937 = vld [vmem:[%s273 + $0x1270] sm:$0xff]
        %v938 = vld [vmem:[%s273 + $0x1278] sm:$0xff]
        %v939 = vld [vmem:[%s273 + $0x1280] sm:$0xff]
        %v940 = vld [vmem:[%s273 + $0x1288] sm:$0xff]
        %v941 = vld [vmem:[%s273 + $0x1290] sm:$0xff]
        %v942 = vld [vmem:[%s273 + $0x1298] sm:$0xff]
        %v943 = vld [vmem:[%s273 + $0x12a0] sm:$0xff]
        %v944 = vld [vmem:[%s273 + $0x12a8] sm:$0xff]
        %v945 = vld [vmem:[%s273 + $0x12b0] sm:$0xff]
        %v946 = vld [vmem:[%s273 + $0x12b8] sm:$0xff]
        %v947 = vld [vmem:[%s273 + $0x12c0] sm:$0xff]
        %v948 = vld [vmem:[%s273 + $0x12c8] sm:$0xff]
        %v949 = vld [vmem:[%s273 + $0x12d0] sm:$0xff]
        %v950 = vld [vmem:[%s273 + $0x12d8] sm:$0xff]
        %v951 = vld [vmem:[%s273 + $0x12e0] sm:$0xff]
        %v952 = vld [vmem:[%s273 + $0x12e8] sm:$0xff]
        %v953 = vld [vmem:[%s273 + $0x12f0] sm:$0xff]
        %v954 = vld [vmem:[%s273 + $0x12f8] sm:$0xff]
        %v955 = vld [vmem:[%s273 + $0x1300] sm:$0xff]
        %v956 = vld [vmem:[%s273 + $0x1308] sm:$0xff]
        %v957 = vld [vmem:[%s273 + $0x1310] sm:$0xff]
        %v958 = vld [vmem:[%s273 + $0x1318] sm:$0xff]
        %v959 = vld [vmem:[%s273 + $0x1320] sm:$0xff]
        %v960 = vld [vmem:[%s273 + $0x1328] sm:$0xff]
        %v961 = vld [vmem:[%s273 + $0x1330] sm:$0xff]
        %v962 = vld [vmem:[%s273 + $0x1338] sm:$0xff]
        %v963 = vld [vmem:[%s273 + $0x1340] sm:$0xff]
        %v964 = vld [vmem:[%s273 + $0x1348] sm:$0xff]
        %v965 = vld [vmem:[%s273 + $0x1350] sm:$0xff]
        %v966 = vld [vmem:[%s273 + $0x1358] sm:$0xff]
        %v967 = vld [vmem:[%s273 + $0x1360] sm:$0xff]
        %v968 = vld [vmem:[%s273 + $0x1368] sm:$0xff]
        %v969 = vld [vmem:[%s273 + $0x1370] sm:$0xff]
        %v970 = vld [vmem:[%s273 + $0x1378] sm:$0xff]
        %v971 = vld [vmem:[%s273 + $0x1380] sm:$0xff]
        %v972 = vld [vmem:[%s273 + $0x1388] sm:$0xff]
        %v973 = vld [vmem:[%s273 + $0x1390] sm:$0xff]
        %v974 = vld [vmem:[%s273 + $0x1398] sm:$0xff]
        %v975 = vld [vmem:[%s273 + $0x13a0] sm:$0xff]
        %v976 = vld [vmem:[%s273 + $0x13a8] sm:$0xff]
        %v977 = vld [vmem:[%s273 + $0x13b0] sm:$0xff]
        %v978 = vld [vmem:[%s273 + $0x13b8] sm:$0xff]
        %v979 = vld [vmem:[%s273 + $0x13c0] sm:$0xff]
        %v980 = vld [vmem:[%s273 + $0x13c8] sm:$0xff]
        %v981 = vld [vmem:[%s273 + $0x13d0] sm:$0xff]
        %v982 = vld [vmem:[%s273 + $0x13d8] sm:$0xff]
        %v983 = vld [vmem:[%s273 + $0x13e0] sm:$0xff]
        %v984 = vld [vmem:[%s273 + $0x13e8] sm:$0xff]
        %v985 = vld [vmem:[%s273 + $0x13f0] sm:$0xff]
        %v986 = vld [vmem:[%s273 + $0x13f8] sm:$0xff]
        %v987 = vld [vmem:[%s273 + $0x1400] sm:$0xff]
        %v988 = vld [vmem:[%s273 + $0x1408] sm:$0xff]
        %v989 = vld [vmem:[%s273 + $0x1410] sm:$0xff]
        %v990 = vld [vmem:[%s273 + $0x1418] sm:$0xff]
        %v991 = vld [vmem:[%s273 + $0x1420] sm:$0xff]
        %v992 = vld [vmem:[%s273 + $0x1428] sm:$0xff]
        %v993 = vld [vmem:[%s273 + $0x1430] sm:$0xff]
        %v994 = vld [vmem:[%s273 + $0x1438] sm:$0xff]
        %v995 = vld [vmem:[%s273 + $0x1440] sm:$0xff]
        %v996 = vld [vmem:[%s273 + $0x1448] sm:$0xff]
        %v997 = vld [vmem:[%s273 + $0x1450] sm:$0xff]
        %v998 = vld [vmem:[%s273 + $0x1458] sm:$0xff]
        %v999 = vld [vmem:[%s273 + $0x1460] sm:$0xff]
        %v1000 = vld [vmem:[%s273 + $0x1468] sm:$0xff]
        %v1001 = vld [vmem:[%s273 + $0x1470] sm:$0xff]
        %v1002 = vld [vmem:[%s273 + $0x1478] sm:$0xff]
        %v1003 = vld [vmem:[%s273 + $0x1480] sm:$0xff]
        %v1004 = vld [vmem:[%s273 + $0x1488] sm:$0xff]
        %v1005 = vld [vmem:[%s273 + $0x1490] sm:$0xff]
        %v1006 = vld [vmem:[%s273 + $0x1498] sm:$0xff]
        %v1007 = vld [vmem:[%s273 + $0x14a0] sm:$0xff]
        %v1008 = vld [vmem:[%s273 + $0x14a8] sm:$0xff]
        %v1009 = vld [vmem:[%s273 + $0x14b0] sm:$0xff]
        %v1010 = vld [vmem:[%s273 + $0x14b8] sm:$0xff]
        %v1011 = vld [vmem:[%s273 + $0x14c0] sm:$0xff]
        %v1012 = vld [vmem:[%s273 + $0x14c8] sm:$0xff]
        %v1013 = vld [vmem:[%s273 + $0x14d0] sm:$0xff]
        %v1014 = vld [vmem:[%s273 + $0x14d8] sm:$0xff]
        %v1015 = vld [vmem:[%s273 + $0x14e0] sm:$0xff]
        %v1016 = vld [vmem:[%s273 + $0x14e8] sm:$0xff]
        %v1017 = vld [vmem:[%s273 + $0x14f0] sm:$0xff]
        %v1018 = vld [vmem:[%s273 + $0x14f8] sm:$0xff]
        %v1019 = vld [vmem:[%s273 + $0x1500] sm:$0xff]
        %v1020 = vld [vmem:[%s273 + $0x1508] sm:$0xff]
        %v1021 = vld [vmem:[%s273 + $0x1510] sm:$0xff]
        %v1022 = vld [vmem:[%s273 + $0x1518] sm:$0xff]
        %v1023 = vld [vmem:[%s273 + $0x1520] sm:$0xff]
        %v1024 = vld [vmem:[%s273 + $0x1528] sm:$0xff]
        %v1025 = vld [vmem:[%s273 + $0x1530] sm:$0xff]
        %v1026 = vld [vmem:[%s273 + $0x1538] sm:$0xff]
        %v1027 = vld [vmem:[%s273 + $0x1540] sm:$0xff]
        %v1028 = vld [vmem:[%s273 + $0x1548] sm:$0xff]
        %v1029 = vld [vmem:[%s273 + $0x1550] sm:$0xff]
        %v1030 = vld [vmem:[%s273 + $0x1558] sm:$0xff]
        %v1031 = vld [vmem:[%s273 + $0x1560] sm:$0xff]
        %v1032 = vld [vmem:[%s273 + $0x1568] sm:$0xff]
        %v1033 = vld [vmem:[%s273 + $0x1570] sm:$0xff]
        %v1034 = vld [vmem:[%s273 + $0x1578] sm:$0xff]
        %v1035 = vld [vmem:[%s273 + $0x1580] sm:$0xff]
        %v1036 = vld [vmem:[%s273 + $0x1588] sm:$0xff]
        %v1037 = vld [vmem:[%s273 + $0x1590] sm:$0xff]
        %v1038 = vld [vmem:[%s273 + $0x1598] sm:$0xff]
        %v1039 = vld [vmem:[%s273 + $0x15a0] sm:$0xff]
        %v1040 = vld [vmem:[%s273 + $0x15a8] sm:$0xff]
        %v1041 = vld [vmem:[%s273 + $0x15b0] sm:$0xff]
        %v1042 = vld [vmem:[%s273 + $0x15b8] sm:$0xff]
        %v1043 = vld [vmem:[%s273 + $0x15c0] sm:$0xff]
        %v1044 = vld [vmem:[%s273 + $0x15c8] sm:$0xff]
        %v1045 = vld [vmem:[%s273 + $0x15d0] sm:$0xff]
        %v1046 = vld [vmem:[%s273 + $0x15d8] sm:$0xff]
        %v1047 = vld [vmem:[%s273 + $0x15e0] sm:$0xff]
        %v1048 = vld [vmem:[%s273 + $0x15e8] sm:$0xff]
        %v1049 = vld [vmem:[%s273 + $0x15f0] sm:$0xff]
        %v1050 = vld [vmem:[%s273 + $0x15f8] sm:$0xff]
        %v1051 = vld [vmem:[%s273 + $0x1600] sm:$0xff]
        %v1052 = vld [vmem:[%s273 + $0x1608] sm:$0xff]
        %v1053 = vld [vmem:[%s273 + $0x1610] sm:$0xff]
        %v1054 = vld [vmem:[%s273 + $0x1618] sm:$0xff]
        %v1055 = vld [vmem:[%s273 + $0x1620] sm:$0xff]
        %v1056 = vld [vmem:[%s273 + $0x1628] sm:$0xff]
        %v1057 = vld [vmem:[%s273 + $0x1630] sm:$0xff]
        %v1058 = vld [vmem:[%s273 + $0x1638] sm:$0xff]
        %v1059 = vld [vmem:[%s273 + $0x1640] sm:$0xff]
        %v1060 = vld [vmem:[%s273 + $0x1648] sm:$0xff]
        %v1061 = vld [vmem:[%s273 + $0x1650] sm:$0xff]
        %v1062 = vld [vmem:[%s273 + $0x1658] sm:$0xff]
        %v1063 = vld [vmem:[%s273 + $0x1660] sm:$0xff]
        %v1064 = vld [vmem:[%s273 + $0x1668] sm:$0xff]
        %v1065 = vld [vmem:[%s273 + $0x1670] sm:$0xff]
        %v1066 = vld [vmem:[%s273 + $0x1678] sm:$0xff]
        %v1067 = vld [vmem:[%s273 + $0x1680] sm:$0xff]
        %v1068 = vld [vmem:[%s273 + $0x1688] sm:$0xff]
        %v1069 = vld [vmem:[%s273 + $0x1690] sm:$0xff]
        %v1070 = vld [vmem:[%s273 + $0x1698] sm:$0xff]
        %v1071 = vld [vmem:[%s273 + $0x16a0] sm:$0xff]
        %v1072 = vld [vmem:[%s273 + $0x16a8] sm:$0xff]
        %v1073 = vld [vmem:[%s273 + $0x16b0] sm:$0xff]
        %v1074 = vld [vmem:[%s273 + $0x16b8] sm:$0xff]
        %v1075 = vld [vmem:[%s273 + $0x16c0] sm:$0xff]
        %v1076 = vld [vmem:[%s273 + $0x16c8] sm:$0xff]
        %v1077 = vld [vmem:[%s273 + $0x16d0] sm:$0xff]
        %v1078 = vld [vmem:[%s273 + $0x16d8] sm:$0xff]
        %v1079 = vld [vmem:[%s273 + $0x16e0] sm:$0xff]
        %v1080 = vld [vmem:[%s273 + $0x16e8] sm:$0xff]
        %v1081 = vld [vmem:[%s273 + $0x16f0] sm:$0xff]
        %v1082 = vld [vmem:[%s273 + $0x16f8] sm:$0xff]
        %v1083 = vld [vmem:[%s273 + $0x1700] sm:$0xff]
        %v1084 = vld [vmem:[%s273 + $0x1708] sm:$0xff]
        %v1085 = vld [vmem:[%s273 + $0x1710] sm:$0xff]
        %v1086 = vld [vmem:[%s273 + $0x1718] sm:$0xff]
        %v1087 = vld [vmem:[%s273 + $0x1720] sm:$0xff]
        %v1088 = vld [vmem:[%s273 + $0x1728] sm:$0xff]
        %v1089 = vld [vmem:[%s273 + $0x1730] sm:$0xff]
        %v1090 = vld [vmem:[%s273 + $0x1738] sm:$0xff]
        %v1091 = vld [vmem:[%s273 + $0x1740] sm:$0xff]
        %v1092 = vld [vmem:[%s273 + $0x1748] sm:$0xff]
        %v1093 = vld [vmem:[%s273 + $0x1750] sm:$0xff]
        %v1094 = vld [vmem:[%s273 + $0x1758] sm:$0xff]
        %v1095 = vld [vmem:[%s273 + $0x1760] sm:$0xff]
        %v1096 = vld [vmem:[%s273 + $0x1768] sm:$0xff]
        %v1097 = vld [vmem:[%s273 + $0x1770] sm:$0xff]
        %v1098 = vld [vmem:[%s273 + $0x1778] sm:$0xff]
        %v1099 = vld [vmem:[%s273 + $0x1780] sm:$0xff]
        %v1100 = vld [vmem:[%s273 + $0x1788] sm:$0xff]
        %v1101 = vld [vmem:[%s273 + $0x1790] sm:$0xff]
        %v1102 = vld [vmem:[%s273 + $0x1798] sm:$0xff]
        %v1103 = vld [vmem:[%s273 + $0x17a0] sm:$0xff]
        %v1104 = vld [vmem:[%s273 + $0x17a8] sm:$0xff]
        %v1105 = vld [vmem:[%s273 + $0x17b0] sm:$0xff]
        %v1106 = vld [vmem:[%s273 + $0x17b8] sm:$0xff]
        %v1107 = vld [vmem:[%s273 + $0x17c0] sm:$0xff]
        %v1108 = vld [vmem:[%s273 + $0x17c8] sm:$0xff]
        %v1109 = vld [vmem:[%s273 + $0x17d0] sm:$0xff]
        %v1110 = vld [vmem:[%s273 + $0x17d8] sm:$0xff]
        %v1111 = vld [vmem:[%s273 + $0x17e0] sm:$0xff]
        %v1112 = vld [vmem:[%s273 + $0x17e8] sm:$0xff]
        %v1113 = vld [vmem:[%s273 + $0x17f0] sm:$0xff]
        %v1114 = vld [vmem:[%s273 + $0x17f8] sm:$0xff]
        %v1115 = vld [vmem:[%s273 + $0x1800] sm:$0xff]
        %v1116 = vld [vmem:[%s273 + $0x1808] sm:$0xff]
        %v1117 = vld [vmem:[%s273 + $0x1810] sm:$0xff]
        %v1118 = vld [vmem:[%s273 + $0x1818] sm:$0xff]
        %v1119 = vld [vmem:[%s273 + $0x1820] sm:$0xff]
        %v1120 = vld [vmem:[%s273 + $0x1828] sm:$0xff]
        %v1121 = vld [vmem:[%s273 + $0x1830] sm:$0xff]
        %v1122 = vld [vmem:[%s273 + $0x1838] sm:$0xff]
        %v1123 = vld [vmem:[%s273 + $0x1840] sm:$0xff]
        %v1124 = vld [vmem:[%s273 + $0x1848] sm:$0xff]
        %v1125 = vld [vmem:[%s273 + $0x1850] sm:$0xff]
        %v1126 = vld [vmem:[%s273 + $0x1858] sm:$0xff]
        %v1127 = vld [vmem:[%s273 + $0x1860] sm:$0xff]
        %v1128 = vld [vmem:[%s273 + $0x1868] sm:$0xff]
        %v1129 = vld [vmem:[%s273 + $0x1870] sm:$0xff]
        %v1130 = vld [vmem:[%s273 + $0x1878] sm:$0xff]
        %v1131 = vld [vmem:[%s273 + $0x1880] sm:$0xff]
        %v1132 = vld [vmem:[%s273 + $0x1888] sm:$0xff]
        %v1133 = vld [vmem:[%s273 + $0x1890] sm:$0xff]
        %v1134 = vld [vmem:[%s273 + $0x1898] sm:$0xff]
        %v1135 = vld [vmem:[%s273 + $0x18a0] sm:$0xff]
        %v1136 = vld [vmem:[%s273 + $0x18a8] sm:$0xff]
        %v1137 = vld [vmem:[%s273 + $0x18b0] sm:$0xff]
        %v1138 = vld [vmem:[%s273 + $0x18b8] sm:$0xff]
        %v1139 = vld [vmem:[%s273 + $0x18c0] sm:$0xff]
        %v1140 = vld [vmem:[%s273 + $0x18c8] sm:$0xff]
        %v1141 = vld [vmem:[%s273 + $0x18d0] sm:$0xff]
        %v1142 = vld [vmem:[%s273 + $0x18d8] sm:$0xff]
        %v1143 = vld [vmem:[%s273 + $0x18e0] sm:$0xff]
        %v1144 = vld [vmem:[%s273 + $0x18e8] sm:$0xff]
        %v1145 = vld [vmem:[%s273 + $0x18f0] sm:$0xff]
        %v1146 = vld [vmem:[%s273 + $0x18f8] sm:$0xff]
        %v1147 = vld [vmem:[%s273 + $0x1900] sm:$0xff]
        %v1148 = vld [vmem:[%s273 + $0x1908] sm:$0xff]
        %v1149 = vld [vmem:[%s273 + $0x1910] sm:$0xff]
        %v1150 = vld [vmem:[%s273 + $0x1918] sm:$0xff]
        %v1151 = vld [vmem:[%s273 + $0x1920] sm:$0xff]
        %v1152 = vld [vmem:[%s273 + $0x1928] sm:$0xff]
        %v1153 = vld [vmem:[%s273 + $0x1930] sm:$0xff]
        %v1154 = vld [vmem:[%s273 + $0x1938] sm:$0xff]
        %v1155 = vld [vmem:[%s273 + $0x1940] sm:$0xff]
        %v1156 = vld [vmem:[%s273 + $0x1948] sm:$0xff]
        %v1157 = vld [vmem:[%s273 + $0x1950] sm:$0xff]
        %v1158 = vld [vmem:[%s273 + $0x1958] sm:$0xff]
        %v1159 = vld [vmem:[%s273 + $0x1960] sm:$0xff]
        %v1160 = vld [vmem:[%s273 + $0x1968] sm:$0xff]
        %v1161 = vld [vmem:[%s273 + $0x1970] sm:$0xff]
        %v1162 = vld [vmem:[%s273 + $0x1978] sm:$0xff]
        %v1163 = vld [vmem:[%s273 + $0x1980] sm:$0xff]
        %v1164 = vld [vmem:[%s273 + $0x1988] sm:$0xff]
        %v1165 = vld [vmem:[%s273 + $0x1990] sm:$0xff]
        %v1166 = vld [vmem:[%s273 + $0x1998] sm:$0xff]
        %v1167 = vld [vmem:[%s273 + $0x19a0] sm:$0xff]
        %v1168 = vld [vmem:[%s273 + $0x19a8] sm:$0xff]
        %v1169 = vld [vmem:[%s273 + $0x19b0] sm:$0xff]
        %v1170 = vld [vmem:[%s273 + $0x19b8] sm:$0xff]
        %v1171 = vld [vmem:[%s273 + $0x19c0] sm:$0xff]
        %v1172 = vld [vmem:[%s273 + $0x19c8] sm:$0xff]
        %v1173 = vld [vmem:[%s273 + $0x19d0] sm:$0xff]
        %v1174 = vld [vmem:[%s273 + $0x19d8] sm:$0xff]
        %v1175 = vld [vmem:[%s273 + $0x19e0] sm:$0xff]
        %v1176 = vld [vmem:[%s273 + $0x19e8] sm:$0xff]
        %v1177 = vld [vmem:[%s273 + $0x19f0] sm:$0xff]
        %v1178 = vld [vmem:[%s273 + $0x19f8] sm:$0xff]
        %v1179 = vld [vmem:[%s273 + $0x1a00] sm:$0xff]
        %v1180 = vld [vmem:[%s273 + $0x1a08] sm:$0xff]
        %v1181 = vld [vmem:[%s273 + $0x1a10] sm:$0xff]
        %v1182 = vld [vmem:[%s273 + $0x1a18] sm:$0xff]
        %v1183 = vld [vmem:[%s273 + $0x1a20] sm:$0xff]
        %v1184 = vld [vmem:[%s273 + $0x1a28] sm:$0xff]
        %v1185 = vld [vmem:[%s273 + $0x1a30] sm:$0xff]
        %v1186 = vld [vmem:[%s273 + $0x1a38] sm:$0xff]
        %v1187 = vld [vmem:[%s273 + $0x1a40] sm:$0xff]
        %v1188 = vld [vmem:[%s273 + $0x1a48] sm:$0xff]
        %v1189 = vld [vmem:[%s273 + $0x1a50] sm:$0xff]
        %v1190 = vld [vmem:[%s273 + $0x1a58] sm:$0xff]
        %v1191 = vld [vmem:[%s273 + $0x1a60] sm:$0xff]
        %v1192 = vld [vmem:[%s273 + $0x1a68] sm:$0xff]
        %v1193 = vld [vmem:[%s273 + $0x1a70] sm:$0xff]
        %v1194 = vld [vmem:[%s273 + $0x1a78] sm:$0xff]
        %v1195 = vld [vmem:[%s273 + $0x1a80] sm:$0xff]
        %v1196 = vld [vmem:[%s273 + $0x1a88] sm:$0xff]
        %v1197 = vld [vmem:[%s273 + $0x1a90] sm:$0xff]
        %v1198 = vld [vmem:[%s273 + $0x1a98] sm:$0xff]
        %v1199 = vld [vmem:[%s273 + $0x1aa0] sm:$0xff]
        %v1200 = vld [vmem:[%s273 + $0x1aa8] sm:$0xff]
        %v1201 = vld [vmem:[%s273 + $0x1ab0] sm:$0xff]
        %v1202 = vld [vmem:[%s273 + $0x1ab8] sm:$0xff]
        %v1203 = vld [vmem:[%s273 + $0x1ac0] sm:$0xff]
        %v1204 = vld [vmem:[%s273 + $0x1ac8] sm:$0xff]
        %v1205 = vld [vmem:[%s273 + $0x1ad0] sm:$0xff]
        %v1206 = vld [vmem:[%s273 + $0x1ad8] sm:$0xff]
        %v1207 = vld [vmem:[%s273 + $0x1ae0] sm:$0xff]
        %v1208 = vld [vmem:[%s273 + $0x1ae8] sm:$0xff]
        %v1209 = vld [vmem:[%s273 + $0x1af0] sm:$0xff]
        %v1210 = vld [vmem:[%s273 + $0x1af8] sm:$0xff]
        %v1211 = vld [vmem:[%s273 + $0x1b00] sm:$0xff]
        %v1212 = vld [vmem:[%s273 + $0x1b08] sm:$0xff]
        %v1213 = vld [vmem:[%s273 + $0x1b10] sm:$0xff]
        %v1214 = vld [vmem:[%s273 + $0x1b18] sm:$0xff]
        %v1215 = vld [vmem:[%s273 + $0x1b20] sm:$0xff]
        %v1216 = vld [vmem:[%s273 + $0x1b28] sm:$0xff]
        %v1217 = vld [vmem:[%s273 + $0x1b30] sm:$0xff]
        %v1218 = vld [vmem:[%s273 + $0x1b38] sm:$0xff]
        %v1219 = vld [vmem:[%s273 + $0x1b40] sm:$0xff]
        %v1220 = vld [vmem:[%s273 + $0x1b48] sm:$0xff]
        %v1221 = vld [vmem:[%s273 + $0x1b50] sm:$0xff]
        %v1222 = vld [vmem:[%s273 + $0x1b58] sm:$0xff]
        %v1223 = vld [vmem:[%s273 + $0x1b60] sm:$0xff]
        %v1224 = vld [vmem:[%s273 + $0x1b68] sm:$0xff]
        %v1225 = vld [vmem:[%s273 + $0x1b70] sm:$0xff]
        %v1226 = vld [vmem:[%s273 + $0x1b78] sm:$0xff]
        %v1227 = vld [vmem:[%s273 + $0x1b80] sm:$0xff]
        %v1228 = vld [vmem:[%s273 + $0x1b88] sm:$0xff]
        %v1229 = vld [vmem:[%s273 + $0x1b90] sm:$0xff]
        %v1230 = vld [vmem:[%s273 + $0x1b98] sm:$0xff]
        %v1231 = vld [vmem:[%s273 + $0x1ba0] sm:$0xff]
        %v1232 = vld [vmem:[%s273 + $0x1ba8] sm:$0xff]
        %v1233 = vld [vmem:[%s273 + $0x1bb0] sm:$0xff]
        %v1234 = vld [vmem:[%s273 + $0x1bb8] sm:$0xff]
        %v1235 = vld [vmem:[%s273 + $0x1bc0] sm:$0xff]
        %v1236 = vld [vmem:[%s273 + $0x1bc8] sm:$0xff]
        %v1237 = vld [vmem:[%s273 + $0x1bd0] sm:$0xff]
        %v1238 = vld [vmem:[%s273 + $0x1bd8] sm:$0xff]
        %v1239 = vld [vmem:[%s273 + $0x1be0] sm:$0xff]
        %v1240 = vld [vmem:[%s273 + $0x1be8] sm:$0xff]
        %v1241 = vld [vmem:[%s273 + $0x1bf0] sm:$0xff]
        %v1242 = vld [vmem:[%s273 + $0x1bf8] sm:$0xff]
        %v1243 = vld [vmem:[%s273 + $0x1c00] sm:$0xff]
        %v1244 = vld [vmem:[%s273 + $0x1c08] sm:$0xff]
        %v1245 = vld [vmem:[%s273 + $0x1c10] sm:$0xff]
        %v1246 = vld [vmem:[%s273 + $0x1c18] sm:$0xff]
        %v1247 = vld [vmem:[%s273 + $0x1c20] sm:$0xff]
        %v1248 = vld [vmem:[%s273 + $0x1c28] sm:$0xff]
        %v1249 = vld [vmem:[%s273 + $0x1c30] sm:$0xff]
        %v1250 = vld [vmem:[%s273 + $0x1c38] sm:$0xff]
        %v1251 = vld [vmem:[%s273 + $0x1c40] sm:$0xff]
        %v1252 = vld [vmem:[%s273 + $0x1c48] sm:$0xff]
        %v1253 = vld [vmem:[%s273 + $0x1c50] sm:$0xff]
        %v1254 = vld [vmem:[%s273 + $0x1c58] sm:$0xff]
        %v1255 = vld [vmem:[%s273 + $0x1c60] sm:$0xff]
        %v1256 = vld [vmem:[%s273 + $0x1c68] sm:$0xff]
        %v1257 = vld [vmem:[%s273 + $0x1c70] sm:$0xff]
        %v1258 = vld [vmem:[%s273 + $0x1c78] sm:$0xff]
        %v1259 = vld [vmem:[%s273 + $0x1c80] sm:$0xff]
        %v1260 = vld [vmem:[%s273 + $0x1c88] sm:$0xff]
        %v1261 = vld [vmem:[%s273 + $0x1c90] sm:$0xff]
        %v1262 = vld [vmem:[%s273 + $0x1c98] sm:$0xff]
        %v1263 = vld [vmem:[%s273 + $0x1ca0] sm:$0xff]
        %v1264 = vld [vmem:[%s273 + $0x1ca8] sm:$0xff]
        %v1265 = vld [vmem:[%s273 + $0x1cb0] sm:$0xff]
        %v1266 = vld [vmem:[%s273 + $0x1cb8] sm:$0xff]
        %v1267 = vld [vmem:[%s273 + $0x1cc0] sm:$0xff]
        %v1268 = vld [vmem:[%s273 + $0x1cc8] sm:$0xff]
        %v1269 = vld [vmem:[%s273 + $0x1cd0] sm:$0xff]
        %v1270 = vld [vmem:[%s273 + $0x1cd8] sm:$0xff]
        %v1271 = vld [vmem:[%s273 + $0x1ce0] sm:$0xff]
        %v1272 = vld [vmem:[%s273 + $0x1ce8] sm:$0xff]
        %v1273 = vld [vmem:[%s273 + $0x1cf0] sm:$0xff]
        %v1274 = vld [vmem:[%s273 + $0x1cf8] sm:$0xff]
        %v1275 = vld [vmem:[%s273 + $0x1d00] sm:$0xff]
        %v1276 = vld [vmem:[%s273 + $0x1d08] sm:$0xff]
        %v1277 = vld [vmem:[%s273 + $0x1d10] sm:$0xff]
        %v1278 = vld [vmem:[%s273 + $0x1d18] sm:$0xff]
        %v1279 = vld [vmem:[%s273 + $0x1d20] sm:$0xff]
        %v1280 = vld [vmem:[%s273 + $0x1d28] sm:$0xff]
        %v1281 = vld [vmem:[%s273 + $0x1d30] sm:$0xff]
        %v1282 = vld [vmem:[%s273 + $0x1d38] sm:$0xff]
        %v1283 = vld [vmem:[%s273 + $0x1d40] sm:$0xff]
        %v1284 = vld [vmem:[%s273 + $0x1d48] sm:$0xff]
        %v1285 = vld [vmem:[%s273 + $0x1d50] sm:$0xff]
        %v1286 = vld [vmem:[%s273 + $0x1d58] sm:$0xff]
        %v1287 = vld [vmem:[%s273 + $0x1d60] sm:$0xff]
        %v1288 = vld [vmem:[%s273 + $0x1d68] sm:$0xff]
        %v1289 = vld [vmem:[%s273 + $0x1d70] sm:$0xff]
        %v1290 = vld [vmem:[%s273 + $0x1d78] sm:$0xff]
        %v1291 = vld [vmem:[%s273 + $0x1d80] sm:$0xff]
        %v1292 = vld [vmem:[%s273 + $0x1d88] sm:$0xff]
        %v1293 = vld [vmem:[%s273 + $0x1d90] sm:$0xff]
        %v1294 = vld [vmem:[%s273 + $0x1d98] sm:$0xff]
        %v1295 = vld [vmem:[%s273 + $0x1da0] sm:$0xff]
        %v1296 = vld [vmem:[%s273 + $0x1da8] sm:$0xff]
        %v1297 = vld [vmem:[%s273 + $0x1db0] sm:$0xff]
        %v1298 = vld [vmem:[%s273 + $0x1db8] sm:$0xff]
        %v1299 = vld [vmem:[%s273 + $0x1dc0] sm:$0xff]
        %v1300 = vld [vmem:[%s273 + $0x1dc8] sm:$0xff]
        %v1301 = vld [vmem:[%s273 + $0x1dd0] sm:$0xff]
        %v1302 = vld [vmem:[%s273 + $0x1dd8] sm:$0xff]
        %v1303 = vld [vmem:[%s273 + $0x1de0] sm:$0xff]
        %v1304 = vld [vmem:[%s273 + $0x1de8] sm:$0xff]
        %v1305 = vld [vmem:[%s273 + $0x1df0] sm:$0xff]
        %v1306 = vld [vmem:[%s273 + $0x1df8] sm:$0xff]
        %v1311 = vcombine.high %v342, %v342
        %v1313 = vunpack.c.l.s4 1966171168
        %v1314 = vunpack.c.0.s8 %v1313
        %v1315 = vlaneseq
        %v1316 = vshrl.u32 %v1315, 7
        %v1317 = vsub.s32 %v1314, %v1316
        %v1318 = vrot.slane %v342, %v1317
        %v1320 = vunpack.c.l.s4 1966171168
        %v1321 = vunpack.c.0.s8 %v1320
        %v1322 = vlaneseq
        %v1323 = vshrl.u32 %v1322, 7
        %v1324 = vsub.s32 %v1321, %v1323
        %v1325 = vrot.slane %v1311, %v1324
        %v1326 = vcombine.high %v1318, %v1318
        %v1327 = vcombine.high %v1325, %v1325
        %v1329 = vunpack.c.l.s4 1966171168
        %v1330 = vunpack.c.0.s8 %v1329
        %v1331 = vlaneseq
        %v1332 = vshrl.u32 %v1331, 7
        %v1333 = vsub.s32 %v1330, %v1332
        %v1334 = vrot.slane %v1318, %v1333
        %v1336 = vunpack.c.l.s4 1966171168
        %v1337 = vunpack.c.0.s8 %v1336
        %v1338 = vlaneseq
        %v1339 = vshrl.u32 %v1338, 7
        %v1340 = vsub.s32 %v1337, %v1339
        %v1341 = vrot.slane %v1325, %v1340
        %v1343 = vunpack.c.l.s4 1966171168
        %v1344 = vunpack.c.0.s8 %v1343
        %v1345 = vlaneseq
        %v1346 = vshrl.u32 %v1345, 7
        %v1347 = vsub.s32 %v1344, %v1346
        %v1348 = vrot.slane %v1326, %v1347
        %v1350 = vunpack.c.l.s4 1966171168
        %v1351 = vunpack.c.0.s8 %v1350
        %v1352 = vlaneseq
        %v1353 = vshrl.u32 %v1352, 7
        %v1354 = vsub.s32 %v1351, %v1353
        %v1355 = vrot.slane %v1327, %v1354
        %v1356 = vcombine.high %v1334, %v1334
        %v1357 = vcombine.high %v1341, %v1341
        %v1358 = vcombine.high %v1348, %v1348
        %v1359 = vcombine.high %v1355, %v1355
        %v1360 = vcombine.high %v343, %v343
        %v1362 = vunpack.c.l.s4 1966171168
        %v1363 = vunpack.c.0.s8 %v1362
        %v1364 = vlaneseq
        %v1365 = vshrl.u32 %v1364, 7
        %v1366 = vsub.s32 %v1363, %v1365
        %v1367 = vrot.slane %v343, %v1366
        %v1369 = vunpack.c.l.s4 1966171168
        %v1370 = vunpack.c.0.s8 %v1369
        %v1371 = vlaneseq
        %v1372 = vshrl.u32 %v1371, 7
        %v1373 = vsub.s32 %v1370, %v1372
        %v1374 = vrot.slane %v1360, %v1373
        %v1375 = vcombine.high %v1367, %v1367
        %v1376 = vcombine.high %v1374, %v1374
        %v1378 = vunpack.c.l.s4 1966171168
        %v1379 = vunpack.c.0.s8 %v1378
        %v1380 = vlaneseq
        %v1381 = vshrl.u32 %v1380, 7
        %v1382 = vsub.s32 %v1379, %v1381
        %v1383 = vrot.slane %v1367, %v1382
        %v1385 = vunpack.c.l.s4 1966171168
        %v1386 = vunpack.c.0.s8 %v1385
        %v1387 = vlaneseq
        %v1388 = vshrl.u32 %v1387, 7
        %v1389 = vsub.s32 %v1386, %v1388
        %v1390 = vrot.slane %v1374, %v1389
        %v1392 = vunpack.c.l.s4 1966171168
        %v1393 = vunpack.c.0.s8 %v1392
        %v1394 = vlaneseq
        %v1395 = vshrl.u32 %v1394, 7
        %v1396 = vsub.s32 %v1393, %v1395
        %v1397 = vrot.slane %v1375, %v1396
        %v1399 = vunpack.c.l.s4 1966171168
        %v1400 = vunpack.c.0.s8 %v1399
        %v1401 = vlaneseq
        %v1402 = vshrl.u32 %v1401, 7
        %v1403 = vsub.s32 %v1400, %v1402
        %v1404 = vrot.slane %v1376, %v1403
        %v1405 = vcombine.high %v1383, %v1383
        %v1406 = vcombine.high %v1390, %v1390
        %v1407 = vcombine.high %v1397, %v1397
        %v1408 = vcombine.high %v1404, %v1404
        %v1409 = vcombine.high %v344, %v344
        %v1411 = vunpack.c.l.s4 1966171168
        %v1412 = vunpack.c.0.s8 %v1411
        %v1413 = vlaneseq
        %v1414 = vshrl.u32 %v1413, 7
        %v1415 = vsub.s32 %v1412, %v1414
        %v1416 = vrot.slane %v344, %v1415
        %v1418 = vunpack.c.l.s4 1966171168
        %v1419 = vunpack.c.0.s8 %v1418
        %v1420 = vlaneseq
        %v1421 = vshrl.u32 %v1420, 7
        %v1422 = vsub.s32 %v1419, %v1421
        %v1423 = vrot.slane %v1409, %v1422
        %v1424 = vcombine.high %v1416, %v1416
        %v1425 = vcombine.high %v1423, %v1423
        %v1427 = vunpack.c.l.s4 1966171168
        %v1428 = vunpack.c.0.s8 %v1427
        %v1429 = vlaneseq
        %v1430 = vshrl.u32 %v1429, 7
        %v1431 = vsub.s32 %v1428, %v1430
        %v1432 = vrot.slane %v1416, %v1431
        %v1434 = vunpack.c.l.s4 1966171168
        %v1435 = vunpack.c.0.s8 %v1434
        %v1436 = vlaneseq
        %v1437 = vshrl.u32 %v1436, 7
        %v1438 = vsub.s32 %v1435, %v1437
        %v1439 = vrot.slane %v1423, %v1438
        %v1441 = vunpack.c.l.s4 1966171168
        %v1442 = vunpack.c.0.s8 %v1441
        %v1443 = vlaneseq
        %v1444 = vshrl.u32 %v1443, 7
        %v1445 = vsub.s32 %v1442, %v1444
        %v1446 = vrot.slane %v1424, %v1445
        %v1448 = vunpack.c.l.s4 1966171168
        %v1449 = vunpack.c.0.s8 %v1448
        %v1450 = vlaneseq
        %v1451 = vshrl.u32 %v1450, 7
        %v1452 = vsub.s32 %v1449, %v1451
        %v1453 = vrot.slane %v1425, %v1452
        %v1454 = vcombine.high %v1432, %v1432
        %v1455 = vcombine.high %v1439, %v1439
        %v1456 = vcombine.high %v1446, %v1446
        %v1457 = vcombine.high %v1453, %v1453
        %v1458 = vcombine.high %v345, %v345
        %v1460 = vunpack.c.l.s4 1966171168
        %v1461 = vunpack.c.0.s8 %v1460
        %v1462 = vlaneseq
        %v1463 = vshrl.u32 %v1462, 7
        %v1464 = vsub.s32 %v1461, %v1463
        %v1465 = vrot.slane %v345, %v1464
        %v1467 = vunpack.c.l.s4 1966171168
        %v1468 = vunpack.c.0.s8 %v1467
        %v1469 = vlaneseq
        %v1470 = vshrl.u32 %v1469, 7
        %v1471 = vsub.s32 %v1468, %v1470
        %v1472 = vrot.slane %v1458, %v1471
        %v1473 = vcombine.high %v1465, %v1465
        %v1474 = vcombine.high %v1472, %v1472
        %v1476 = vunpack.c.l.s4 1966171168
        %v1477 = vunpack.c.0.s8 %v1476
        %v1478 = vlaneseq
        %v1479 = vshrl.u32 %v1478, 7
        %v1480 = vsub.s32 %v1477, %v1479
        %v1481 = vrot.slane %v1465, %v1480
        %v1483 = vunpack.c.l.s4 1966171168
        %v1484 = vunpack.c.0.s8 %v1483
        %v1485 = vlaneseq
        %v1486 = vshrl.u32 %v1485, 7
        %v1487 = vsub.s32 %v1484, %v1486
        %v1488 = vrot.slane %v1472, %v1487
        %v1490 = vunpack.c.l.s4 1966171168
        %v1491 = vunpack.c.0.s8 %v1490
        %v1492 = vlaneseq
        %v1493 = vshrl.u32 %v1492, 7
        %v1494 = vsub.s32 %v1491, %v1493
        %v1495 = vrot.slane %v1473, %v1494
        %v1497 = vunpack.c.l.s4 1966171168
        %v1498 = vunpack.c.0.s8 %v1497
        %v1499 = vlaneseq
        %v1500 = vshrl.u32 %v1499, 7
        %v1501 = vsub.s32 %v1498, %v1500
        %v1502 = vrot.slane %v1474, %v1501
        %v1503 = vcombine.high %v1481, %v1481
        %v1504 = vcombine.high %v1495, %v1495
        %v2495 = vunpack.c.l.b16 %v347
        %v2496 = vunpack.c.h.b16 %v347
        %v2497 = vunpack.c.l.b16 %v348
        %v2498 = vunpack.c.h.b16 %v348
        %v2499 = vunpack.c.l.b16 %v349
        %v2500 = vunpack.c.h.b16 %v349
        %v2501 = vunpack.c.l.b16 %v350
        %v2502 = vunpack.c.h.b16 %v350
        %v2503 = vunpack.c.l.b16 %v351
        %v2504 = vunpack.c.h.b16 %v351
        %v2505 = vunpack.c.l.b16 %v352
        %v2506 = vunpack.c.h.b16 %v352
        %v2507 = vunpack.c.l.b16 %v353
        %v2508 = vunpack.c.h.b16 %v353
        %v2509 = vunpack.c.l.b16 %v354
        %v2510 = vunpack.c.h.b16 %v354
        %v2511 = vunpack.c.l.b16 %v355
        %v2512 = vunpack.c.h.b16 %v355
        %v2513 = vunpack.c.l.b16 %v356
        %v2514 = vunpack.c.h.b16 %v356
        %v2515 = vunpack.c.l.b16 %v357
        %v2516 = vunpack.c.h.b16 %v357
        %v2517 = vunpack.c.l.b16 %v358
        %v2518 = vunpack.c.h.b16 %v358
        %v2519 = vunpack.c.l.b16 %v359
        %v2520 = vunpack.c.h.b16 %v359
        %v2521 = vunpack.c.l.b16 %v360
        %v2522 = vunpack.c.h.b16 %v360
        %v2523 = vunpack.c.l.b16 %v361
        %v2524 = vunpack.c.h.b16 %v361
        %v2525 = vunpack.c.l.b16 %v362
        %v2526 = vunpack.c.h.b16 %v362
        %v2527 = vunpack.c.l.b16 %v363
        %v2528 = vunpack.c.h.b16 %v363
        %v2529 = vunpack.c.l.b16 %v364
        %v2530 = vunpack.c.h.b16 %v364
        %v2531 = vunpack.c.l.b16 %v365
        %v2532 = vunpack.c.h.b16 %v365
        %v2533 = vunpack.c.l.b16 %v366
        %v2534 = vunpack.c.h.b16 %v366
        %v2535 = vunpack.c.l.b16 %v367
        %v2536 = vunpack.c.h.b16 %v367
        %v2537 = vunpack.c.l.b16 %v368
        %v2538 = vunpack.c.h.b16 %v368
        %v2539 = vunpack.c.l.b16 %v369
        %v2540 = vunpack.c.h.b16 %v369
        %v2541 = vunpack.c.l.b16 %v370
        %v2542 = vunpack.c.h.b16 %v370
        %v2543 = vunpack.c.l.b16 %v371
        %v2544 = vunpack.c.h.b16 %v371
        %v2545 = vunpack.c.l.b16 %v372
        %v2546 = vunpack.c.h.b16 %v372
        %v2547 = vunpack.c.l.b16 %v373
        %v2548 = vunpack.c.h.b16 %v373
        %v2549 = vunpack.c.l.b16 %v374
        %v2550 = vunpack.c.h.b16 %v374
        %v2551 = vunpack.c.l.b16 %v375
        %v2552 = vunpack.c.h.b16 %v375
        %v2553 = vunpack.c.l.b16 %v376
        %v2554 = vunpack.c.h.b16 %v376
        %v2555 = vunpack.c.l.b16 %v377
        %v2556 = vunpack.c.h.b16 %v377
        %v2557 = vunpack.c.l.b16 %v378
        %v2558 = vunpack.c.h.b16 %v378
        %v2559 = vunpack.c.l.b16 %v379
        %v2560 = vunpack.c.h.b16 %v379
        %v2561 = vunpack.c.l.b16 %v380
        %v2562 = vunpack.c.h.b16 %v380
        %v2563 = vunpack.c.l.b16 %v381
        %v2564 = vunpack.c.h.b16 %v381
        %v2565 = vunpack.c.l.b16 %v382
        %v2566 = vunpack.c.h.b16 %v382
        %v2567 = vunpack.c.l.b16 %v383
        %v2568 = vunpack.c.h.b16 %v383
        %v2569 = vunpack.c.l.b16 %v384
        %v2570 = vunpack.c.h.b16 %v384
        %v2571 = vunpack.c.l.b16 %v385
        %v2572 = vunpack.c.h.b16 %v385
        %v2573 = vunpack.c.l.b16 %v386
        %v2574 = vunpack.c.h.b16 %v386
        %v2575 = vunpack.c.l.b16 %v387
        %v2576 = vunpack.c.h.b16 %v387
        %v2577 = vunpack.c.l.b16 %v388
        %v2578 = vunpack.c.h.b16 %v388
        %v2579 = vunpack.c.l.b16 %v389
        %v2580 = vunpack.c.h.b16 %v389
        %v2581 = vunpack.c.l.b16 %v390
        %v2582 = vunpack.c.h.b16 %v390
        %v2583 = vunpack.c.l.b16 %v391
        %v2584 = vunpack.c.h.b16 %v391
        %v2585 = vunpack.c.l.b16 %v392
        %v2586 = vunpack.c.h.b16 %v392
        %v2587 = vunpack.c.l.b16 %v393
        %v2588 = vunpack.c.h.b16 %v393
        %v2589 = vunpack.c.l.b16 %v394
        %v2590 = vunpack.c.h.b16 %v394
        %v2591 = vunpack.c.l.b16 %v395
        %v2592 = vunpack.c.h.b16 %v395
        %v2593 = vunpack.c.l.b16 %v396
        %v2594 = vunpack.c.h.b16 %v396
        %v2595 = vunpack.c.l.b16 %v397
        %v2596 = vunpack.c.h.b16 %v397
        %v2597 = vunpack.c.l.b16 %v398
        %v2598 = vunpack.c.h.b16 %v398
        %v2599 = vunpack.c.l.b16 %v399
        %v2600 = vunpack.c.h.b16 %v399
        %v2601 = vunpack.c.l.b16 %v400
        %v2602 = vunpack.c.h.b16 %v400
        %v2603 = vunpack.c.l.b16 %v401
        %v2604 = vunpack.c.h.b16 %v401
        %v2605 = vunpack.c.l.b16 %v402
        %v2606 = vunpack.c.h.b16 %v402
        %v2607 = vunpack.c.l.b16 %v403
        %v2608 = vunpack.c.h.b16 %v403
        %v2609 = vunpack.c.l.b16 %v404
        %v2610 = vunpack.c.h.b16 %v404
        %v2611 = vunpack.c.l.b16 %v405
        %v2612 = vunpack.c.h.b16 %v405
        %v2613 = vunpack.c.l.b16 %v406
        %v2614 = vunpack.c.h.b16 %v406
        %v2615 = vunpack.c.l.b16 %v407
        %v2616 = vunpack.c.h.b16 %v407
        %v2617 = vunpack.c.l.b16 %v408
        %v2618 = vunpack.c.h.b16 %v408
        %v2619 = vunpack.c.l.b16 %v409
        %v2620 = vunpack.c.h.b16 %v409
        %v2621 = vunpack.c.l.b16 %v410
        %v2622 = vunpack.c.h.b16 %v410
        %v2623 = vunpack.c.l.b16 %v411
        %v2624 = vunpack.c.h.b16 %v411
        %v2625 = vunpack.c.l.b16 %v412
        %v2626 = vunpack.c.h.b16 %v412
        %v2627 = vunpack.c.l.b16 %v413
        %v2628 = vunpack.c.h.b16 %v413
        %v2629 = vunpack.c.l.b16 %v414
        %v2630 = vunpack.c.h.b16 %v414
        %v2631 = vunpack.c.l.b16 %v415
        %v2632 = vunpack.c.h.b16 %v415
        %v2633 = vunpack.c.l.b16 %v416
        %v2634 = vunpack.c.h.b16 %v416
        %v2635 = vunpack.c.l.b16 %v417
        %v2636 = vunpack.c.h.b16 %v417
        %v2637 = vunpack.c.l.b16 %v418
        %v2638 = vunpack.c.h.b16 %v418
        %v2639 = vunpack.c.l.b16 %v419
        %v2640 = vunpack.c.h.b16 %v419
        %v2641 = vunpack.c.l.b16 %v420
        %v2642 = vunpack.c.h.b16 %v420
        %v2643 = vunpack.c.l.b16 %v421
        %v2644 = vunpack.c.h.b16 %v421
        %v2645 = vunpack.c.l.b16 %v422
        %v2646 = vunpack.c.h.b16 %v422
        %v2647 = vunpack.c.l.b16 %v423
        %v2648 = vunpack.c.h.b16 %v423
        %v2649 = vunpack.c.l.b16 %v424
        %v2650 = vunpack.c.h.b16 %v424
        %v2651 = vunpack.c.l.b16 %v425
        %v2652 = vunpack.c.h.b16 %v425
        %v2653 = vunpack.c.l.b16 %v426
        %v2654 = vunpack.c.h.b16 %v426
        %v2655 = vunpack.c.l.b16 %v427
        %v2656 = vunpack.c.h.b16 %v427
        %v2657 = vunpack.c.l.b16 %v428
        %v2658 = vunpack.c.h.b16 %v428
        %v2659 = vunpack.c.l.b16 %v429
        %v2660 = vunpack.c.h.b16 %v429
        %v2661 = vunpack.c.l.b16 %v430
        %v2662 = vunpack.c.h.b16 %v430
        %v2663 = vunpack.c.l.b16 %v431
        %v2664 = vunpack.c.h.b16 %v431
        %v2665 = vunpack.c.l.b16 %v432
        %v2666 = vunpack.c.h.b16 %v432
        %v2667 = vunpack.c.l.b16 %v433
        %v2668 = vunpack.c.h.b16 %v433
        %v2669 = vunpack.c.l.b16 %v434
        %v2670 = vunpack.c.h.b16 %v434
        %v2671 = vunpack.c.l.b16 %v435
        %v2672 = vunpack.c.h.b16 %v435
        %v2673 = vunpack.c.l.b16 %v436
        %v2674 = vunpack.c.h.b16 %v436
        %v2675 = vunpack.c.l.b16 %v437
        %v2676 = vunpack.c.h.b16 %v437
        %v2677 = vunpack.c.l.b16 %v438
        %v2678 = vunpack.c.h.b16 %v438
        %v2679 = vunpack.c.l.b16 %v439
        %v2680 = vunpack.c.h.b16 %v439
        %v2681 = vunpack.c.l.b16 %v440
        %v2682 = vunpack.c.h.b16 %v440
        %v2683 = vunpack.c.l.b16 %v441
        %v2684 = vunpack.c.h.b16 %v441
        %v2685 = vunpack.c.l.b16 %v442
        %v2686 = vunpack.c.h.b16 %v442
        %v2687 = vunpack.c.l.b16 %v443
        %v2688 = vunpack.c.h.b16 %v443
        %v2689 = vunpack.c.l.b16 %v444
        %v2690 = vunpack.c.h.b16 %v444
        %v2691 = vunpack.c.l.b16 %v445
        %v2692 = vunpack.c.h.b16 %v445
        %v2693 = vunpack.c.l.b16 %v446
        %v2694 = vunpack.c.h.b16 %v446
        %v2695 = vunpack.c.l.b16 %v447
        %v2696 = vunpack.c.h.b16 %v447
        %v2697 = vunpack.c.l.b16 %v448
        %v2698 = vunpack.c.h.b16 %v448
        %v2699 = vunpack.c.l.b16 %v449
        %v2700 = vunpack.c.h.b16 %v449
        %v2701 = vunpack.c.l.b16 %v450
        %v2702 = vunpack.c.h.b16 %v450
        %v2703 = vunpack.c.l.b16 %v451
        %v2704 = vunpack.c.h.b16 %v451
        %v2705 = vunpack.c.l.b16 %v452
        %v2706 = vunpack.c.h.b16 %v452
        %v2707 = vunpack.c.l.b16 %v453
        %v2708 = vunpack.c.h.b16 %v453
        %v2709 = vunpack.c.l.b16 %v454
        %v2710 = vunpack.c.h.b16 %v454
        %v2711 = vunpack.c.l.b16 %v455
        %v2712 = vunpack.c.h.b16 %v455
        %v2713 = vunpack.c.l.b16 %v456
        %v2714 = vunpack.c.h.b16 %v456
        %v2715 = vunpack.c.l.b16 %v457
        %v2716 = vunpack.c.h.b16 %v457
        %v2717 = vunpack.c.l.b16 %v458
        %v2718 = vunpack.c.h.b16 %v458
        %v2719 = vunpack.c.l.b16 %v459
        %v2720 = vunpack.c.h.b16 %v459
        %v2721 = vunpack.c.l.b16 %v460
        %v2722 = vunpack.c.h.b16 %v460
        %v2723 = vunpack.c.l.b16 %v461
        %v2724 = vunpack.c.h.b16 %v461
        %v2725 = vunpack.c.l.b16 %v462
        %v2726 = vunpack.c.h.b16 %v462
        %v2727 = vunpack.c.l.b16 %v463
        %v2728 = vunpack.c.h.b16 %v463
        %v2729 = vunpack.c.l.b16 %v464
        %v2730 = vunpack.c.h.b16 %v464
        %v2731 = vunpack.c.l.b16 %v465
        %v2732 = vunpack.c.h.b16 %v465
        %v2733 = vunpack.c.l.b16 %v466
        %v2734 = vunpack.c.h.b16 %v466
        %v2735 = vunpack.c.l.b16 %v467
        %v2736 = vunpack.c.h.b16 %v467
        %v2737 = vunpack.c.l.b16 %v468
        %v2738 = vunpack.c.h.b16 %v468
        %v2739 = vunpack.c.l.b16 %v469
        %v2740 = vunpack.c.h.b16 %v469
        %v2741 = vunpack.c.l.b16 %v470
        %v2742 = vunpack.c.h.b16 %v470
        %v2743 = vunpack.c.l.b16 %v471
        %v2744 = vunpack.c.h.b16 %v471
        %v2745 = vunpack.c.l.b16 %v472
        %v2746 = vunpack.c.h.b16 %v472
        %v2747 = vunpack.c.l.b16 %v473
        %v2748 = vunpack.c.h.b16 %v473
        %v2749 = vunpack.c.l.b16 %v474
        %v2750 = vunpack.c.h.b16 %v474
        %v2751 = vunpack.c.l.b16 %v475
        %v2752 = vunpack.c.h.b16 %v475
        %v2753 = vunpack.c.l.b16 %v476
        %v2754 = vunpack.c.h.b16 %v476
        %v2755 = vunpack.c.l.b16 %v477
        %v2756 = vunpack.c.h.b16 %v477
        %v2757 = vunpack.c.l.b16 %v478
        %v2758 = vunpack.c.h.b16 %v478
        %v2759 = vunpack.c.l.b16 %v479
        %v2760 = vunpack.c.h.b16 %v479
        %v2761 = vunpack.c.l.b16 %v480
        %v2762 = vunpack.c.h.b16 %v480
        %v2763 = vunpack.c.l.b16 %v481
        %v2764 = vunpack.c.h.b16 %v481
        %v2765 = vunpack.c.l.b16 %v482
        %v2766 = vunpack.c.h.b16 %v482
        %v2767 = vunpack.c.l.b16 %v483
        %v2768 = vunpack.c.h.b16 %v483
        %v2769 = vunpack.c.l.b16 %v484
        %v2770 = vunpack.c.h.b16 %v484
        %v2771 = vunpack.c.l.b16 %v485
        %v2772 = vunpack.c.h.b16 %v485
        %v2773 = vunpack.c.l.b16 %v486
        %v2774 = vunpack.c.h.b16 %v486
        %v2775 = vunpack.c.l.b16 %v487
        %v2776 = vunpack.c.h.b16 %v487
        %v2777 = vunpack.c.l.b16 %v488
        %v2778 = vunpack.c.h.b16 %v488
        %v2779 = vunpack.c.l.b16 %v489
        %v2780 = vunpack.c.h.b16 %v489
        %v2781 = vunpack.c.l.b16 %v490
        %v2782 = vunpack.c.h.b16 %v490
        %v2783 = vunpack.c.l.b16 %v491
        %v2784 = vunpack.c.h.b16 %v491
        %v2785 = vunpack.c.l.b16 %v492
        %v2786 = vunpack.c.h.b16 %v492
        %v2787 = vunpack.c.l.b16 %v493
        %v2788 = vunpack.c.h.b16 %v493
        %v2789 = vunpack.c.l.b16 %v494
        %v2790 = vunpack.c.h.b16 %v494
        %v2791 = vunpack.c.l.b16 %v495
        %v2792 = vunpack.c.h.b16 %v495
        %v2793 = vunpack.c.l.b16 %v496
        %v2794 = vunpack.c.h.b16 %v496
        %v2795 = vunpack.c.l.b16 %v497
        %v2796 = vunpack.c.h.b16 %v497
        %v2797 = vunpack.c.l.b16 %v498
        %v2798 = vunpack.c.h.b16 %v498
        %v2799 = vunpack.c.l.b16 %v499
        %v2800 = vunpack.c.h.b16 %v499
        %v2801 = vunpack.c.l.b16 %v500
        %v2802 = vunpack.c.h.b16 %v500
        %v2803 = vunpack.c.l.b16 %v501
        %v2804 = vunpack.c.h.b16 %v501
        %v2805 = vunpack.c.l.b16 %v502
        %v2806 = vunpack.c.h.b16 %v502
        %v2807 = vunpack.c.l.b16 %v503
        %v2808 = vunpack.c.h.b16 %v503
        %v2809 = vunpack.c.l.b16 %v504
        %v2810 = vunpack.c.h.b16 %v504
        %v2811 = vunpack.c.l.b16 %v505
        %v2812 = vunpack.c.h.b16 %v505
        %v2813 = vunpack.c.l.b16 %v506
        %v2814 = vunpack.c.h.b16 %v506
        %v2815 = vunpack.c.l.b16 %v507
        %v2816 = vunpack.c.h.b16 %v507
        %v2817 = vunpack.c.l.b16 %v508
        %v2818 = vunpack.c.h.b16 %v508
        %v2819 = vunpack.c.l.b16 %v509
        %v2820 = vunpack.c.h.b16 %v509
        %v2821 = vunpack.c.l.b16 %v510
        %v2822 = vunpack.c.h.b16 %v510
        %v2823 = vunpack.c.l.b16 %v511
        %v2824 = vunpack.c.h.b16 %v511
        %v2825 = vunpack.c.l.b16 %v512
        %v2826 = vunpack.c.h.b16 %v512
        %v2827 = vunpack.c.l.b16 %v513
        %v2828 = vunpack.c.h.b16 %v513
        %v2829 = vunpack.c.l.b16 %v514
        %v2830 = vunpack.c.h.b16 %v514
        %v2831 = vunpack.c.l.b16 %v515
        %v2832 = vunpack.c.h.b16 %v515
        %v2833 = vunpack.c.l.b16 %v516
        %v2834 = vunpack.c.h.b16 %v516
        %v2835 = vunpack.c.l.b16 %v517
        %v2836 = vunpack.c.h.b16 %v517
        %v2837 = vunpack.c.l.b16 %v518
        %v2838 = vunpack.c.h.b16 %v518
        %v2839 = vunpack.c.l.b16 %v519
        %v2840 = vunpack.c.h.b16 %v519
        %v2841 = vunpack.c.l.b16 %v520
        %v2842 = vunpack.c.h.b16 %v520
        %v2843 = vunpack.c.l.b16 %v521
        %v2844 = vunpack.c.h.b16 %v521
        %v2845 = vunpack.c.l.b16 %v522
        %v2846 = vunpack.c.h.b16 %v522
        %v2847 = vunpack.c.l.b16 %v523
        %v2848 = vunpack.c.h.b16 %v523
        %v2849 = vunpack.c.l.b16 %v524
        %v2850 = vunpack.c.h.b16 %v524
        %v2851 = vunpack.c.l.b16 %v525
        %v2852 = vunpack.c.h.b16 %v525
        %v2853 = vunpack.c.l.b16 %v526
        %v2854 = vunpack.c.h.b16 %v526
        %v2855 = vunpack.c.l.b16 %v527
        %v2856 = vunpack.c.h.b16 %v527
        %v2857 = vunpack.c.l.b16 %v528
        %v2858 = vunpack.c.h.b16 %v528
        %v2859 = vunpack.c.l.b16 %v529
        %v2860 = vunpack.c.h.b16 %v529
        %v2861 = vunpack.c.l.b16 %v530
        %v2862 = vunpack.c.h.b16 %v530
        %v2863 = vunpack.c.l.b16 %v531
        %v2864 = vunpack.c.h.b16 %v531
        %v2865 = vunpack.c.l.b16 %v532
        %v2866 = vunpack.c.h.b16 %v532
        %v2867 = vunpack.c.l.b16 %v533
        %v2868 = vunpack.c.h.b16 %v533
        %v2869 = vunpack.c.l.b16 %v534
        %v2870 = vunpack.c.h.b16 %v534
        %v2871 = vunpack.c.l.b16 %v535
        %v2872 = vunpack.c.h.b16 %v535
        %v2873 = vunpack.c.l.b16 %v536
        %v2874 = vunpack.c.h.b16 %v536
        %v2875 = vunpack.c.l.b16 %v537
        %v2876 = vunpack.c.h.b16 %v537
        %v2877 = vunpack.c.l.b16 %v538
        %v2878 = vunpack.c.h.b16 %v538
        %v2879 = vunpack.c.l.b16 %v539
        %v2880 = vunpack.c.h.b16 %v539
        %v2881 = vunpack.c.l.b16 %v540
        %v2882 = vunpack.c.h.b16 %v540
        %v2883 = vunpack.c.l.b16 %v541
        %v2884 = vunpack.c.h.b16 %v541
        %v2885 = vunpack.c.l.b16 %v542
        %v2886 = vunpack.c.h.b16 %v542
        %v2887 = vunpack.c.l.b16 %v543
        %v2888 = vunpack.c.h.b16 %v543
        %v2889 = vunpack.c.l.b16 %v544
        %v2890 = vunpack.c.h.b16 %v544
        %v2891 = vunpack.c.l.b16 %v545
        %v2892 = vunpack.c.h.b16 %v545
        %v2893 = vunpack.c.l.b16 %v546
        %v2894 = vunpack.c.h.b16 %v546
        %v2895 = vunpack.c.l.b16 %v547
        %v2896 = vunpack.c.h.b16 %v547
        %v2897 = vunpack.c.l.b16 %v548
        %v2898 = vunpack.c.h.b16 %v548
        %v2899 = vunpack.c.l.b16 %v549
        %v2900 = vunpack.c.h.b16 %v549
        %v2901 = vunpack.c.l.b16 %v550
        %v2902 = vunpack.c.h.b16 %v550
        %v2903 = vunpack.c.l.b16 %v551
        %v2904 = vunpack.c.h.b16 %v551
        %v2905 = vunpack.c.l.b16 %v552
        %v2906 = vunpack.c.h.b16 %v552
        %v2907 = vunpack.c.l.b16 %v553
        %v2908 = vunpack.c.h.b16 %v553
        %v2909 = vunpack.c.l.b16 %v554
        %v2910 = vunpack.c.h.b16 %v554
        %v2911 = vunpack.c.l.b16 %v555
        %v2912 = vunpack.c.h.b16 %v555
        %v2913 = vunpack.c.l.b16 %v556
        %v2914 = vunpack.c.h.b16 %v556
        %v2915 = vunpack.c.l.b16 %v557
        %v2916 = vunpack.c.h.b16 %v557
        %v2917 = vunpack.c.l.b16 %v558
        %v2918 = vunpack.c.h.b16 %v558
        %v2919 = vunpack.c.l.b16 %v559
        %v2920 = vunpack.c.h.b16 %v559
        %v2921 = vunpack.c.l.b16 %v560
        %v2922 = vunpack.c.h.b16 %v560
        %v2923 = vunpack.c.l.b16 %v561
        %v2924 = vunpack.c.h.b16 %v561
        %v2925 = vunpack.c.l.b16 %v562
        %v2926 = vunpack.c.h.b16 %v562
        %v2927 = vunpack.c.l.b16 %v563
        %v2928 = vunpack.c.h.b16 %v563
        %v2929 = vunpack.c.l.b16 %v564
        %v2930 = vunpack.c.h.b16 %v564
        %v2931 = vunpack.c.l.b16 %v565
        %v2932 = vunpack.c.h.b16 %v565
        %v2933 = vunpack.c.l.b16 %v566
        %v2934 = vunpack.c.h.b16 %v566
        %v2935 = vunpack.c.l.b16 %v567
        %v2936 = vunpack.c.h.b16 %v567
        %v2937 = vunpack.c.l.b16 %v568
        %v2938 = vunpack.c.h.b16 %v568
        %v2939 = vunpack.c.l.b16 %v569
        %v2940 = vunpack.c.h.b16 %v569
        %v2941 = vunpack.c.l.b16 %v570
        %v2942 = vunpack.c.h.b16 %v570
        %v2943 = vunpack.c.l.b16 %v571
        %v2944 = vunpack.c.h.b16 %v571
        %v2945 = vunpack.c.l.b16 %v572
        %v2946 = vunpack.c.h.b16 %v572
        %v2947 = vunpack.c.l.b16 %v573
        %v2948 = vunpack.c.h.b16 %v573
        %v2949 = vunpack.c.l.b16 %v574
        %v2950 = vunpack.c.h.b16 %v574
        %v2951 = vunpack.c.l.b16 %v575
        %v2952 = vunpack.c.h.b16 %v575
        %v2953 = vunpack.c.l.b16 %v576
        %v2954 = vunpack.c.h.b16 %v576
        %v2955 = vunpack.c.l.b16 %v577
        %v2956 = vunpack.c.h.b16 %v577
        %v2957 = vunpack.c.l.b16 %v578
        %v2958 = vunpack.c.h.b16 %v578
        %v2959 = vunpack.c.l.b16 %v579
        %v2960 = vunpack.c.h.b16 %v579
        %v2961 = vunpack.c.l.b16 %v580
        %v2962 = vunpack.c.h.b16 %v580
        %v2963 = vunpack.c.l.b16 %v581
        %v2964 = vunpack.c.h.b16 %v581
        %v2965 = vunpack.c.l.b16 %v582
        %v2966 = vunpack.c.h.b16 %v582
        %v2967 = vunpack.c.l.b16 %v583
        %v2968 = vunpack.c.h.b16 %v583
        %v2969 = vunpack.c.l.b16 %v584
        %v2970 = vunpack.c.h.b16 %v584
        %v2971 = vunpack.c.l.b16 %v585
        %v2972 = vunpack.c.h.b16 %v585
        %v2973 = vunpack.c.l.b16 %v586
        %v2974 = vunpack.c.h.b16 %v586
        %v2975 = vunpack.c.l.b16 %v587
        %v2976 = vunpack.c.h.b16 %v587
        %v2977 = vunpack.c.l.b16 %v588
        %v2978 = vunpack.c.h.b16 %v588
        %v2979 = vunpack.c.l.b16 %v589
        %v2980 = vunpack.c.h.b16 %v589
        %v2981 = vunpack.c.l.b16 %v590
        %v2982 = vunpack.c.h.b16 %v590
        %v2983 = vunpack.c.l.b16 %v591
        %v2984 = vunpack.c.h.b16 %v591
        %v2985 = vunpack.c.l.b16 %v592
        %v2986 = vunpack.c.h.b16 %v592
        %v2987 = vunpack.c.l.b16 %v593
        %v2988 = vunpack.c.h.b16 %v593
        %v2989 = vunpack.c.l.b16 %v594
        %v2990 = vunpack.c.h.b16 %v594
        %v2991 = vunpack.c.l.b16 %v595
        %v2992 = vunpack.c.h.b16 %v595
        %v2993 = vunpack.c.l.b16 %v596
        %v2994 = vunpack.c.h.b16 %v596
        %v2995 = vunpack.c.l.b16 %v597
        %v2996 = vunpack.c.h.b16 %v597
        %v2997 = vunpack.c.l.b16 %v598
        %v2998 = vunpack.c.h.b16 %v598
        %v2999 = vunpack.c.l.b16 %v599
        %v3000 = vunpack.c.h.b16 %v599
        %v3001 = vunpack.c.l.b16 %v600
        %v3002 = vunpack.c.h.b16 %v600
        %v3003 = vunpack.c.l.b16 %v601
        %v3004 = vunpack.c.h.b16 %v601
        %v3005 = vunpack.c.l.b16 %v602
        %v3006 = vunpack.c.h.b16 %v602
        %v3007 = vunpack.c.l.b16 %v603
        %v3008 = vunpack.c.h.b16 %v603
        %v3009 = vunpack.c.l.b16 %v604
        %v3010 = vunpack.c.h.b16 %v604
        %v3011 = vunpack.c.l.b16 %v605
        %v3012 = vunpack.c.h.b16 %v605
        %v3013 = vunpack.c.l.b16 %v606
        %v3014 = vunpack.c.h.b16 %v606
        %v3015 = vunpack.c.l.b16 %v607
        %v3016 = vunpack.c.h.b16 %v607
        %v3017 = vunpack.c.l.b16 %v608
        %v3018 = vunpack.c.h.b16 %v608
        %v3019 = vunpack.c.l.b16 %v609
        %v3020 = vunpack.c.h.b16 %v609
        %v3021 = vunpack.c.l.b16 %v610
        %v3022 = vunpack.c.h.b16 %v610
        %v3023 = vunpack.c.l.b16 %v611
        %v3024 = vunpack.c.h.b16 %v611
        %v3025 = vunpack.c.l.b16 %v612
        %v3026 = vunpack.c.h.b16 %v612
        %v3027 = vunpack.c.l.b16 %v613
        %v3028 = vunpack.c.h.b16 %v613
        %v3029 = vunpack.c.l.b16 %v614
        %v3030 = vunpack.c.h.b16 %v614
        %v3031 = vunpack.c.l.b16 %v615
        %v3032 = vunpack.c.h.b16 %v615
        %v3033 = vunpack.c.l.b16 %v616
        %v3034 = vunpack.c.h.b16 %v616
        %v3035 = vunpack.c.l.b16 %v617
        %v3036 = vunpack.c.h.b16 %v617
        %v3037 = vunpack.c.l.b16 %v618
        %v3038 = vunpack.c.h.b16 %v618
        %v3039 = vunpack.c.l.b16 %v619
        %v3040 = vunpack.c.h.b16 %v619
        %v3041 = vunpack.c.l.b16 %v620
        %v3042 = vunpack.c.h.b16 %v620
        %v3043 = vunpack.c.l.b16 %v621
        %v3044 = vunpack.c.h.b16 %v621
        %v3045 = vunpack.c.l.b16 %v622
        %v3046 = vunpack.c.h.b16 %v622
        %v3047 = vunpack.c.l.b16 %v623
        %v3048 = vunpack.c.h.b16 %v623
        %v3049 = vunpack.c.l.b16 %v624
        %v3050 = vunpack.c.h.b16 %v624
        %v3051 = vunpack.c.l.b16 %v625
        %v3052 = vunpack.c.h.b16 %v625
        %v3053 = vunpack.c.l.b16 %v626
        %v3054 = vunpack.c.h.b16 %v626
        %v3055 = vunpack.c.l.b16 %v627
        %v3056 = vunpack.c.h.b16 %v627
        %v3057 = vunpack.c.l.b16 %v628
        %v3058 = vunpack.c.h.b16 %v628
        %v3059 = vunpack.c.l.b16 %v629
        %v3060 = vunpack.c.h.b16 %v629
        %v3061 = vunpack.c.l.b16 %v630
        %v3062 = vunpack.c.h.b16 %v630
        %v3063 = vunpack.c.l.b16 %v631
        %v3064 = vunpack.c.h.b16 %v631
        %v3065 = vunpack.c.l.b16 %v632
        %v3066 = vunpack.c.h.b16 %v632
        %v3067 = vunpack.c.l.b16 %v633
        %v3068 = vunpack.c.h.b16 %v633
        %v3069 = vunpack.c.l.b16 %v634
        %v3070 = vunpack.c.h.b16 %v634
        %v3071 = vunpack.c.l.b16 %v635
        %v3072 = vunpack.c.h.b16 %v635
        %v3073 = vunpack.c.l.b16 %v636
        %v3074 = vunpack.c.h.b16 %v636
        %v3075 = vunpack.c.l.b16 %v637
        %v3076 = vunpack.c.h.b16 %v637
        %v3077 = vunpack.c.l.b16 %v638
        %v3078 = vunpack.c.h.b16 %v638
        %v3079 = vunpack.c.l.b16 %v639
        %v3080 = vunpack.c.h.b16 %v639
        %v3081 = vunpack.c.l.b16 %v640
        %v3082 = vunpack.c.h.b16 %v640
        %v3083 = vunpack.c.l.b16 %v641
        %v3084 = vunpack.c.h.b16 %v641
        %v3085 = vunpack.c.l.b16 %v642
        %v3086 = vunpack.c.h.b16 %v642
        %v3087 = vunpack.c.l.b16 %v643
        %v3088 = vunpack.c.h.b16 %v643
        %v3089 = vunpack.c.l.b16 %v644
        %v3090 = vunpack.c.h.b16 %v644
        %v3091 = vunpack.c.l.b16 %v645
        %v3092 = vunpack.c.h.b16 %v645
        %v3093 = vunpack.c.l.b16 %v646
        %v3094 = vunpack.c.h.b16 %v646
        %v3095 = vunpack.c.l.b16 %v647
        %v3096 = vunpack.c.h.b16 %v647
        %v3097 = vunpack.c.l.b16 %v648
        %v3098 = vunpack.c.h.b16 %v648
        %v3099 = vunpack.c.l.b16 %v649
        %v3100 = vunpack.c.h.b16 %v649
        %v3101 = vunpack.c.l.b16 %v650
        %v3102 = vunpack.c.h.b16 %v650
        %v3103 = vunpack.c.l.b16 %v651
        %v3104 = vunpack.c.h.b16 %v651
        %v3105 = vunpack.c.l.b16 %v652
        %v3106 = vunpack.c.h.b16 %v652
        %v3107 = vunpack.c.l.b16 %v653
        %v3108 = vunpack.c.h.b16 %v653
        %v3109 = vunpack.c.l.b16 %v654
        %v3110 = vunpack.c.h.b16 %v654
        %v3111 = vunpack.c.l.b16 %v655
        %v3112 = vunpack.c.h.b16 %v655
        %v3113 = vunpack.c.l.b16 %v656
        %v3114 = vunpack.c.h.b16 %v656
        %v3115 = vunpack.c.l.b16 %v657
        %v3116 = vunpack.c.h.b16 %v657
        %v3117 = vunpack.c.l.b16 %v658
        %v3118 = vunpack.c.h.b16 %v658
        %v3119 = vunpack.c.l.b16 %v659
        %v3120 = vunpack.c.h.b16 %v659
        %v3121 = vunpack.c.l.b16 %v660
        %v3122 = vunpack.c.h.b16 %v660
        %v3123 = vunpack.c.l.b16 %v661
        %v3124 = vunpack.c.h.b16 %v661
        %v3125 = vunpack.c.l.b16 %v662
        %v3126 = vunpack.c.h.b16 %v662
        %v3127 = vunpack.c.l.b16 %v663
        %v3128 = vunpack.c.h.b16 %v663
        %v3129 = vunpack.c.l.b16 %v664
        %v3130 = vunpack.c.h.b16 %v664
        %v3131 = vunpack.c.l.b16 %v665
        %v3132 = vunpack.c.h.b16 %v665
        %v3133 = vunpack.c.l.b16 %v666
        %v3134 = vunpack.c.h.b16 %v666
        %v3135 = vunpack.c.l.b16 %v667
        %v3136 = vunpack.c.h.b16 %v667
        %v3137 = vunpack.c.l.b16 %v668
        %v3138 = vunpack.c.h.b16 %v668
        %v3139 = vunpack.c.l.b16 %v669
        %v3140 = vunpack.c.h.b16 %v669
        %v3141 = vunpack.c.l.b16 %v670
        %v3142 = vunpack.c.h.b16 %v670
        %v3143 = vunpack.c.l.b16 %v671
        %v3144 = vunpack.c.h.b16 %v671
        %v3145 = vunpack.c.l.b16 %v672
        %v3146 = vunpack.c.h.b16 %v672
        %v3147 = vunpack.c.l.b16 %v673
        %v3148 = vunpack.c.h.b16 %v673
        %v3149 = vunpack.c.l.b16 %v674
        %v3150 = vunpack.c.h.b16 %v674
        %v3151 = vunpack.c.l.b16 %v675
        %v3152 = vunpack.c.h.b16 %v675
        %v3153 = vunpack.c.l.b16 %v676
        %v3154 = vunpack.c.h.b16 %v676
        %v3155 = vunpack.c.l.b16 %v677
        %v3156 = vunpack.c.h.b16 %v677
        %v3157 = vunpack.c.l.b16 %v678
        %v3158 = vunpack.c.h.b16 %v678
        %v3159 = vunpack.c.l.b16 %v679
        %v3160 = vunpack.c.h.b16 %v679
        %v3161 = vunpack.c.l.b16 %v680
        %v3162 = vunpack.c.h.b16 %v680
        %v3163 = vunpack.c.l.b16 %v681
        %v3164 = vunpack.c.h.b16 %v681
        %v3165 = vunpack.c.l.b16 %v682
        %v3166 = vunpack.c.h.b16 %v682
        %v3167 = vunpack.c.l.b16 %v683
        %v3168 = vunpack.c.h.b16 %v683
        %v3169 = vunpack.c.l.b16 %v684
        %v3170 = vunpack.c.h.b16 %v684
        %v3171 = vunpack.c.l.b16 %v685
        %v3172 = vunpack.c.h.b16 %v685
        %v3173 = vunpack.c.l.b16 %v686
        %v3174 = vunpack.c.h.b16 %v686
        %v3175 = vunpack.c.l.b16 %v687
        %v3176 = vunpack.c.h.b16 %v687
        %v3177 = vunpack.c.l.b16 %v688
        %v3178 = vunpack.c.h.b16 %v688
        %v3179 = vunpack.c.l.b16 %v689
        %v3180 = vunpack.c.h.b16 %v689
        %v3181 = vunpack.c.l.b16 %v690
        %v3182 = vunpack.c.h.b16 %v690
        %v3183 = vunpack.c.l.b16 %v691
        %v3184 = vunpack.c.h.b16 %v691
        %v3185 = vunpack.c.l.b16 %v692
        %v3186 = vunpack.c.h.b16 %v692
        %v3187 = vunpack.c.l.b16 %v693
        %v3188 = vunpack.c.h.b16 %v693
        %v3189 = vunpack.c.l.b16 %v694
        %v3190 = vunpack.c.h.b16 %v694
        %v3191 = vunpack.c.l.b16 %v695
        %v3192 = vunpack.c.h.b16 %v695
        %v3193 = vunpack.c.l.b16 %v696
        %v3194 = vunpack.c.h.b16 %v696
        %v3195 = vunpack.c.l.b16 %v697
        %v3196 = vunpack.c.h.b16 %v697
        %v3197 = vunpack.c.l.b16 %v698
        %v3198 = vunpack.c.h.b16 %v698
        %v3199 = vunpack.c.l.b16 %v699
        %v3200 = vunpack.c.h.b16 %v699
        %v3201 = vunpack.c.l.b16 %v700
        %v3202 = vunpack.c.h.b16 %v700
        %v3203 = vunpack.c.l.b16 %v701
        %v3204 = vunpack.c.h.b16 %v701
        %v3205 = vunpack.c.l.b16 %v702
        %v3206 = vunpack.c.h.b16 %v702
        %v3207 = vunpack.c.l.b16 %v703
        %v3208 = vunpack.c.h.b16 %v703
        %v3209 = vunpack.c.l.b16 %v704
        %v3210 = vunpack.c.h.b16 %v704
        %v3211 = vunpack.c.l.b16 %v705
        %v3212 = vunpack.c.h.b16 %v705
        %v3213 = vunpack.c.l.b16 %v706
        %v3214 = vunpack.c.h.b16 %v706
        %v3215 = vunpack.c.l.b16 %v707
        %v3216 = vunpack.c.h.b16 %v707
        %v3217 = vunpack.c.l.b16 %v708
        %v3218 = vunpack.c.h.b16 %v708
        %v3219 = vunpack.c.l.b16 %v709
        %v3220 = vunpack.c.h.b16 %v709
        %v3221 = vunpack.c.l.b16 %v710
        %v3222 = vunpack.c.h.b16 %v710
        %v3223 = vunpack.c.l.b16 %v711
        %v3224 = vunpack.c.h.b16 %v711
        %v3225 = vunpack.c.l.b16 %v712
        %v3226 = vunpack.c.h.b16 %v712
        %v3227 = vunpack.c.l.b16 %v713
        %v3228 = vunpack.c.h.b16 %v713
        %v3229 = vunpack.c.l.b16 %v714
        %v3230 = vunpack.c.h.b16 %v714
        %v3231 = vunpack.c.l.b16 %v715
        %v3232 = vunpack.c.h.b16 %v715
        %v3233 = vunpack.c.l.b16 %v716
        %v3234 = vunpack.c.h.b16 %v716
        %v3235 = vunpack.c.l.b16 %v717
        %v3236 = vunpack.c.h.b16 %v717
        %v3237 = vunpack.c.l.b16 %v718
        %v3238 = vunpack.c.h.b16 %v718
        %v3239 = vunpack.c.l.b16 %v719
        %v3240 = vunpack.c.h.b16 %v719
        %v3241 = vunpack.c.l.b16 %v720
        %v3242 = vunpack.c.h.b16 %v720
        %v3243 = vunpack.c.l.b16 %v721
        %v3244 = vunpack.c.h.b16 %v721
        %v3245 = vunpack.c.l.b16 %v722
        %v3246 = vunpack.c.h.b16 %v722
        %v3247 = vunpack.c.l.b16 %v723
        %v3248 = vunpack.c.h.b16 %v723
        %v3249 = vunpack.c.l.b16 %v724
        %v3250 = vunpack.c.h.b16 %v724
        %v3251 = vunpack.c.l.b16 %v725
        %v3252 = vunpack.c.h.b16 %v725
        %v3253 = vunpack.c.l.b16 %v726
        %v3254 = vunpack.c.h.b16 %v726
        %v3255 = vunpack.c.l.b16 %v727
        %v3256 = vunpack.c.h.b16 %v727
        %v3257 = vunpack.c.l.b16 %v728
        %v3258 = vunpack.c.h.b16 %v728
        %v3259 = vunpack.c.l.b16 %v729
        %v3260 = vunpack.c.h.b16 %v729
        %v3261 = vunpack.c.l.b16 %v730
        %v3262 = vunpack.c.h.b16 %v730
        %v3263 = vunpack.c.l.b16 %v731
        %v3264 = vunpack.c.h.b16 %v731
        %v3265 = vunpack.c.l.b16 %v732
        %v3266 = vunpack.c.h.b16 %v732
        %v3267 = vunpack.c.l.b16 %v733
        %v3268 = vunpack.c.h.b16 %v733
        %v3269 = vunpack.c.l.b16 %v734
        %v3270 = vunpack.c.h.b16 %v734
        %v3271 = vunpack.c.l.b16 %v735
        %v3272 = vunpack.c.h.b16 %v735
        %v3273 = vunpack.c.l.b16 %v736
        %v3274 = vunpack.c.h.b16 %v736
        %v3275 = vunpack.c.l.b16 %v737
        %v3276 = vunpack.c.h.b16 %v737
        %v3277 = vunpack.c.l.b16 %v738
        %v3278 = vunpack.c.h.b16 %v738
        %v3279 = vunpack.c.l.b16 %v739
        %v3280 = vunpack.c.h.b16 %v739
        %v3281 = vunpack.c.l.b16 %v740
        %v3282 = vunpack.c.h.b16 %v740
        %v3283 = vunpack.c.l.b16 %v741
        %v3284 = vunpack.c.h.b16 %v741
        %v3285 = vunpack.c.l.b16 %v742
        %v3286 = vunpack.c.h.b16 %v742
        %v3287 = vunpack.c.l.b16 %v743
        %v3288 = vunpack.c.h.b16 %v743
        %v3289 = vunpack.c.l.b16 %v744
        %v3290 = vunpack.c.h.b16 %v744
        %v3291 = vunpack.c.l.b16 %v745
        %v3292 = vunpack.c.h.b16 %v745
        %v3293 = vunpack.c.l.b16 %v746
        %v3294 = vunpack.c.h.b16 %v746
        %v3295 = vunpack.c.l.b16 %v747
        %v3296 = vunpack.c.h.b16 %v747
        %v3297 = vunpack.c.l.b16 %v748
        %v3298 = vunpack.c.h.b16 %v748
        %v3299 = vunpack.c.l.b16 %v749
        %v3300 = vunpack.c.h.b16 %v749
        %v3301 = vunpack.c.l.b16 %v750
        %v3302 = vunpack.c.h.b16 %v750
        %v3303 = vunpack.c.l.b16 %v751
        %v3304 = vunpack.c.h.b16 %v751
        %v3305 = vunpack.c.l.b16 %v752
        %v3306 = vunpack.c.h.b16 %v752
        %v3307 = vunpack.c.l.b16 %v753
        %v3308 = vunpack.c.h.b16 %v753
        %v3309 = vunpack.c.l.b16 %v754
        %v3310 = vunpack.c.h.b16 %v754
        %v3311 = vunpack.c.l.b16 %v755
        %v3312 = vunpack.c.h.b16 %v755
        %v3313 = vunpack.c.l.b16 %v756
        %v3314 = vunpack.c.h.b16 %v756
        %v3315 = vunpack.c.l.b16 %v757
        %v3316 = vunpack.c.h.b16 %v757
        %v3317 = vunpack.c.l.b16 %v758
        %v3318 = vunpack.c.h.b16 %v758
        %v3319 = vunpack.c.l.b16 %v759
        %v3320 = vunpack.c.h.b16 %v759
        %v3321 = vunpack.c.l.b16 %v760
        %v3322 = vunpack.c.h.b16 %v760
        %v3323 = vunpack.c.l.b16 %v761
        %v3324 = vunpack.c.h.b16 %v761
        %v3325 = vunpack.c.l.b16 %v762
        %v3326 = vunpack.c.h.b16 %v762
        %v3327 = vunpack.c.l.b16 %v763
        %v3328 = vunpack.c.h.b16 %v763
        %v3329 = vunpack.c.l.b16 %v764
        %v3330 = vunpack.c.h.b16 %v764
        %v3331 = vunpack.c.l.b16 %v765
        %v3332 = vunpack.c.h.b16 %v765
        %v3333 = vunpack.c.l.b16 %v766
        %v3334 = vunpack.c.h.b16 %v766
        %v3335 = vunpack.c.l.b16 %v767
        %v3336 = vunpack.c.h.b16 %v767
        %v3337 = vunpack.c.l.b16 %v768
        %v3338 = vunpack.c.h.b16 %v768
        %v3339 = vunpack.c.l.b16 %v769
        %v3340 = vunpack.c.h.b16 %v769
        %v3341 = vunpack.c.l.b16 %v770
        %v3342 = vunpack.c.h.b16 %v770
        %v3343 = vunpack.c.l.b16 %v771
        %v3344 = vunpack.c.h.b16 %v771
        %v3345 = vunpack.c.l.b16 %v772
        %v3346 = vunpack.c.h.b16 %v772
        %v3347 = vunpack.c.l.b16 %v773
        %v3348 = vunpack.c.h.b16 %v773
        %v3349 = vunpack.c.l.b16 %v774
        %v3350 = vunpack.c.h.b16 %v774
        %v3351 = vunpack.c.l.b16 %v775
        %v3352 = vunpack.c.h.b16 %v775
        %v3353 = vunpack.c.l.b16 %v776
        %v3354 = vunpack.c.h.b16 %v776
        %v3355 = vunpack.c.l.b16 %v777
        %v3356 = vunpack.c.h.b16 %v777
        %v3357 = vunpack.c.l.b16 %v778
        %v3358 = vunpack.c.h.b16 %v778
        %v3359 = vunpack.c.l.b16 %v779
        %v3360 = vunpack.c.h.b16 %v779
        %v3361 = vunpack.c.l.b16 %v780
        %v3362 = vunpack.c.h.b16 %v780
        %v3363 = vunpack.c.l.b16 %v781
        %v3364 = vunpack.c.h.b16 %v781
        %v3365 = vunpack.c.l.b16 %v782
        %v3366 = vunpack.c.h.b16 %v782
        %v3367 = vunpack.c.l.b16 %v783
        %v3368 = vunpack.c.h.b16 %v783
        %v3369 = vunpack.c.l.b16 %v784
        %v3370 = vunpack.c.h.b16 %v784
        %v3371 = vunpack.c.l.b16 %v785
        %v3372 = vunpack.c.h.b16 %v785
        %v3373 = vunpack.c.l.b16 %v786
        %v3374 = vunpack.c.h.b16 %v786
        %v3375 = vunpack.c.l.b16 %v787
        %v3376 = vunpack.c.h.b16 %v787
        %v3377 = vunpack.c.l.b16 %v788
        %v3378 = vunpack.c.h.b16 %v788
        %v3379 = vunpack.c.l.b16 %v789
        %v3380 = vunpack.c.h.b16 %v789
        %v3381 = vunpack.c.l.b16 %v790
        %v3382 = vunpack.c.h.b16 %v790
        %v3383 = vunpack.c.l.b16 %v791
        %v3384 = vunpack.c.h.b16 %v791
        %v3385 = vunpack.c.l.b16 %v792
        %v3386 = vunpack.c.h.b16 %v792
        %v3387 = vunpack.c.l.b16 %v793
        %v3388 = vunpack.c.h.b16 %v793
        %v3389 = vunpack.c.l.b16 %v794
        %v3390 = vunpack.c.h.b16 %v794
        %v3391 = vunpack.c.l.b16 %v795
        %v3392 = vunpack.c.h.b16 %v795
        %v3393 = vunpack.c.l.b16 %v796
        %v3394 = vunpack.c.h.b16 %v796
        %v3395 = vunpack.c.l.b16 %v797
        %v3396 = vunpack.c.h.b16 %v797
        %v3397 = vunpack.c.l.b16 %v798
        %v3398 = vunpack.c.h.b16 %v798
        %v3399 = vunpack.c.l.b16 %v799
        %v3400 = vunpack.c.h.b16 %v799
        %v3401 = vunpack.c.l.b16 %v800
        %v3402 = vunpack.c.h.b16 %v800
        %v3403 = vunpack.c.l.b16 %v801
        %v3404 = vunpack.c.h.b16 %v801
        %v3405 = vunpack.c.l.b16 %v802
        %v3406 = vunpack.c.h.b16 %v802
        %v3407 = vunpack.c.l.b16 %v803
        %v3408 = vunpack.c.h.b16 %v803
        %v3409 = vunpack.c.l.b16 %v804
        %v3410 = vunpack.c.h.b16 %v804
        %v3411 = vunpack.c.l.b16 %v805
        %v3412 = vunpack.c.h.b16 %v805
        %v3413 = vunpack.c.l.b16 %v806
        %v3414 = vunpack.c.h.b16 %v806
        %v3415 = vunpack.c.l.b16 %v807
        %v3416 = vunpack.c.h.b16 %v807
        %v3417 = vunpack.c.l.b16 %v808
        %v3418 = vunpack.c.h.b16 %v808
        %v3419 = vunpack.c.l.b16 %v809
        %v3420 = vunpack.c.h.b16 %v809
        %v3421 = vunpack.c.l.b16 %v810
        %v3422 = vunpack.c.h.b16 %v810
        %v3423 = vunpack.c.l.b16 %v811
        %v3424 = vunpack.c.h.b16 %v811
        %v3425 = vunpack.c.l.b16 %v812
        %v3426 = vunpack.c.h.b16 %v812
        %v3427 = vunpack.c.l.b16 %v813
        %v3428 = vunpack.c.h.b16 %v813
        %v3429 = vunpack.c.l.b16 %v814
        %v3430 = vunpack.c.h.b16 %v814
        %v3431 = vunpack.c.l.b16 %v815
        %v3432 = vunpack.c.h.b16 %v815
        %v3433 = vunpack.c.l.b16 %v816
        %v3434 = vunpack.c.h.b16 %v816
        %v3435 = vunpack.c.l.b16 %v817
        %v3436 = vunpack.c.h.b16 %v817
        %v3437 = vunpack.c.l.b16 %v818
        %v3438 = vunpack.c.h.b16 %v818
        %v3439 = vunpack.c.l.b16 %v819
        %v3440 = vunpack.c.h.b16 %v819
        %v3441 = vunpack.c.l.b16 %v820
        %v3442 = vunpack.c.h.b16 %v820
        %v3443 = vunpack.c.l.b16 %v821
        %v3444 = vunpack.c.h.b16 %v821
        %v3445 = vunpack.c.l.b16 %v822
        %v3446 = vunpack.c.h.b16 %v822
        %v3447 = vunpack.c.l.b16 %v823
        %v3448 = vunpack.c.h.b16 %v823
        %v3449 = vunpack.c.l.b16 %v824
        %v3450 = vunpack.c.h.b16 %v824
        %v3451 = vunpack.c.l.b16 %v825
        %v3452 = vunpack.c.h.b16 %v825
        %v3453 = vunpack.c.l.b16 %v826
        %v3454 = vunpack.c.h.b16 %v826
        %v3455 = vunpack.c.l.b16 %v827
        %v3456 = vunpack.c.h.b16 %v827
        %v3457 = vunpack.c.l.b16 %v828
        %v3458 = vunpack.c.h.b16 %v828
        %v3459 = vunpack.c.l.b16 %v829
        %v3460 = vunpack.c.h.b16 %v829
        %v3461 = vunpack.c.l.b16 %v830
        %v3462 = vunpack.c.h.b16 %v830
        %v3463 = vunpack.c.l.b16 %v831
        %v3464 = vunpack.c.h.b16 %v831
        %v3465 = vunpack.c.l.b16 %v832
        %v3466 = vunpack.c.h.b16 %v832
        %v3467 = vunpack.c.l.b16 %v833
        %v3468 = vunpack.c.h.b16 %v833
        %v3469 = vunpack.c.l.b16 %v834
        %v3470 = vunpack.c.h.b16 %v834
        %v3471 = vunpack.c.l.b16 %v835
        %v3472 = vunpack.c.h.b16 %v835
        %v3473 = vunpack.c.l.b16 %v836
        %v3474 = vunpack.c.h.b16 %v836
        %v3475 = vunpack.c.l.b16 %v837
        %v3476 = vunpack.c.h.b16 %v837
        %v3477 = vunpack.c.l.b16 %v838
        %v3478 = vunpack.c.h.b16 %v838
        %v3479 = vunpack.c.l.b16 %v839
        %v3480 = vunpack.c.h.b16 %v839
        %v3481 = vunpack.c.l.b16 %v840
        %v3482 = vunpack.c.h.b16 %v840
        %v3483 = vunpack.c.l.b16 %v841
        %v3484 = vunpack.c.h.b16 %v841
        %v3485 = vunpack.c.l.b16 %v842
        %v3486 = vunpack.c.h.b16 %v842
        %v3487 = vunpack.c.l.b16 %v843
        %v3488 = vunpack.c.h.b16 %v843
        %v3489 = vunpack.c.l.b16 %v844
        %v3490 = vunpack.c.h.b16 %v844
        %v3491 = vunpack.c.l.b16 %v845
        %v3492 = vunpack.c.h.b16 %v845
        %v3493 = vunpack.c.l.b16 %v846
        %v3494 = vunpack.c.h.b16 %v846
        %v3495 = vunpack.c.l.b16 %v847
        %v3496 = vunpack.c.h.b16 %v847
        %v3497 = vunpack.c.l.b16 %v848
        %v3498 = vunpack.c.h.b16 %v848
        %v3499 = vunpack.c.l.b16 %v849
        %v3500 = vunpack.c.h.b16 %v849
        %v3501 = vunpack.c.l.b16 %v850
        %v3502 = vunpack.c.h.b16 %v850
        %v3503 = vunpack.c.l.b16 %v851
        %v3504 = vunpack.c.h.b16 %v851
        %v3505 = vunpack.c.l.b16 %v852
        %v3506 = vunpack.c.h.b16 %v852
        %v3507 = vunpack.c.l.b16 %v853
        %v3508 = vunpack.c.h.b16 %v853
        %v3509 = vunpack.c.l.b16 %v854
        %v3510 = vunpack.c.h.b16 %v854
        %v3511 = vunpack.c.l.b16 %v855
        %v3512 = vunpack.c.h.b16 %v855
        %v3513 = vunpack.c.l.b16 %v856
        %v3514 = vunpack.c.h.b16 %v856
        %v3515 = vunpack.c.l.b16 %v857
        %v3516 = vunpack.c.h.b16 %v857
        %v3517 = vunpack.c.l.b16 %v858
        %v3518 = vunpack.c.h.b16 %v858
        %v3519 = vunpack.c.l.b16 %v859
        %v3520 = vunpack.c.h.b16 %v859
        %v3521 = vunpack.c.l.b16 %v860
        %v3522 = vunpack.c.h.b16 %v860
        %v3523 = vunpack.c.l.b16 %v861
        %v3524 = vunpack.c.h.b16 %v861
        %v3525 = vunpack.c.l.b16 %v862
        %v3526 = vunpack.c.h.b16 %v862
        %v3527 = vunpack.c.l.b16 %v863
        %v3528 = vunpack.c.h.b16 %v863
        %v3529 = vunpack.c.l.b16 %v864
        %v3530 = vunpack.c.h.b16 %v864
        %v3531 = vunpack.c.l.b16 %v865
        %v3532 = vunpack.c.h.b16 %v865
        %v3533 = vunpack.c.l.b16 %v866
        %v3534 = vunpack.c.h.b16 %v866
        %v3535 = vunpack.c.l.b16 %v867
        %v3536 = vunpack.c.h.b16 %v867
        %v3537 = vunpack.c.l.b16 %v868
        %v3538 = vunpack.c.h.b16 %v868
        %v3539 = vunpack.c.l.b16 %v869
        %v3540 = vunpack.c.h.b16 %v869
        %v3541 = vunpack.c.l.b16 %v870
        %v3542 = vunpack.c.h.b16 %v870
        %v3543 = vunpack.c.l.b16 %v871
        %v3544 = vunpack.c.h.b16 %v871
        %v3545 = vunpack.c.l.b16 %v872
        %v3546 = vunpack.c.h.b16 %v872
        %v3547 = vunpack.c.l.b16 %v873
        %v3548 = vunpack.c.h.b16 %v873
        %v3549 = vunpack.c.l.b16 %v874
        %v3550 = vunpack.c.h.b16 %v874
        %v3551 = vunpack.c.l.b16 %v875
        %v3552 = vunpack.c.h.b16 %v875
        %v3553 = vunpack.c.l.b16 %v876
        %v3554 = vunpack.c.h.b16 %v876
        %v3555 = vunpack.c.l.b16 %v877
        %v3556 = vunpack.c.h.b16 %v877
        %v3557 = vunpack.c.l.b16 %v878
        %v3558 = vunpack.c.h.b16 %v878
        %v3559 = vunpack.c.l.b16 %v879
        %v3560 = vunpack.c.h.b16 %v879
        %v3561 = vunpack.c.l.b16 %v880
        %v3562 = vunpack.c.h.b16 %v880
        %v3563 = vunpack.c.l.b16 %v881
        %v3564 = vunpack.c.h.b16 %v881
        %v3565 = vunpack.c.l.b16 %v882
        %v3566 = vunpack.c.h.b16 %v882
        %v3567 = vunpack.c.l.b16 %v883
        %v3568 = vunpack.c.h.b16 %v883
        %v3569 = vunpack.c.l.b16 %v884
        %v3570 = vunpack.c.h.b16 %v884
        %v3571 = vunpack.c.l.b16 %v885
        %v3572 = vunpack.c.h.b16 %v885
        %v3573 = vunpack.c.l.b16 %v886
        %v3574 = vunpack.c.h.b16 %v886
        %v3575 = vunpack.c.l.b16 %v887
        %v3576 = vunpack.c.h.b16 %v887
        %v3577 = vunpack.c.l.b16 %v888
        %v3578 = vunpack.c.h.b16 %v888
        %v3579 = vunpack.c.l.b16 %v889
        %v3580 = vunpack.c.h.b16 %v889
        %v3581 = vunpack.c.l.b16 %v890
        %v3582 = vunpack.c.h.b16 %v890
        %v3583 = vunpack.c.l.b16 %v891
        %v3584 = vunpack.c.h.b16 %v891
        %v3585 = vunpack.c.l.b16 %v892
        %v3586 = vunpack.c.h.b16 %v892
        %v3587 = vunpack.c.l.b16 %v893
        %v3588 = vunpack.c.h.b16 %v893
        %v3589 = vunpack.c.l.b16 %v894
        %v3590 = vunpack.c.h.b16 %v894
        %v3591 = vunpack.c.l.b16 %v895
        %v3592 = vunpack.c.h.b16 %v895
        %v3593 = vunpack.c.l.b16 %v896
        %v3594 = vunpack.c.h.b16 %v896
        %v3595 = vunpack.c.l.b16 %v897
        %v3596 = vunpack.c.h.b16 %v897
        %v3597 = vunpack.c.l.b16 %v898
        %v3598 = vunpack.c.h.b16 %v898
        %v3599 = vunpack.c.l.b16 %v899
        %v3600 = vunpack.c.h.b16 %v899
        %v3601 = vunpack.c.l.b16 %v900
        %v3602 = vunpack.c.h.b16 %v900
        %v3603 = vunpack.c.l.b16 %v901
        %v3604 = vunpack.c.h.b16 %v901
        %v3605 = vunpack.c.l.b16 %v902
        %v3606 = vunpack.c.h.b16 %v902
        %v3607 = vunpack.c.l.b16 %v903
        %v3608 = vunpack.c.h.b16 %v903
        %v3609 = vunpack.c.l.b16 %v904
        %v3610 = vunpack.c.h.b16 %v904
        %v3611 = vunpack.c.l.b16 %v905
        %v3612 = vunpack.c.h.b16 %v905
        %v3613 = vunpack.c.l.b16 %v906
        %v3614 = vunpack.c.h.b16 %v906
        %v3615 = vunpack.c.l.b16 %v907
        %v3616 = vunpack.c.h.b16 %v907
        %v3617 = vunpack.c.l.b16 %v908
        %v3618 = vunpack.c.h.b16 %v908
        %v3619 = vunpack.c.l.b16 %v909
        %v3620 = vunpack.c.h.b16 %v909
        %v3621 = vunpack.c.l.b16 %v910
        %v3622 = vunpack.c.h.b16 %v910
        %v3623 = vunpack.c.l.b16 %v911
        %v3624 = vunpack.c.h.b16 %v911
        %v3625 = vunpack.c.l.b16 %v912
        %v3626 = vunpack.c.h.b16 %v912
        %v3627 = vunpack.c.l.b16 %v913
        %v3628 = vunpack.c.h.b16 %v913
        %v3629 = vunpack.c.l.b16 %v914
        %v3630 = vunpack.c.h.b16 %v914
        %v3631 = vunpack.c.l.b16 %v915
        %v3632 = vunpack.c.h.b16 %v915
        %v3633 = vunpack.c.l.b16 %v916
        %v3634 = vunpack.c.h.b16 %v916
        %v3635 = vunpack.c.l.b16 %v917
        %v3636 = vunpack.c.h.b16 %v917
        %v3637 = vunpack.c.l.b16 %v918
        %v3638 = vunpack.c.h.b16 %v918
        %v3639 = vunpack.c.l.b16 %v919
        %v3640 = vunpack.c.h.b16 %v919
        %v3641 = vunpack.c.l.b16 %v920
        %v3642 = vunpack.c.h.b16 %v920
        %v3643 = vunpack.c.l.b16 %v921
        %v3644 = vunpack.c.h.b16 %v921
        %v3645 = vunpack.c.l.b16 %v922
        %v3646 = vunpack.c.h.b16 %v922
        %v3647 = vunpack.c.l.b16 %v923
        %v3648 = vunpack.c.h.b16 %v923
        %v3649 = vunpack.c.l.b16 %v924
        %v3650 = vunpack.c.h.b16 %v924
        %v3651 = vunpack.c.l.b16 %v925
        %v3652 = vunpack.c.h.b16 %v925
        %v3653 = vunpack.c.l.b16 %v926
        %v3654 = vunpack.c.h.b16 %v926
        %v3655 = vunpack.c.l.b16 %v927
        %v3656 = vunpack.c.h.b16 %v927
        %v3657 = vunpack.c.l.b16 %v928
        %v3658 = vunpack.c.h.b16 %v928
        %v3659 = vunpack.c.l.b16 %v929
        %v3660 = vunpack.c.h.b16 %v929
        %v3661 = vunpack.c.l.b16 %v930
        %v3662 = vunpack.c.h.b16 %v930
        %v3663 = vunpack.c.l.b16 %v931
        %v3664 = vunpack.c.h.b16 %v931
        %v3665 = vunpack.c.l.b16 %v932
        %v3666 = vunpack.c.h.b16 %v932
        %v3667 = vunpack.c.l.b16 %v933
        %v3668 = vunpack.c.h.b16 %v933
        %v3669 = vunpack.c.l.b16 %v934
        %v3670 = vunpack.c.h.b16 %v934
        %v3671 = vunpack.c.l.b16 %v935
        %v3672 = vunpack.c.h.b16 %v935
        %v3673 = vunpack.c.l.b16 %v936
        %v3674 = vunpack.c.h.b16 %v936
        %v3675 = vunpack.c.l.b16 %v937
        %v3676 = vunpack.c.h.b16 %v937
        %v3677 = vunpack.c.l.b16 %v938
        %v3678 = vunpack.c.h.b16 %v938
        %v3679 = vunpack.c.l.b16 %v939
        %v3680 = vunpack.c.h.b16 %v939
        %v3681 = vunpack.c.l.b16 %v940
        %v3682 = vunpack.c.h.b16 %v940
        %v3683 = vunpack.c.l.b16 %v941
        %v3684 = vunpack.c.h.b16 %v941
        %v3685 = vunpack.c.l.b16 %v942
        %v3686 = vunpack.c.h.b16 %v942
        %v3687 = vunpack.c.l.b16 %v943
        %v3688 = vunpack.c.h.b16 %v943
        %v3689 = vunpack.c.l.b16 %v944
        %v3690 = vunpack.c.h.b16 %v944
        %v3691 = vunpack.c.l.b16 %v945
        %v3692 = vunpack.c.h.b16 %v945
        %v3693 = vunpack.c.l.b16 %v946
        %v3694 = vunpack.c.h.b16 %v946
        %v3695 = vunpack.c.l.b16 %v947
        %v3696 = vunpack.c.h.b16 %v947
        %v3697 = vunpack.c.l.b16 %v948
        %v3698 = vunpack.c.h.b16 %v948
        %v3699 = vunpack.c.l.b16 %v949
        %v3700 = vunpack.c.h.b16 %v949
        %v3701 = vunpack.c.l.b16 %v950
        %v3702 = vunpack.c.h.b16 %v950
        %v3703 = vunpack.c.l.b16 %v951
        %v3704 = vunpack.c.h.b16 %v951
        %v3705 = vunpack.c.l.b16 %v952
        %v3706 = vunpack.c.h.b16 %v952
        %v3707 = vunpack.c.l.b16 %v953
        %v3708 = vunpack.c.h.b16 %v953
        %v3709 = vunpack.c.l.b16 %v954
        %v3710 = vunpack.c.h.b16 %v954
        %v3711 = vunpack.c.l.b16 %v955
        %v3712 = vunpack.c.h.b16 %v955
        %v3713 = vunpack.c.l.b16 %v956
        %v3714 = vunpack.c.h.b16 %v956
        %v3715 = vunpack.c.l.b16 %v957
        %v3716 = vunpack.c.h.b16 %v957
        %v3717 = vunpack.c.l.b16 %v958
        %v3718 = vunpack.c.h.b16 %v958
        %v3719 = vunpack.c.l.b16 %v959
        %v3720 = vunpack.c.h.b16 %v959
        %v3721 = vunpack.c.l.b16 %v960
        %v3722 = vunpack.c.h.b16 %v960
        %v3723 = vunpack.c.l.b16 %v961
        %v3724 = vunpack.c.h.b16 %v961
        %v3725 = vunpack.c.l.b16 %v962
        %v3726 = vunpack.c.h.b16 %v962
        %v3727 = vunpack.c.l.b16 %v963
        %v3728 = vunpack.c.h.b16 %v963
        %v3729 = vunpack.c.l.b16 %v964
        %v3730 = vunpack.c.h.b16 %v964
        %v3731 = vunpack.c.l.b16 %v965
        %v3732 = vunpack.c.h.b16 %v965
        %v3733 = vunpack.c.l.b16 %v966
        %v3734 = vunpack.c.h.b16 %v966
        %v3735 = vunpack.c.l.b16 %v967
        %v3736 = vunpack.c.h.b16 %v967
        %v3737 = vunpack.c.l.b16 %v968
        %v3738 = vunpack.c.h.b16 %v968
        %v3739 = vunpack.c.l.b16 %v969
        %v3740 = vunpack.c.h.b16 %v969
        %v3741 = vunpack.c.l.b16 %v970
        %v3742 = vunpack.c.h.b16 %v970
        %v3743 = vunpack.c.l.b16 %v971
        %v3744 = vunpack.c.h.b16 %v971
        %v3745 = vunpack.c.l.b16 %v972
        %v3746 = vunpack.c.h.b16 %v972
        %v3747 = vunpack.c.l.b16 %v973
        %v3748 = vunpack.c.h.b16 %v973
        %v3749 = vunpack.c.l.b16 %v974
        %v3750 = vunpack.c.h.b16 %v974
        %v3751 = vunpack.c.l.b16 %v975
        %v3752 = vunpack.c.h.b16 %v975
        %v3753 = vunpack.c.l.b16 %v976
        %v3754 = vunpack.c.h.b16 %v976
        %v3755 = vunpack.c.l.b16 %v977
        %v3756 = vunpack.c.h.b16 %v977
        %v3757 = vunpack.c.l.b16 %v978
        %v3758 = vunpack.c.h.b16 %v978
        %v3759 = vunpack.c.l.b16 %v979
        %v3760 = vunpack.c.h.b16 %v979
        %v3761 = vunpack.c.l.b16 %v980
        %v3762 = vunpack.c.h.b16 %v980
        %v3763 = vunpack.c.l.b16 %v981
        %v3764 = vunpack.c.h.b16 %v981
        %v3765 = vunpack.c.l.b16 %v982
        %v3766 = vunpack.c.h.b16 %v982
        %v3767 = vunpack.c.l.b16 %v983
        %v3768 = vunpack.c.h.b16 %v983
        %v3769 = vunpack.c.l.b16 %v984
        %v3770 = vunpack.c.h.b16 %v984
        %v3771 = vunpack.c.l.b16 %v985
        %v3772 = vunpack.c.h.b16 %v985
        %v3773 = vunpack.c.l.b16 %v986
        %v3774 = vunpack.c.h.b16 %v986
        %v3775 = vunpack.c.l.b16 %v987
        %v3776 = vunpack.c.h.b16 %v987
        %v3777 = vunpack.c.l.b16 %v988
        %v3778 = vunpack.c.h.b16 %v988
        %v3779 = vunpack.c.l.b16 %v989
        %v3780 = vunpack.c.h.b16 %v989
        %v3781 = vunpack.c.l.b16 %v990
        %v3782 = vunpack.c.h.b16 %v990
        %v3783 = vunpack.c.l.b16 %v991
        %v3784 = vunpack.c.h.b16 %v991
        %v3785 = vunpack.c.l.b16 %v992
        %v3786 = vunpack.c.h.b16 %v992
        %v3787 = vunpack.c.l.b16 %v993
        %v3788 = vunpack.c.h.b16 %v993
        %v3789 = vunpack.c.l.b16 %v994
        %v3790 = vunpack.c.h.b16 %v994
        %v3791 = vunpack.c.l.b16 %v995
        %v3792 = vunpack.c.h.b16 %v995
        %v3793 = vunpack.c.l.b16 %v996
        %v3794 = vunpack.c.h.b16 %v996
        %v3795 = vunpack.c.l.b16 %v997
        %v3796 = vunpack.c.h.b16 %v997
        %v3797 = vunpack.c.l.b16 %v998
        %v3798 = vunpack.c.h.b16 %v998
        %v3799 = vunpack.c.l.b16 %v999
        %v3800 = vunpack.c.h.b16 %v999
        %v3801 = vunpack.c.l.b16 %v1000
        %v3802 = vunpack.c.h.b16 %v1000
        %v3803 = vunpack.c.l.b16 %v1001
        %v3804 = vunpack.c.h.b16 %v1001
        %v3805 = vunpack.c.l.b16 %v1002
        %v3806 = vunpack.c.h.b16 %v1002
        %v3807 = vunpack.c.l.b16 %v1003
        %v3808 = vunpack.c.h.b16 %v1003
        %v3809 = vunpack.c.l.b16 %v1004
        %v3810 = vunpack.c.h.b16 %v1004
        %v3811 = vunpack.c.l.b16 %v1005
        %v3812 = vunpack.c.h.b16 %v1005
        %v3813 = vunpack.c.l.b16 %v1006
        %v3814 = vunpack.c.h.b16 %v1006
        %v3815 = vunpack.c.l.b16 %v1007
        %v3816 = vunpack.c.h.b16 %v1007
        %v3817 = vunpack.c.l.b16 %v1008
        %v3818 = vunpack.c.h.b16 %v1008
        %v3819 = vunpack.c.l.b16 %v1009
        %v3820 = vunpack.c.h.b16 %v1009
        %v3821 = vunpack.c.l.b16 %v1010
        %v3822 = vunpack.c.h.b16 %v1010
        %v3823 = vunpack.c.l.b16 %v1011
        %v3824 = vunpack.c.h.b16 %v1011
        %v3825 = vunpack.c.l.b16 %v1012
        %v3826 = vunpack.c.h.b16 %v1012
        %v3827 = vunpack.c.l.b16 %v1013
        %v3828 = vunpack.c.h.b16 %v1013
        %v3829 = vunpack.c.l.b16 %v1014
        %v3830 = vunpack.c.h.b16 %v1014
        %v3831 = vunpack.c.l.b16 %v1015
        %v3832 = vunpack.c.h.b16 %v1015
        %v3833 = vunpack.c.l.b16 %v1016
        %v3834 = vunpack.c.h.b16 %v1016
        %v3835 = vunpack.c.l.b16 %v1017
        %v3836 = vunpack.c.h.b16 %v1017
        %v3837 = vunpack.c.l.b16 %v1018
        %v3838 = vunpack.c.h.b16 %v1018
        %v3839 = vunpack.c.l.b16 %v1019
        %v3840 = vunpack.c.h.b16 %v1019
        %v3841 = vunpack.c.l.b16 %v1020
        %v3842 = vunpack.c.h.b16 %v1020
        %v3843 = vunpack.c.l.b16 %v1021
        %v3844 = vunpack.c.h.b16 %v1021
        %v3845 = vunpack.c.l.b16 %v1022
        %v3846 = vunpack.c.h.b16 %v1022
        %v3847 = vunpack.c.l.b16 %v1023
        %v3848 = vunpack.c.h.b16 %v1023
        %v3849 = vunpack.c.l.b16 %v1024
        %v3850 = vunpack.c.h.b16 %v1024
        %v3851 = vunpack.c.l.b16 %v1025
        %v3852 = vunpack.c.h.b16 %v1025
        %v3853 = vunpack.c.l.b16 %v1026
        %v3854 = vunpack.c.h.b16 %v1026
        %v3855 = vunpack.c.l.b16 %v1027
        %v3856 = vunpack.c.h.b16 %v1027
        %v3857 = vunpack.c.l.b16 %v1028
        %v3858 = vunpack.c.h.b16 %v1028
        %v3859 = vunpack.c.l.b16 %v1029
        %v3860 = vunpack.c.h.b16 %v1029
        %v3861 = vunpack.c.l.b16 %v1030
        %v3862 = vunpack.c.h.b16 %v1030
        %v3863 = vunpack.c.l.b16 %v1031
        %v3864 = vunpack.c.h.b16 %v1031
        %v3865 = vunpack.c.l.b16 %v1032
        %v3866 = vunpack.c.h.b16 %v1032
        %v3867 = vunpack.c.l.b16 %v1033
        %v3868 = vunpack.c.h.b16 %v1033
        %v3869 = vunpack.c.l.b16 %v1034
        %v3870 = vunpack.c.h.b16 %v1034
        %v3871 = vunpack.c.l.b16 %v1035
        %v3872 = vunpack.c.h.b16 %v1035
        %v3873 = vunpack.c.l.b16 %v1036
        %v3874 = vunpack.c.h.b16 %v1036
        %v3875 = vunpack.c.l.b16 %v1037
        %v3876 = vunpack.c.h.b16 %v1037
        %v3877 = vunpack.c.l.b16 %v1038
        %v3878 = vunpack.c.h.b16 %v1038
        %v3879 = vunpack.c.l.b16 %v1039
        %v3880 = vunpack.c.h.b16 %v1039
        %v3881 = vunpack.c.l.b16 %v1040
        %v3882 = vunpack.c.h.b16 %v1040
        %v3883 = vunpack.c.l.b16 %v1041
        %v3884 = vunpack.c.h.b16 %v1041
        %v3885 = vunpack.c.l.b16 %v1042
        %v3886 = vunpack.c.h.b16 %v1042
        %v3887 = vunpack.c.l.b16 %v1043
        %v3888 = vunpack.c.h.b16 %v1043
        %v3889 = vunpack.c.l.b16 %v1044
        %v3890 = vunpack.c.h.b16 %v1044
        %v3891 = vunpack.c.l.b16 %v1045
        %v3892 = vunpack.c.h.b16 %v1045
        %v3893 = vunpack.c.l.b16 %v1046
        %v3894 = vunpack.c.h.b16 %v1046
        %v3895 = vunpack.c.l.b16 %v1047
        %v3896 = vunpack.c.h.b16 %v1047
        %v3897 = vunpack.c.l.b16 %v1048
        %v3898 = vunpack.c.h.b16 %v1048
        %v3899 = vunpack.c.l.b16 %v1049
        %v3900 = vunpack.c.h.b16 %v1049
        %v3901 = vunpack.c.l.b16 %v1050
        %v3902 = vunpack.c.h.b16 %v1050
        %v3903 = vunpack.c.l.b16 %v1051
        %v3904 = vunpack.c.h.b16 %v1051
        %v3905 = vunpack.c.l.b16 %v1052
        %v3906 = vunpack.c.h.b16 %v1052
        %v3907 = vunpack.c.l.b16 %v1053
        %v3908 = vunpack.c.h.b16 %v1053
        %v3909 = vunpack.c.l.b16 %v1054
        %v3910 = vunpack.c.h.b16 %v1054
        %v3911 = vunpack.c.l.b16 %v1055
        %v3912 = vunpack.c.h.b16 %v1055
        %v3913 = vunpack.c.l.b16 %v1056
        %v3914 = vunpack.c.h.b16 %v1056
        %v3915 = vunpack.c.l.b16 %v1057
        %v3916 = vunpack.c.h.b16 %v1057
        %v3917 = vunpack.c.l.b16 %v1058
        %v3918 = vunpack.c.h.b16 %v1058
        %v3919 = vunpack.c.l.b16 %v1059
        %v3920 = vunpack.c.h.b16 %v1059
        %v3921 = vunpack.c.l.b16 %v1060
        %v3922 = vunpack.c.h.b16 %v1060
        %v3923 = vunpack.c.l.b16 %v1061
        %v3924 = vunpack.c.h.b16 %v1061
        %v3925 = vunpack.c.l.b16 %v1062
        %v3926 = vunpack.c.h.b16 %v1062
        %v3927 = vunpack.c.l.b16 %v1063
        %v3928 = vunpack.c.h.b16 %v1063
        %v3929 = vunpack.c.l.b16 %v1064
        %v3930 = vunpack.c.h.b16 %v1064
        %v3931 = vunpack.c.l.b16 %v1065
        %v3932 = vunpack.c.h.b16 %v1065
        %v3933 = vunpack.c.l.b16 %v1066
        %v3934 = vunpack.c.h.b16 %v1066
        %v3935 = vunpack.c.l.b16 %v1067
        %v3936 = vunpack.c.h.b16 %v1067
        %v3937 = vunpack.c.l.b16 %v1068
        %v3938 = vunpack.c.h.b16 %v1068
        %v3939 = vunpack.c.l.b16 %v1069
        %v3940 = vunpack.c.h.b16 %v1069
        %v3941 = vunpack.c.l.b16 %v1070
        %v3942 = vunpack.c.h.b16 %v1070
        %v3943 = vunpack.c.l.b16 %v1071
        %v3944 = vunpack.c.h.b16 %v1071
        %v3945 = vunpack.c.l.b16 %v1072
        %v3946 = vunpack.c.h.b16 %v1072
        %v3947 = vunpack.c.l.b16 %v1073
        %v3948 = vunpack.c.h.b16 %v1073
        %v3949 = vunpack.c.l.b16 %v1074
        %v3950 = vunpack.c.h.b16 %v1074
        %v3951 = vunpack.c.l.b16 %v1075
        %v3952 = vunpack.c.h.b16 %v1075
        %v3953 = vunpack.c.l.b16 %v1076
        %v3954 = vunpack.c.h.b16 %v1076
        %v3955 = vunpack.c.l.b16 %v1077
        %v3956 = vunpack.c.h.b16 %v1077
        %v3957 = vunpack.c.l.b16 %v1078
        %v3958 = vunpack.c.h.b16 %v1078
        %v3959 = vunpack.c.l.b16 %v1079
        %v3960 = vunpack.c.h.b16 %v1079
        %v3961 = vunpack.c.l.b16 %v1080
        %v3962 = vunpack.c.h.b16 %v1080
        %v3963 = vunpack.c.l.b16 %v1081
        %v3964 = vunpack.c.h.b16 %v1081
        %v3965 = vunpack.c.l.b16 %v1082
        %v3966 = vunpack.c.h.b16 %v1082
        %v3967 = vunpack.c.l.b16 %v1083
        %v3968 = vunpack.c.h.b16 %v1083
        %v3969 = vunpack.c.l.b16 %v1084
        %v3970 = vunpack.c.h.b16 %v1084
        %v3971 = vunpack.c.l.b16 %v1085
        %v3972 = vunpack.c.h.b16 %v1085
        %v3973 = vunpack.c.l.b16 %v1086
        %v3974 = vunpack.c.h.b16 %v1086
        %v3975 = vunpack.c.l.b16 %v1087
        %v3976 = vunpack.c.h.b16 %v1087
        %v3977 = vunpack.c.l.b16 %v1088
        %v3978 = vunpack.c.h.b16 %v1088
        %v3979 = vunpack.c.l.b16 %v1089
        %v3980 = vunpack.c.h.b16 %v1089
        %v3981 = vunpack.c.l.b16 %v1090
        %v3982 = vunpack.c.h.b16 %v1090
        %v3983 = vunpack.c.l.b16 %v1091
        %v3984 = vunpack.c.h.b16 %v1091
        %v3985 = vunpack.c.l.b16 %v1092
        %v3986 = vunpack.c.h.b16 %v1092
        %v3987 = vunpack.c.l.b16 %v1093
        %v3988 = vunpack.c.h.b16 %v1093
        %v3989 = vunpack.c.l.b16 %v1094
        %v3990 = vunpack.c.h.b16 %v1094
        %v3991 = vunpack.c.l.b16 %v1095
        %v3992 = vunpack.c.h.b16 %v1095
        %v3993 = vunpack.c.l.b16 %v1096
        %v3994 = vunpack.c.h.b16 %v1096
        %v3995 = vunpack.c.l.b16 %v1097
        %v3996 = vunpack.c.h.b16 %v1097
        %v3997 = vunpack.c.l.b16 %v1098
        %v3998 = vunpack.c.h.b16 %v1098
        %v3999 = vunpack.c.l.b16 %v1099
        %v4000 = vunpack.c.h.b16 %v1099
        %v4001 = vunpack.c.l.b16 %v1100
        %v4002 = vunpack.c.h.b16 %v1100
        %v4003 = vunpack.c.l.b16 %v1101
        %v4004 = vunpack.c.h.b16 %v1101
        %v4005 = vunpack.c.l.b16 %v1102
        %v4006 = vunpack.c.h.b16 %v1102
        %v4007 = vunpack.c.l.b16 %v1103
        %v4008 = vunpack.c.h.b16 %v1103
        %v4009 = vunpack.c.l.b16 %v1104
        %v4010 = vunpack.c.h.b16 %v1104
        %v4011 = vunpack.c.l.b16 %v1105
        %v4012 = vunpack.c.h.b16 %v1105
        %v4013 = vunpack.c.l.b16 %v1106
        %v4014 = vunpack.c.h.b16 %v1106
        %v4015 = vunpack.c.l.b16 %v1107
        %v4016 = vunpack.c.h.b16 %v1107
        %v4017 = vunpack.c.l.b16 %v1108
        %v4018 = vunpack.c.h.b16 %v1108
        %v4019 = vunpack.c.l.b16 %v1109
        %v4020 = vunpack.c.h.b16 %v1109
        %v4021 = vunpack.c.l.b16 %v1110
        %v4022 = vunpack.c.h.b16 %v1110
        %v4023 = vunpack.c.l.b16 %v1111
        %v4024 = vunpack.c.h.b16 %v1111
        %v4025 = vunpack.c.l.b16 %v1112
        %v4026 = vunpack.c.h.b16 %v1112
        %v4027 = vunpack.c.l.b16 %v1113
        %v4028 = vunpack.c.h.b16 %v1113
        %v4029 = vunpack.c.l.b16 %v1114
        %v4030 = vunpack.c.h.b16 %v1114
        %v4031 = vunpack.c.l.b16 %v1115
        %v4032 = vunpack.c.h.b16 %v1115
        %v4033 = vunpack.c.l.b16 %v1116
        %v4034 = vunpack.c.h.b16 %v1116
        %v4035 = vunpack.c.l.b16 %v1117
        %v4036 = vunpack.c.h.b16 %v1117
        %v4037 = vunpack.c.l.b16 %v1118
        %v4038 = vunpack.c.h.b16 %v1118
        %v4039 = vunpack.c.l.b16 %v1119
        %v4040 = vunpack.c.h.b16 %v1119
        %v4041 = vunpack.c.l.b16 %v1120
        %v4042 = vunpack.c.h.b16 %v1120
        %v4043 = vunpack.c.l.b16 %v1121
        %v4044 = vunpack.c.h.b16 %v1121
        %v4045 = vunpack.c.l.b16 %v1122
        %v4046 = vunpack.c.h.b16 %v1122
        %v4047 = vunpack.c.l.b16 %v1123
        %v4048 = vunpack.c.h.b16 %v1123
        %v4049 = vunpack.c.l.b16 %v1124
        %v4050 = vunpack.c.h.b16 %v1124
        %v4051 = vunpack.c.l.b16 %v1125
        %v4052 = vunpack.c.h.b16 %v1125
        %v4053 = vunpack.c.l.b16 %v1126
        %v4054 = vunpack.c.h.b16 %v1126
        %v4055 = vunpack.c.l.b16 %v1127
        %v4056 = vunpack.c.h.b16 %v1127
        %v4057 = vunpack.c.l.b16 %v1128
        %v4058 = vunpack.c.h.b16 %v1128
        %v4059 = vunpack.c.l.b16 %v1129
        %v4060 = vunpack.c.h.b16 %v1129
        %v4061 = vunpack.c.l.b16 %v1130
        %v4062 = vunpack.c.h.b16 %v1130
        %v4063 = vunpack.c.l.b16 %v1131
        %v4064 = vunpack.c.h.b16 %v1131
        %v4065 = vunpack.c.l.b16 %v1132
        %v4066 = vunpack.c.h.b16 %v1132
        %v4067 = vunpack.c.l.b16 %v1133
        %v4068 = vunpack.c.h.b16 %v1133
        %v4069 = vunpack.c.l.b16 %v1134
        %v4070 = vunpack.c.h.b16 %v1134
        %v4071 = vunpack.c.l.b16 %v1135
        %v4072 = vunpack.c.h.b16 %v1135
        %v4073 = vunpack.c.l.b16 %v1136
        %v4074 = vunpack.c.h.b16 %v1136
        %v4075 = vunpack.c.l.b16 %v1137
        %v4076 = vunpack.c.h.b16 %v1137
        %v4077 = vunpack.c.l.b16 %v1138
        %v4078 = vunpack.c.h.b16 %v1138
        %v4079 = vunpack.c.l.b16 %v1139
        %v4080 = vunpack.c.h.b16 %v1139
        %v4081 = vunpack.c.l.b16 %v1140
        %v4082 = vunpack.c.h.b16 %v1140
        %v4083 = vunpack.c.l.b16 %v1141
        %v4084 = vunpack.c.h.b16 %v1141
        %v4085 = vunpack.c.l.b16 %v1142
        %v4086 = vunpack.c.h.b16 %v1142
        %v4087 = vunpack.c.l.b16 %v1143
        %v4088 = vunpack.c.h.b16 %v1143
        %v4089 = vunpack.c.l.b16 %v1144
        %v4090 = vunpack.c.h.b16 %v1144
        %v4091 = vunpack.c.l.b16 %v1145
        %v4092 = vunpack.c.h.b16 %v1145
        %v4093 = vunpack.c.l.b16 %v1146
        %v4094 = vunpack.c.h.b16 %v1146
        %v4095 = vunpack.c.l.b16 %v1147
        %v4096 = vunpack.c.h.b16 %v1147
        %v4097 = vunpack.c.l.b16 %v1148
        %v4098 = vunpack.c.h.b16 %v1148
        %v4099 = vunpack.c.l.b16 %v1149
        %v4100 = vunpack.c.h.b16 %v1149
        %v4101 = vunpack.c.l.b16 %v1150
        %v4102 = vunpack.c.h.b16 %v1150
        %v4103 = vunpack.c.l.b16 %v1151
        %v4104 = vunpack.c.h.b16 %v1151
        %v4105 = vunpack.c.l.b16 %v1152
        %v4106 = vunpack.c.h.b16 %v1152
        %v4107 = vunpack.c.l.b16 %v1153
        %v4108 = vunpack.c.h.b16 %v1153
        %v4109 = vunpack.c.l.b16 %v1154
        %v4110 = vunpack.c.h.b16 %v1154
        %v4111 = vunpack.c.l.b16 %v1155
        %v4112 = vunpack.c.h.b16 %v1155
        %v4113 = vunpack.c.l.b16 %v1156
        %v4114 = vunpack.c.h.b16 %v1156
        %v4115 = vunpack.c.l.b16 %v1157
        %v4116 = vunpack.c.h.b16 %v1157
        %v4117 = vunpack.c.l.b16 %v1158
        %v4118 = vunpack.c.h.b16 %v1158
        %v4119 = vunpack.c.l.b16 %v1159
        %v4120 = vunpack.c.h.b16 %v1159
        %v4121 = vunpack.c.l.b16 %v1160
        %v4122 = vunpack.c.h.b16 %v1160
        %v4123 = vunpack.c.l.b16 %v1161
        %v4124 = vunpack.c.h.b16 %v1161
        %v4125 = vunpack.c.l.b16 %v1162
        %v4126 = vunpack.c.h.b16 %v1162
        %v4127 = vunpack.c.l.b16 %v1163
        %v4128 = vunpack.c.h.b16 %v1163
        %v4129 = vunpack.c.l.b16 %v1164
        %v4130 = vunpack.c.h.b16 %v1164
        %v4131 = vunpack.c.l.b16 %v1165
        %v4132 = vunpack.c.h.b16 %v1165
        %v4133 = vunpack.c.l.b16 %v1166
        %v4134 = vunpack.c.h.b16 %v1166
        %v4135 = vunpack.c.l.b16 %v1167
        %v4136 = vunpack.c.h.b16 %v1167
        %v4137 = vunpack.c.l.b16 %v1168
        %v4138 = vunpack.c.h.b16 %v1168
        %v4139 = vunpack.c.l.b16 %v1169
        %v4140 = vunpack.c.h.b16 %v1169
        %v4141 = vunpack.c.l.b16 %v1170
        %v4142 = vunpack.c.h.b16 %v1170
        %v4143 = vunpack.c.l.b16 %v1171
        %v4144 = vunpack.c.h.b16 %v1171
        %v4145 = vunpack.c.l.b16 %v1172
        %v4146 = vunpack.c.h.b16 %v1172
        %v4147 = vunpack.c.l.b16 %v1173
        %v4148 = vunpack.c.h.b16 %v1173
        %v4149 = vunpack.c.l.b16 %v1174
        %v4150 = vunpack.c.h.b16 %v1174
        %v4151 = vunpack.c.l.b16 %v1175
        %v4152 = vunpack.c.h.b16 %v1175
        %v4153 = vunpack.c.l.b16 %v1176
        %v4154 = vunpack.c.h.b16 %v1176
        %v4155 = vunpack.c.l.b16 %v1177
        %v4156 = vunpack.c.h.b16 %v1177
        %v4157 = vunpack.c.l.b16 %v1178
        %v4158 = vunpack.c.h.b16 %v1178
        %v4159 = vunpack.c.l.b16 %v1179
        %v4160 = vunpack.c.h.b16 %v1179
        %v4161 = vunpack.c.l.b16 %v1180
        %v4162 = vunpack.c.h.b16 %v1180
        %v4163 = vunpack.c.l.b16 %v1181
        %v4164 = vunpack.c.h.b16 %v1181
        %v4165 = vunpack.c.l.b16 %v1182
        %v4166 = vunpack.c.h.b16 %v1182
        %v4167 = vunpack.c.l.b16 %v1183
        %v4168 = vunpack.c.h.b16 %v1183
        %v4169 = vunpack.c.l.b16 %v1184
        %v4170 = vunpack.c.h.b16 %v1184
        %v4171 = vunpack.c.l.b16 %v1185
        %v4172 = vunpack.c.h.b16 %v1185
        %v4173 = vunpack.c.l.b16 %v1186
        %v4174 = vunpack.c.h.b16 %v1186
        %v4175 = vunpack.c.l.b16 %v1187
        %v4176 = vunpack.c.h.b16 %v1187
        %v4177 = vunpack.c.l.b16 %v1188
        %v4178 = vunpack.c.h.b16 %v1188
        %v4179 = vunpack.c.l.b16 %v1189
        %v4180 = vunpack.c.h.b16 %v1189
        %v4181 = vunpack.c.l.b16 %v1190
        %v4182 = vunpack.c.h.b16 %v1190
        %v4183 = vunpack.c.l.b16 %v1191
        %v4184 = vunpack.c.h.b16 %v1191
        %v4185 = vunpack.c.l.b16 %v1192
        %v4186 = vunpack.c.h.b16 %v1192
        %v4187 = vunpack.c.l.b16 %v1193
        %v4188 = vunpack.c.h.b16 %v1193
        %v4189 = vunpack.c.l.b16 %v1194
        %v4190 = vunpack.c.h.b16 %v1194
        %v4191 = vunpack.c.l.b16 %v1195
        %v4192 = vunpack.c.h.b16 %v1195
        %v4193 = vunpack.c.l.b16 %v1196
        %v4194 = vunpack.c.h.b16 %v1196
        %v4195 = vunpack.c.l.b16 %v1197
        %v4196 = vunpack.c.h.b16 %v1197
        %v4197 = vunpack.c.l.b16 %v1198
        %v4198 = vunpack.c.h.b16 %v1198
        %v4199 = vunpack.c.l.b16 %v1199
        %v4200 = vunpack.c.h.b16 %v1199
        %v4201 = vunpack.c.l.b16 %v1200
        %v4202 = vunpack.c.h.b16 %v1200
        %v4203 = vunpack.c.l.b16 %v1201
        %v4204 = vunpack.c.h.b16 %v1201
        %v4205 = vunpack.c.l.b16 %v1202
        %v4206 = vunpack.c.h.b16 %v1202
        %v4207 = vunpack.c.l.b16 %v1203
        %v4208 = vunpack.c.h.b16 %v1203
        %v4209 = vunpack.c.l.b16 %v1204
        %v4210 = vunpack.c.h.b16 %v1204
        %v4211 = vunpack.c.l.b16 %v1205
        %v4212 = vunpack.c.h.b16 %v1205
        %v4213 = vunpack.c.l.b16 %v1206
        %v4214 = vunpack.c.h.b16 %v1206
        %v4215 = vunpack.c.l.b16 %v1207
        %v4216 = vunpack.c.h.b16 %v1207
        %v4217 = vunpack.c.l.b16 %v1208
        %v4218 = vunpack.c.h.b16 %v1208
        %v4219 = vunpack.c.l.b16 %v1209
        %v4220 = vunpack.c.h.b16 %v1209
        %v4221 = vunpack.c.l.b16 %v1210
        %v4222 = vunpack.c.h.b16 %v1210
        %v4223 = vunpack.c.l.b16 %v1211
        %v4224 = vunpack.c.h.b16 %v1211
        %v4225 = vunpack.c.l.b16 %v1212
        %v4226 = vunpack.c.h.b16 %v1212
        %v4227 = vunpack.c.l.b16 %v1213
        %v4228 = vunpack.c.h.b16 %v1213
        %v4229 = vunpack.c.l.b16 %v1214
        %v4230 = vunpack.c.h.b16 %v1214
        %v4231 = vunpack.c.l.b16 %v1215
        %v4232 = vunpack.c.h.b16 %v1215
        %v4233 = vunpack.c.l.b16 %v1216
        %v4234 = vunpack.c.h.b16 %v1216
        %v4235 = vunpack.c.l.b16 %v1217
        %v4236 = vunpack.c.h.b16 %v1217
        %v4237 = vunpack.c.l.b16 %v1218
        %v4238 = vunpack.c.h.b16 %v1218
        %v4239 = vunpack.c.l.b16 %v1219
        %v4240 = vunpack.c.h.b16 %v1219
        %v4241 = vunpack.c.l.b16 %v1220
        %v4242 = vunpack.c.h.b16 %v1220
        %v4243 = vunpack.c.l.b16 %v1221
        %v4244 = vunpack.c.h.b16 %v1221
        %v4245 = vunpack.c.l.b16 %v1222
        %v4246 = vunpack.c.h.b16 %v1222
        %v4247 = vunpack.c.l.b16 %v1223
        %v4248 = vunpack.c.h.b16 %v1223
        %v4249 = vunpack.c.l.b16 %v1224
        %v4250 = vunpack.c.h.b16 %v1224
        %v4251 = vunpack.c.l.b16 %v1225
        %v4252 = vunpack.c.h.b16 %v1225
        %v4253 = vunpack.c.l.b16 %v1226
        %v4254 = vunpack.c.h.b16 %v1226
        %v4255 = vunpack.c.l.b16 %v1227
        %v4256 = vunpack.c.h.b16 %v1227
        %v4257 = vunpack.c.l.b16 %v1228
        %v4258 = vunpack.c.h.b16 %v1228
        %v4259 = vunpack.c.l.b16 %v1229
        %v4260 = vunpack.c.h.b16 %v1229
        %v4261 = vunpack.c.l.b16 %v1230
        %v4262 = vunpack.c.h.b16 %v1230
        %v4263 = vunpack.c.l.b16 %v1231
        %v4264 = vunpack.c.h.b16 %v1231
        %v4265 = vunpack.c.l.b16 %v1232
        %v4266 = vunpack.c.h.b16 %v1232
        %v4267 = vunpack.c.l.b16 %v1233
        %v4268 = vunpack.c.h.b16 %v1233
        %v4269 = vunpack.c.l.b16 %v1234
        %v4270 = vunpack.c.h.b16 %v1234
        %v4271 = vunpack.c.l.b16 %v1235
        %v4272 = vunpack.c.h.b16 %v1235
        %v4273 = vunpack.c.l.b16 %v1236
        %v4274 = vunpack.c.h.b16 %v1236
        %v4275 = vunpack.c.l.b16 %v1237
        %v4276 = vunpack.c.h.b16 %v1237
        %v4277 = vunpack.c.l.b16 %v1238
        %v4278 = vunpack.c.h.b16 %v1238
        %v4279 = vunpack.c.l.b16 %v1239
        %v4280 = vunpack.c.h.b16 %v1239
        %v4281 = vunpack.c.l.b16 %v1240
        %v4282 = vunpack.c.h.b16 %v1240
        %v4283 = vunpack.c.l.b16 %v1241
        %v4284 = vunpack.c.h.b16 %v1241
        %v4285 = vunpack.c.l.b16 %v1242
        %v4286 = vunpack.c.h.b16 %v1242
        %v4287 = vunpack.c.l.b16 %v1243
        %v4288 = vunpack.c.h.b16 %v1243
        %v4289 = vunpack.c.l.b16 %v1244
        %v4290 = vunpack.c.h.b16 %v1244
        %v4291 = vunpack.c.l.b16 %v1245
        %v4292 = vunpack.c.h.b16 %v1245
        %v4293 = vunpack.c.l.b16 %v1246
        %v4294 = vunpack.c.h.b16 %v1246
        %v4295 = vunpack.c.l.b16 %v1247
        %v4296 = vunpack.c.h.b16 %v1247
        %v4297 = vunpack.c.l.b16 %v1248
        %v4298 = vunpack.c.h.b16 %v1248
        %v4299 = vunpack.c.l.b16 %v1249
        %v4300 = vunpack.c.h.b16 %v1249
        %v4301 = vunpack.c.l.b16 %v1250
        %v4302 = vunpack.c.h.b16 %v1250
        %v4303 = vunpack.c.l.b16 %v1251
        %v4304 = vunpack.c.h.b16 %v1251
        %v4305 = vunpack.c.l.b16 %v1252
        %v4306 = vunpack.c.h.b16 %v1252
        %v4307 = vunpack.c.l.b16 %v1253
        %v4308 = vunpack.c.h.b16 %v1253
        %v4309 = vunpack.c.l.b16 %v1254
        %v4310 = vunpack.c.h.b16 %v1254
        %v4311 = vunpack.c.l.b16 %v1255
        %v4312 = vunpack.c.h.b16 %v1255
        %v4313 = vunpack.c.l.b16 %v1256
        %v4314 = vunpack.c.h.b16 %v1256
        %v4315 = vunpack.c.l.b16 %v1257
        %v4316 = vunpack.c.h.b16 %v1257
        %v4317 = vunpack.c.l.b16 %v1258
        %v4318 = vunpack.c.h.b16 %v1258
        %v4319 = vunpack.c.l.b16 %v1259
        %v4320 = vunpack.c.h.b16 %v1259
        %v4321 = vunpack.c.l.b16 %v1260
        %v4322 = vunpack.c.h.b16 %v1260
        %v4323 = vunpack.c.l.b16 %v1261
        %v4324 = vunpack.c.h.b16 %v1261
        %v4325 = vunpack.c.l.b16 %v1262
        %v4326 = vunpack.c.h.b16 %v1262
        %v4327 = vunpack.c.l.b16 %v1263
        %v4328 = vunpack.c.h.b16 %v1263
        %v4329 = vunpack.c.l.b16 %v1264
        %v4330 = vunpack.c.h.b16 %v1264
        %v4331 = vunpack.c.l.b16 %v1265
        %v4332 = vunpack.c.h.b16 %v1265
        %v4333 = vunpack.c.l.b16 %v1266
        %v4334 = vunpack.c.h.b16 %v1266
        %v4335 = vunpack.c.l.b16 %v1267
        %v4336 = vunpack.c.h.b16 %v1267
        %v4337 = vunpack.c.l.b16 %v1268
        %v4338 = vunpack.c.h.b16 %v1268
        %v4339 = vunpack.c.l.b16 %v1269
        %v4340 = vunpack.c.h.b16 %v1269
        %v4341 = vunpack.c.l.b16 %v1270
        %v4342 = vunpack.c.h.b16 %v1270
        %v4343 = vunpack.c.l.b16 %v1271
        %v4344 = vunpack.c.h.b16 %v1271
        %v4345 = vunpack.c.l.b16 %v1272
        %v4346 = vunpack.c.h.b16 %v1272
        %v4347 = vunpack.c.l.b16 %v1273
        %v4348 = vunpack.c.h.b16 %v1273
        %v4349 = vunpack.c.l.b16 %v1274
        %v4350 = vunpack.c.h.b16 %v1274
        %v4351 = vunpack.c.l.b16 %v1275
        %v4352 = vunpack.c.h.b16 %v1275
        %v4353 = vunpack.c.l.b16 %v1276
        %v4354 = vunpack.c.h.b16 %v1276
        %v4355 = vunpack.c.l.b16 %v1277
        %v4356 = vunpack.c.h.b16 %v1277
        %v4357 = vunpack.c.l.b16 %v1278
        %v4358 = vunpack.c.h.b16 %v1278
        %v4359 = vunpack.c.l.b16 %v1279
        %v4360 = vunpack.c.h.b16 %v1279
        %v4361 = vunpack.c.l.b16 %v1280
        %v4362 = vunpack.c.h.b16 %v1280
        %v4363 = vunpack.c.l.b16 %v1281
        %v4364 = vunpack.c.h.b16 %v1281
        %v4365 = vunpack.c.l.b16 %v1282
        %v4366 = vunpack.c.h.b16 %v1282
        %v4367 = vunpack.c.l.b16 %v1283
        %v4368 = vunpack.c.h.b16 %v1283
        %v4369 = vunpack.c.l.b16 %v1284
        %v4370 = vunpack.c.h.b16 %v1284
        %v4371 = vunpack.c.l.b16 %v1285
        %v4372 = vunpack.c.h.b16 %v1285
        %v4373 = vunpack.c.l.b16 %v1286
        %v4374 = vunpack.c.h.b16 %v1286
        %v4375 = vunpack.c.l.b16 %v1287
        %v4376 = vunpack.c.h.b16 %v1287
        %v4377 = vunpack.c.l.b16 %v1288
        %v4378 = vunpack.c.h.b16 %v1288
        %v4379 = vunpack.c.l.b16 %v1289
        %v4380 = vunpack.c.h.b16 %v1289
        %v4381 = vunpack.c.l.b16 %v1290
        %v4382 = vunpack.c.h.b16 %v1290
        %v4383 = vunpack.c.l.b16 %v1291
        %v4384 = vunpack.c.h.b16 %v1291
        %v4385 = vunpack.c.l.b16 %v1292
        %v4386 = vunpack.c.h.b16 %v1292
        %v4387 = vunpack.c.l.b16 %v1293
        %v4388 = vunpack.c.h.b16 %v1293
        %v4389 = vunpack.c.l.b16 %v1294
        %v4390 = vunpack.c.h.b16 %v1294
        %v4391 = vunpack.c.l.b16 %v1295
        %v4392 = vunpack.c.h.b16 %v1295
        %v4393 = vunpack.c.l.b16 %v1296
        %v4394 = vunpack.c.h.b16 %v1296
        %v4395 = vunpack.c.l.b16 %v1297
        %v4396 = vunpack.c.h.b16 %v1297
        %v4397 = vunpack.c.l.b16 %v1298
        %v4398 = vunpack.c.h.b16 %v1298
        %v4399 = vunpack.c.l.b16 %v1299
        %v4400 = vunpack.c.h.b16 %v1299
        %v4401 = vunpack.c.l.b16 %v1300
        %v4402 = vunpack.c.h.b16 %v1300
        %v4403 = vunpack.c.l.b16 %v1301
        %v4404 = vunpack.c.h.b16 %v1301
        %v4405 = vunpack.c.l.b16 %v1302
        %v4406 = vunpack.c.h.b16 %v1302
        %v4407 = vunpack.c.l.b16 %v1303
        %v4408 = vunpack.c.h.b16 %v1303
        %v4409 = vunpack.c.l.b16 %v1304
        %v4410 = vunpack.c.h.b16 %v1304
        %v4411 = vunpack.c.l.b16 %v1305
        %v4412 = vunpack.c.h.b16 %v1305
        %v4413 = vunpack.c.l.b16 %v1306
        %v4414 = vunpack.c.h.b16 %v1306
        %v4415 = vpack.c.b16 %v2499, %v2495
        %v4416 = vpack.c.b16 %v2500, %v2496
        %v4417 = vpack.c.b16 %v2501, %v2497
        %v4418 = vpack.c.b16 %v2502, %v2498
        %v4419 = vpack.c.b16 %v2507, %v2503
        %v4420 = vpack.c.b16 %v2508, %v2504
        %v4421 = vpack.c.b16 %v2509, %v2505
        %v4422 = vpack.c.b16 %v2510, %v2506
        %v4423 = vpack.c.b16 %v2515, %v2511
        %v4424 = vpack.c.b16 %v2516, %v2512
        %v4425 = vpack.c.b16 %v2517, %v2513
        %v4426 = vpack.c.b16 %v2518, %v2514
        %v4427 = vpack.c.b16 %v2523, %v2519
        %v4428 = vpack.c.b16 %v2524, %v2520
        %v4429 = vpack.c.b16 %v2525, %v2521
        %v4430 = vpack.c.b16 %v2526, %v2522
        %v4431 = vpack.c.b16 %v2531, %v2527
        %v4432 = vpack.c.b16 %v2532, %v2528
        %v4433 = vpack.c.b16 %v2533, %v2529
        %v4434 = vpack.c.b16 %v2534, %v2530
        %v4435 = vpack.c.b16 %v2539, %v2535
        %v4436 = vpack.c.b16 %v2540, %v2536
        %v4437 = vpack.c.b16 %v2541, %v2537
        %v4438 = vpack.c.b16 %v2542, %v2538
        %v4439 = vpack.c.b16 %v2547, %v2543
        %v4440 = vpack.c.b16 %v2548, %v2544
        %v4441 = vpack.c.b16 %v2549, %v2545
        %v4442 = vpack.c.b16 %v2550, %v2546
        %v4443 = vpack.c.b16 %v2555, %v2551
        %v4444 = vpack.c.b16 %v2556, %v2552
        %v4445 = vpack.c.b16 %v2557, %v2553
        %v4446 = vpack.c.b16 %v2558, %v2554
        %v4447 = vpack.c.b16 %v2563, %v2559
        %v4448 = vpack.c.b16 %v2564, %v2560
        %v4449 = vpack.c.b16 %v2565, %v2561
        %v4450 = vpack.c.b16 %v2566, %v2562
        %v4451 = vpack.c.b16 %v2571, %v2567
        %v4452 = vpack.c.b16 %v2572, %v2568
        %v4453 = vpack.c.b16 %v2573, %v2569
        %v4454 = vpack.c.b16 %v2574, %v2570
        %v4455 = vpack.c.b16 %v2579, %v2575
        %v4456 = vpack.c.b16 %v2580, %v2576
        %v4457 = vpack.c.b16 %v2581, %v2577
        %v4458 = vpack.c.b16 %v2582, %v2578
        %v4459 = vpack.c.b16 %v2587, %v2583
        %v4460 = vpack.c.b16 %v2588, %v2584
        %v4461 = vpack.c.b16 %v2589, %v2585
        %v4462 = vpack.c.b16 %v2590, %v2586
        %v4463 = vpack.c.b16 %v2595, %v2591
        %v4464 = vpack.c.b16 %v2596, %v2592
        %v4465 = vpack.c.b16 %v2597, %v2593
        %v4466 = vpack.c.b16 %v2598, %v2594
        %v4467 = vpack.c.b16 %v2603, %v2599
        %v4468 = vpack.c.b16 %v2604, %v2600
        %v4469 = vpack.c.b16 %v2605, %v2601
        %v4470 = vpack.c.b16 %v2606, %v2602
        %v4471 = vpack.c.b16 %v2611, %v2607
        %v4472 = vpack.c.b16 %v2612, %v2608
        %v4473 = vpack.c.b16 %v2613, %v2609
        %v4474 = vpack.c.b16 %v2614, %v2610
        %v4475 = vpack.c.b16 %v2619, %v2615
        %v4476 = vpack.c.b16 %v2620, %v2616
        %v4477 = vpack.c.b16 %v2621, %v2617
        %v4478 = vpack.c.b16 %v2622, %v2618
        %v4479 = vpack.c.b16 %v2627, %v2623
        %v4480 = vpack.c.b16 %v2628, %v2624
        %v4481 = vpack.c.b16 %v2629, %v2625
        %v4482 = vpack.c.b16 %v2630, %v2626
        %v4483 = vpack.c.b16 %v2635, %v2631
        %v4484 = vpack.c.b16 %v2636, %v2632
        %v4485 = vpack.c.b16 %v2637, %v2633
        %v4486 = vpack.c.b16 %v2638, %v2634
        %v4487 = vpack.c.b16 %v2643, %v2639
        %v4488 = vpack.c.b16 %v2644, %v2640
        %v4489 = vpack.c.b16 %v2645, %v2641
        %v4490 = vpack.c.b16 %v2646, %v2642
        %v4491 = vpack.c.b16 %v2651, %v2647
        %v4492 = vpack.c.b16 %v2652, %v2648
        %v4493 = vpack.c.b16 %v2653, %v2649
        %v4494 = vpack.c.b16 %v2654, %v2650
        %v4495 = vpack.c.b16 %v2659, %v2655
        %v4496 = vpack.c.b16 %v2660, %v2656
        %v4497 = vpack.c.b16 %v2661, %v2657
        %v4498 = vpack.c.b16 %v2662, %v2658
        %v4499 = vpack.c.b16 %v2667, %v2663
        %v4500 = vpack.c.b16 %v2668, %v2664
        %v4501 = vpack.c.b16 %v2669, %v2665
        %v4502 = vpack.c.b16 %v2670, %v2666
        %v4503 = vpack.c.b16 %v2675, %v2671
        %v4504 = vpack.c.b16 %v2676, %v2672
        %v4505 = vpack.c.b16 %v2677, %v2673
        %v4506 = vpack.c.b16 %v2678, %v2674
        %v4507 = vpack.c.b16 %v2683, %v2679
        %v4508 = vpack.c.b16 %v2684, %v2680
        %v4509 = vpack.c.b16 %v2685, %v2681
        %v4510 = vpack.c.b16 %v2686, %v2682
        %v4511 = vpack.c.b16 %v2691, %v2687
        %v4512 = vpack.c.b16 %v2692, %v2688
        %v4513 = vpack.c.b16 %v2693, %v2689
        %v4514 = vpack.c.b16 %v2694, %v2690
        %v4515 = vpack.c.b16 %v2699, %v2695
        %v4516 = vpack.c.b16 %v2700, %v2696
        %v4517 = vpack.c.b16 %v2701, %v2697
        %v4518 = vpack.c.b16 %v2702, %v2698
        %v4519 = vpack.c.b16 %v2707, %v2703
        %v4520 = vpack.c.b16 %v2708, %v2704
        %v4521 = vpack.c.b16 %v2709, %v2705
        %v4522 = vpack.c.b16 %v2710, %v2706
        %v4523 = vpack.c.b16 %v2715, %v2711
        %v4524 = vpack.c.b16 %v2716, %v2712
        %v4525 = vpack.c.b16 %v2717, %v2713
        %v4526 = vpack.c.b16 %v2718, %v2714
        %v4527 = vpack.c.b16 %v2723, %v2719
        %v4528 = vpack.c.b16 %v2724, %v2720
        %v4529 = vpack.c.b16 %v2725, %v2721
        %v4530 = vpack.c.b16 %v2726, %v2722
        %v4531 = vpack.c.b16 %v2731, %v2727
        %v4532 = vpack.c.b16 %v2732, %v2728
        %v4533 = vpack.c.b16 %v2733, %v2729
        %v4534 = vpack.c.b16 %v2734, %v2730
        %v4535 = vpack.c.b16 %v2739, %v2735
        %v4536 = vpack.c.b16 %v2740, %v2736
        %v4537 = vpack.c.b16 %v2741, %v2737
        %v4538 = vpack.c.b16 %v2742, %v2738
        %v4539 = vpack.c.b16 %v2747, %v2743
        %v4540 = vpack.c.b16 %v2748, %v2744
        %v4541 = vpack.c.b16 %v2749, %v2745
        %v4542 = vpack.c.b16 %v2750, %v2746
        %v4543 = vpack.c.b16 %v2755, %v2751
        %v4544 = vpack.c.b16 %v2756, %v2752
        %v4545 = vpack.c.b16 %v2757, %v2753
        %v4546 = vpack.c.b16 %v2758, %v2754
        %v4547 = vpack.c.b16 %v2763, %v2759
        %v4548 = vpack.c.b16 %v2764, %v2760
        %v4549 = vpack.c.b16 %v2765, %v2761
        %v4550 = vpack.c.b16 %v2766, %v2762
        %v4551 = vpack.c.b16 %v2771, %v2767
        %v4552 = vpack.c.b16 %v2772, %v2768
        %v4553 = vpack.c.b16 %v2773, %v2769
        %v4554 = vpack.c.b16 %v2774, %v2770
        %v4555 = vpack.c.b16 %v2779, %v2775
        %v4556 = vpack.c.b16 %v2780, %v2776
        %v4557 = vpack.c.b16 %v2781, %v2777
        %v4558 = vpack.c.b16 %v2782, %v2778
        %v4559 = vpack.c.b16 %v2787, %v2783
        %v4560 = vpack.c.b16 %v2788, %v2784
        %v4561 = vpack.c.b16 %v2789, %v2785
        %v4562 = vpack.c.b16 %v2790, %v2786
        %v4563 = vpack.c.b16 %v2795, %v2791
        %v4564 = vpack.c.b16 %v2796, %v2792
        %v4565 = vpack.c.b16 %v2797, %v2793
        %v4566 = vpack.c.b16 %v2798, %v2794
        %v4567 = vpack.c.b16 %v2803, %v2799
        %v4568 = vpack.c.b16 %v2804, %v2800
        %v4569 = vpack.c.b16 %v2805, %v2801
        %v4570 = vpack.c.b16 %v2806, %v2802
        %v4571 = vpack.c.b16 %v2811, %v2807
        %v4572 = vpack.c.b16 %v2812, %v2808
        %v4573 = vpack.c.b16 %v2813, %v2809
        %v4574 = vpack.c.b16 %v2814, %v2810
        %v4575 = vpack.c.b16 %v2819, %v2815
        %v4576 = vpack.c.b16 %v2820, %v2816
        %v4577 = vpack.c.b16 %v2821, %v2817
        %v4578 = vpack.c.b16 %v2822, %v2818
        %v4579 = vpack.c.b16 %v2827, %v2823
        %v4580 = vpack.c.b16 %v2828, %v2824
        %v4581 = vpack.c.b16 %v2829, %v2825
        %v4582 = vpack.c.b16 %v2830, %v2826
        %v4583 = vpack.c.b16 %v2835, %v2831
        %v4584 = vpack.c.b16 %v2836, %v2832
        %v4585 = vpack.c.b16 %v2837, %v2833
        %v4586 = vpack.c.b16 %v2838, %v2834
        %v4587 = vpack.c.b16 %v2843, %v2839
        %v4588 = vpack.c.b16 %v2844, %v2840
        %v4589 = vpack.c.b16 %v2845, %v2841
        %v4590 = vpack.c.b16 %v2846, %v2842
        %v4591 = vpack.c.b16 %v2851, %v2847
        %v4592 = vpack.c.b16 %v2852, %v2848
        %v4593 = vpack.c.b16 %v2853, %v2849
        %v4594 = vpack.c.b16 %v2854, %v2850
        %v4595 = vpack.c.b16 %v2859, %v2855
        %v4596 = vpack.c.b16 %v2860, %v2856
        %v4597 = vpack.c.b16 %v2861, %v2857
        %v4598 = vpack.c.b16 %v2862, %v2858
        %v4599 = vpack.c.b16 %v2867, %v2863
        %v4600 = vpack.c.b16 %v2868, %v2864
        %v4601 = vpack.c.b16 %v2869, %v2865
        %v4602 = vpack.c.b16 %v2870, %v2866
        %v4603 = vpack.c.b16 %v2875, %v2871
        %v4604 = vpack.c.b16 %v2876, %v2872
        %v4605 = vpack.c.b16 %v2877, %v2873
        %v4606 = vpack.c.b16 %v2878, %v2874
        %v4607 = vpack.c.b16 %v2883, %v2879
        %v4608 = vpack.c.b16 %v2884, %v2880
        %v4609 = vpack.c.b16 %v2885, %v2881
        %v4610 = vpack.c.b16 %v2886, %v2882
        %v4611 = vpack.c.b16 %v2891, %v2887
        %v4612 = vpack.c.b16 %v2892, %v2888
        %v4613 = vpack.c.b16 %v2893, %v2889
        %v4614 = vpack.c.b16 %v2894, %v2890
        %v4615 = vpack.c.b16 %v2899, %v2895
        %v4616 = vpack.c.b16 %v2900, %v2896
        %v4617 = vpack.c.b16 %v2901, %v2897
        %v4618 = vpack.c.b16 %v2902, %v2898
        %v4619 = vpack.c.b16 %v2907, %v2903
        %v4620 = vpack.c.b16 %v2908, %v2904
        %v4621 = vpack.c.b16 %v2909, %v2905
        %v4622 = vpack.c.b16 %v2910, %v2906
        %v4623 = vpack.c.b16 %v2915, %v2911
        %v4624 = vpack.c.b16 %v2916, %v2912
        %v4625 = vpack.c.b16 %v2917, %v2913
        %v4626 = vpack.c.b16 %v2918, %v2914
        %v4627 = vpack.c.b16 %v2923, %v2919
        %v4628 = vpack.c.b16 %v2924, %v2920
        %v4629 = vpack.c.b16 %v2925, %v2921
        %v4630 = vpack.c.b16 %v2926, %v2922
        %v4631 = vpack.c.b16 %v2931, %v2927
        %v4632 = vpack.c.b16 %v2932, %v2928
        %v4633 = vpack.c.b16 %v2933, %v2929
        %v4634 = vpack.c.b16 %v2934, %v2930
        %v4635 = vpack.c.b16 %v2939, %v2935
        %v4636 = vpack.c.b16 %v2940, %v2936
        %v4637 = vpack.c.b16 %v2941, %v2937
        %v4638 = vpack.c.b16 %v2942, %v2938
        %v4639 = vpack.c.b16 %v2947, %v2943
        %v4640 = vpack.c.b16 %v2948, %v2944
        %v4641 = vpack.c.b16 %v2949, %v2945
        %v4642 = vpack.c.b16 %v2950, %v2946
        %v4643 = vpack.c.b16 %v2955, %v2951
        %v4644 = vpack.c.b16 %v2956, %v2952
        %v4645 = vpack.c.b16 %v2957, %v2953
        %v4646 = vpack.c.b16 %v2958, %v2954
        %v4647 = vpack.c.b16 %v2963, %v2959
        %v4648 = vpack.c.b16 %v2964, %v2960
        %v4649 = vpack.c.b16 %v2965, %v2961
        %v4650 = vpack.c.b16 %v2966, %v2962
        %v4651 = vpack.c.b16 %v2971, %v2967
        %v4652 = vpack.c.b16 %v2972, %v2968
        %v4653 = vpack.c.b16 %v2973, %v2969
        %v4654 = vpack.c.b16 %v2974, %v2970
        %v4655 = vpack.c.b16 %v2979, %v2975
        %v4656 = vpack.c.b16 %v2980, %v2976
        %v4657 = vpack.c.b16 %v2981, %v2977
        %v4658 = vpack.c.b16 %v2982, %v2978
        %v4659 = vpack.c.b16 %v2987, %v2983
        %v4660 = vpack.c.b16 %v2988, %v2984
        %v4661 = vpack.c.b16 %v2989, %v2985
        %v4662 = vpack.c.b16 %v2990, %v2986
        %v4663 = vpack.c.b16 %v2995, %v2991
        %v4664 = vpack.c.b16 %v2996, %v2992
        %v4665 = vpack.c.b16 %v2997, %v2993
        %v4666 = vpack.c.b16 %v2998, %v2994
        %v4667 = vpack.c.b16 %v3003, %v2999
        %v4668 = vpack.c.b16 %v3004, %v3000
        %v4669 = vpack.c.b16 %v3005, %v3001
        %v4670 = vpack.c.b16 %v3006, %v3002
        %v4671 = vpack.c.b16 %v3011, %v3007
        %v4672 = vpack.c.b16 %v3012, %v3008
        %v4673 = vpack.c.b16 %v3013, %v3009
        %v4674 = vpack.c.b16 %v3014, %v3010
        %v4675 = vpack.c.b16 %v3019, %v3015
        %v4676 = vpack.c.b16 %v3020, %v3016
        %v4677 = vpack.c.b16 %v3021, %v3017
        %v4678 = vpack.c.b16 %v3022, %v3018
        %v4679 = vpack.c.b16 %v3027, %v3023
        %v4680 = vpack.c.b16 %v3028, %v3024
        %v4681 = vpack.c.b16 %v3029, %v3025
        %v4682 = vpack.c.b16 %v3030, %v3026
        %v4683 = vpack.c.b16 %v3035, %v3031
        %v4684 = vpack.c.b16 %v3036, %v3032
        %v4685 = vpack.c.b16 %v3037, %v3033
        %v4686 = vpack.c.b16 %v3038, %v3034
        %v4687 = vpack.c.b16 %v3043, %v3039
        %v4688 = vpack.c.b16 %v3044, %v3040
        %v4689 = vpack.c.b16 %v3045, %v3041
        %v4690 = vpack.c.b16 %v3046, %v3042
        %v4691 = vpack.c.b16 %v3051, %v3047
        %v4692 = vpack.c.b16 %v3052, %v3048
        %v4693 = vpack.c.b16 %v3053, %v3049
        %v4694 = vpack.c.b16 %v3054, %v3050
        %v4695 = vpack.c.b16 %v3059, %v3055
        %v4696 = vpack.c.b16 %v3060, %v3056
        %v4697 = vpack.c.b16 %v3061, %v3057
        %v4698 = vpack.c.b16 %v3062, %v3058
        %v4699 = vpack.c.b16 %v3067, %v3063
        %v4700 = vpack.c.b16 %v3068, %v3064
        %v4701 = vpack.c.b16 %v3069, %v3065
        %v4702 = vpack.c.b16 %v3070, %v3066
        %v4703 = vpack.c.b16 %v3075, %v3071
        %v4704 = vpack.c.b16 %v3076, %v3072
        %v4705 = vpack.c.b16 %v3077, %v3073
        %v4706 = vpack.c.b16 %v3078, %v3074
        %v4707 = vpack.c.b16 %v3083, %v3079
        %v4708 = vpack.c.b16 %v3084, %v3080
        %v4709 = vpack.c.b16 %v3085, %v3081
        %v4710 = vpack.c.b16 %v3086, %v3082
        %v4711 = vpack.c.b16 %v3091, %v3087
        %v4712 = vpack.c.b16 %v3092, %v3088
        %v4713 = vpack.c.b16 %v3093, %v3089
        %v4714 = vpack.c.b16 %v3094, %v3090
        %v4715 = vpack.c.b16 %v3099, %v3095
        %v4716 = vpack.c.b16 %v3100, %v3096
        %v4717 = vpack.c.b16 %v3101, %v3097
        %v4718 = vpack.c.b16 %v3102, %v3098
        %v4719 = vpack.c.b16 %v3107, %v3103
        %v4720 = vpack.c.b16 %v3108, %v3104
        %v4721 = vpack.c.b16 %v3109, %v3105
        %v4722 = vpack.c.b16 %v3110, %v3106
        %v4723 = vpack.c.b16 %v3115, %v3111
        %v4724 = vpack.c.b16 %v3116, %v3112
        %v4725 = vpack.c.b16 %v3117, %v3113
        %v4726 = vpack.c.b16 %v3118, %v3114
        %v4727 = vpack.c.b16 %v3123, %v3119
        %v4728 = vpack.c.b16 %v3124, %v3120
        %v4729 = vpack.c.b16 %v3125, %v3121
        %v4730 = vpack.c.b16 %v3126, %v3122
        %v4731 = vpack.c.b16 %v3131, %v3127
        %v4732 = vpack.c.b16 %v3132, %v3128
        %v4733 = vpack.c.b16 %v3133, %v3129
        %v4734 = vpack.c.b16 %v3134, %v3130
        %v4735 = vpack.c.b16 %v3139, %v3135
        %v4736 = vpack.c.b16 %v3140, %v3136
        %v4737 = vpack.c.b16 %v3141, %v3137
        %v4738 = vpack.c.b16 %v3142, %v3138
        %v4739 = vpack.c.b16 %v3147, %v3143
        %v4740 = vpack.c.b16 %v3148, %v3144
        %v4741 = vpack.c.b16 %v3149, %v3145
        %v4742 = vpack.c.b16 %v3150, %v3146
        %v4743 = vpack.c.b16 %v3155, %v3151
        %v4744 = vpack.c.b16 %v3156, %v3152
        %v4745 = vpack.c.b16 %v3157, %v3153
        %v4746 = vpack.c.b16 %v3158, %v3154
        %v4747 = vpack.c.b16 %v3163, %v3159
        %v4748 = vpack.c.b16 %v3164, %v3160
        %v4749 = vpack.c.b16 %v3165, %v3161
        %v4750 = vpack.c.b16 %v3166, %v3162
        %v4751 = vpack.c.b16 %v3171, %v3167
        %v4752 = vpack.c.b16 %v3172, %v3168
        %v4753 = vpack.c.b16 %v3173, %v3169
        %v4754 = vpack.c.b16 %v3174, %v3170
        %v4755 = vpack.c.b16 %v3179, %v3175
        %v4756 = vpack.c.b16 %v3180, %v3176
        %v4757 = vpack.c.b16 %v3181, %v3177
        %v4758 = vpack.c.b16 %v3182, %v3178
        %v4759 = vpack.c.b16 %v3187, %v3183
        %v4760 = vpack.c.b16 %v3188, %v3184
        %v4761 = vpack.c.b16 %v3189, %v3185
        %v4762 = vpack.c.b16 %v3190, %v3186
        %v4763 = vpack.c.b16 %v3195, %v3191
        %v4764 = vpack.c.b16 %v3196, %v3192
        %v4765 = vpack.c.b16 %v3197, %v3193
        %v4766 = vpack.c.b16 %v3198, %v3194
        %v4767 = vpack.c.b16 %v3203, %v3199
        %v4768 = vpack.c.b16 %v3204, %v3200
        %v4769 = vpack.c.b16 %v3205, %v3201
        %v4770 = vpack.c.b16 %v3206, %v3202
        %v4771 = vpack.c.b16 %v3211, %v3207
        %v4772 = vpack.c.b16 %v3212, %v3208
        %v4773 = vpack.c.b16 %v3213, %v3209
        %v4774 = vpack.c.b16 %v3214, %v3210
        %v4775 = vpack.c.b16 %v3219, %v3215
        %v4776 = vpack.c.b16 %v3220, %v3216
        %v4777 = vpack.c.b16 %v3221, %v3217
        %v4778 = vpack.c.b16 %v3222, %v3218
        %v4779 = vpack.c.b16 %v3227, %v3223
        %v4780 = vpack.c.b16 %v3228, %v3224
        %v4781 = vpack.c.b16 %v3229, %v3225
        %v4782 = vpack.c.b16 %v3230, %v3226
        %v4783 = vpack.c.b16 %v3235, %v3231
        %v4784 = vpack.c.b16 %v3236, %v3232
        %v4785 = vpack.c.b16 %v3237, %v3233
        %v4786 = vpack.c.b16 %v3238, %v3234
        %v4787 = vpack.c.b16 %v3243, %v3239
        %v4788 = vpack.c.b16 %v3244, %v3240
        %v4789 = vpack.c.b16 %v3245, %v3241
        %v4790 = vpack.c.b16 %v3246, %v3242
        %v4791 = vpack.c.b16 %v3251, %v3247
        %v4792 = vpack.c.b16 %v3252, %v3248
        %v4793 = vpack.c.b16 %v3253, %v3249
        %v4794 = vpack.c.b16 %v3254, %v3250
        %v4795 = vpack.c.b16 %v3259, %v3255
        %v4796 = vpack.c.b16 %v3260, %v3256
        %v4797 = vpack.c.b16 %v3261, %v3257
        %v4798 = vpack.c.b16 %v3262, %v3258
        %v4799 = vpack.c.b16 %v3267, %v3263
        %v4800 = vpack.c.b16 %v3268, %v3264
        %v4801 = vpack.c.b16 %v3269, %v3265
        %v4802 = vpack.c.b16 %v3270, %v3266
        %v4803 = vpack.c.b16 %v3275, %v3271
        %v4804 = vpack.c.b16 %v3276, %v3272
        %v4805 = vpack.c.b16 %v3277, %v3273
        %v4806 = vpack.c.b16 %v3278, %v3274
        %v4807 = vpack.c.b16 %v3283, %v3279
        %v4808 = vpack.c.b16 %v3284, %v3280
        %v4809 = vpack.c.b16 %v3285, %v3281
        %v4810 = vpack.c.b16 %v3286, %v3282
        %v4811 = vpack.c.b16 %v3291, %v3287
        %v4812 = vpack.c.b16 %v3292, %v3288
        %v4813 = vpack.c.b16 %v3293, %v3289
        %v4814 = vpack.c.b16 %v3294, %v3290
        %v4815 = vpack.c.b16 %v3299, %v3295
        %v4816 = vpack.c.b16 %v3300, %v3296
        %v4817 = vpack.c.b16 %v3301, %v3297
        %v4818 = vpack.c.b16 %v3302, %v3298
        %v4819 = vpack.c.b16 %v3307, %v3303
        %v4820 = vpack.c.b16 %v3308, %v3304
        %v4821 = vpack.c.b16 %v3309, %v3305
        %v4822 = vpack.c.b16 %v3310, %v3306
        %v4823 = vpack.c.b16 %v3315, %v3311
        %v4824 = vpack.c.b16 %v3316, %v3312
        %v4825 = vpack.c.b16 %v3317, %v3313
        %v4826 = vpack.c.b16 %v3318, %v3314
        %v4827 = vpack.c.b16 %v3323, %v3319
        %v4828 = vpack.c.b16 %v3324, %v3320
        %v4829 = vpack.c.b16 %v3325, %v3321
        %v4830 = vpack.c.b16 %v3326, %v3322
        %v4831 = vpack.c.b16 %v3331, %v3327
        %v4832 = vpack.c.b16 %v3332, %v3328
        %v4833 = vpack.c.b16 %v3333, %v3329
        %v4834 = vpack.c.b16 %v3334, %v3330
        %v4835 = vpack.c.b16 %v3339, %v3335
        %v4836 = vpack.c.b16 %v3340, %v3336
        %v4837 = vpack.c.b16 %v3341, %v3337
        %v4838 = vpack.c.b16 %v3342, %v3338
        %v4839 = vpack.c.b16 %v3347, %v3343
        %v4840 = vpack.c.b16 %v3348, %v3344
        %v4841 = vpack.c.b16 %v3349, %v3345
        %v4842 = vpack.c.b16 %v3350, %v3346
        %v4843 = vpack.c.b16 %v3355, %v3351
        %v4844 = vpack.c.b16 %v3356, %v3352
        %v4845 = vpack.c.b16 %v3357, %v3353
        %v4846 = vpack.c.b16 %v3358, %v3354
        %v4847 = vpack.c.b16 %v3363, %v3359
        %v4848 = vpack.c.b16 %v3364, %v3360
        %v4849 = vpack.c.b16 %v3365, %v3361
        %v4850 = vpack.c.b16 %v3366, %v3362
        %v4851 = vpack.c.b16 %v3371, %v3367
        %v4852 = vpack.c.b16 %v3372, %v3368
        %v4853 = vpack.c.b16 %v3373, %v3369
        %v4854 = vpack.c.b16 %v3374, %v3370
        %v4855 = vpack.c.b16 %v3379, %v3375
        %v4856 = vpack.c.b16 %v3380, %v3376
        %v4857 = vpack.c.b16 %v3381, %v3377
        %v4858 = vpack.c.b16 %v3382, %v3378
        %v4859 = vpack.c.b16 %v3387, %v3383
        %v4860 = vpack.c.b16 %v3388, %v3384
        %v4861 = vpack.c.b16 %v3389, %v3385
        %v4862 = vpack.c.b16 %v3390, %v3386
        %v4863 = vpack.c.b16 %v3395, %v3391
        %v4864 = vpack.c.b16 %v3396, %v3392
        %v4865 = vpack.c.b16 %v3397, %v3393
        %v4866 = vpack.c.b16 %v3398, %v3394
        %v4867 = vpack.c.b16 %v3403, %v3399
        %v4868 = vpack.c.b16 %v3404, %v3400
        %v4869 = vpack.c.b16 %v3405, %v3401
        %v4870 = vpack.c.b16 %v3406, %v3402
        %v4871 = vpack.c.b16 %v3411, %v3407
        %v4872 = vpack.c.b16 %v3412, %v3408
        %v4873 = vpack.c.b16 %v3413, %v3409
        %v4874 = vpack.c.b16 %v3414, %v3410
        %v4875 = vpack.c.b16 %v3419, %v3415
        %v4876 = vpack.c.b16 %v3420, %v3416
        %v4877 = vpack.c.b16 %v3421, %v3417
        %v4878 = vpack.c.b16 %v3422, %v3418
        %v4879 = vpack.c.b16 %v3427, %v3423
        %v4880 = vpack.c.b16 %v3428, %v3424
        %v4881 = vpack.c.b16 %v3429, %v3425
        %v4882 = vpack.c.b16 %v3430, %v3426
        %v4883 = vpack.c.b16 %v3435, %v3431
        %v4884 = vpack.c.b16 %v3436, %v3432
        %v4885 = vpack.c.b16 %v3437, %v3433
        %v4886 = vpack.c.b16 %v3438, %v3434
        %v4887 = vpack.c.b16 %v3443, %v3439
        %v4888 = vpack.c.b16 %v3444, %v3440
        %v4889 = vpack.c.b16 %v3445, %v3441
        %v4890 = vpack.c.b16 %v3446, %v3442
        %v4891 = vpack.c.b16 %v3451, %v3447
        %v4892 = vpack.c.b16 %v3452, %v3448
        %v4893 = vpack.c.b16 %v3453, %v3449
        %v4894 = vpack.c.b16 %v3454, %v3450
        %v4895 = vpack.c.b16 %v3459, %v3455
        %v4896 = vpack.c.b16 %v3460, %v3456
        %v4897 = vpack.c.b16 %v3461, %v3457
        %v4898 = vpack.c.b16 %v3462, %v3458
        %v4899 = vpack.c.b16 %v3467, %v3463
        %v4900 = vpack.c.b16 %v3468, %v3464
        %v4901 = vpack.c.b16 %v3469, %v3465
        %v4902 = vpack.c.b16 %v3470, %v3466
        %v4903 = vpack.c.b16 %v3475, %v3471
        %v4904 = vpack.c.b16 %v3476, %v3472
        %v4905 = vpack.c.b16 %v3477, %v3473
        %v4906 = vpack.c.b16 %v3478, %v3474
        %v4907 = vpack.c.b16 %v3483, %v3479
        %v4908 = vpack.c.b16 %v3484, %v3480
        %v4909 = vpack.c.b16 %v3485, %v3481
        %v4910 = vpack.c.b16 %v3486, %v3482
        %v4911 = vpack.c.b16 %v3491, %v3487
        %v4912 = vpack.c.b16 %v3492, %v3488
        %v4913 = vpack.c.b16 %v3493, %v3489
        %v4914 = vpack.c.b16 %v3494, %v3490
        %v4915 = vpack.c.b16 %v3499, %v3495
        %v4916 = vpack.c.b16 %v3500, %v3496
        %v4917 = vpack.c.b16 %v3501, %v3497
        %v4918 = vpack.c.b16 %v3502, %v3498
        %v4919 = vpack.c.b16 %v3507, %v3503
        %v4920 = vpack.c.b16 %v3508, %v3504
        %v4921 = vpack.c.b16 %v3509, %v3505
        %v4922 = vpack.c.b16 %v3510, %v3506
        %v4923 = vpack.c.b16 %v3515, %v3511
        %v4924 = vpack.c.b16 %v3516, %v3512
        %v4925 = vpack.c.b16 %v3517, %v3513
        %v4926 = vpack.c.b16 %v3518, %v3514
        %v4927 = vpack.c.b16 %v3523, %v3519
        %v4928 = vpack.c.b16 %v3524, %v3520
        %v4929 = vpack.c.b16 %v3525, %v3521
        %v4930 = vpack.c.b16 %v3526, %v3522
        %v4931 = vpack.c.b16 %v3531, %v3527
        %v4932 = vpack.c.b16 %v3532, %v3528
        %v4933 = vpack.c.b16 %v3533, %v3529
        %v4934 = vpack.c.b16 %v3534, %v3530
        %v4935 = vpack.c.b16 %v3539, %v3535
        %v4936 = vpack.c.b16 %v3540, %v3536
        %v4937 = vpack.c.b16 %v3541, %v3537
        %v4938 = vpack.c.b16 %v3542, %v3538
        %v4939 = vpack.c.b16 %v3547, %v3543
        %v4940 = vpack.c.b16 %v3548, %v3544
        %v4941 = vpack.c.b16 %v3549, %v3545
        %v4942 = vpack.c.b16 %v3550, %v3546
        %v4943 = vpack.c.b16 %v3555, %v3551
        %v4944 = vpack.c.b16 %v3556, %v3552
        %v4945 = vpack.c.b16 %v3557, %v3553
        %v4946 = vpack.c.b16 %v3558, %v3554
        %v4947 = vpack.c.b16 %v3563, %v3559
        %v4948 = vpack.c.b16 %v3564, %v3560
        %v4949 = vpack.c.b16 %v3565, %v3561
        %v4950 = vpack.c.b16 %v3566, %v3562
        %v4951 = vpack.c.b16 %v3571, %v3567
        %v4952 = vpack.c.b16 %v3572, %v3568
        %v4953 = vpack.c.b16 %v3573, %v3569
        %v4954 = vpack.c.b16 %v3574, %v3570
        %v4955 = vpack.c.b16 %v3579, %v3575
        %v4956 = vpack.c.b16 %v3580, %v3576
        %v4957 = vpack.c.b16 %v3581, %v3577
        %v4958 = vpack.c.b16 %v3582, %v3578
        %v4959 = vpack.c.b16 %v3587, %v3583
        %v4960 = vpack.c.b16 %v3588, %v3584
        %v4961 = vpack.c.b16 %v3589, %v3585
        %v4962 = vpack.c.b16 %v3590, %v3586
        %v4963 = vpack.c.b16 %v3595, %v3591
        %v4964 = vpack.c.b16 %v3596, %v3592
        %v4965 = vpack.c.b16 %v3597, %v3593
        %v4966 = vpack.c.b16 %v3598, %v3594
        %v4967 = vpack.c.b16 %v3603, %v3599
        %v4968 = vpack.c.b16 %v3604, %v3600
        %v4969 = vpack.c.b16 %v3605, %v3601
        %v4970 = vpack.c.b16 %v3606, %v3602
        %v4971 = vpack.c.b16 %v3611, %v3607
        %v4972 = vpack.c.b16 %v3612, %v3608
        %v4973 = vpack.c.b16 %v3613, %v3609
        %v4974 = vpack.c.b16 %v3614, %v3610
        %v4975 = vpack.c.b16 %v3619, %v3615
        %v4976 = vpack.c.b16 %v3620, %v3616
        %v4977 = vpack.c.b16 %v3621, %v3617
        %v4978 = vpack.c.b16 %v3622, %v3618
        %v4979 = vpack.c.b16 %v3627, %v3623
        %v4980 = vpack.c.b16 %v3628, %v3624
        %v4981 = vpack.c.b16 %v3629, %v3625
        %v4982 = vpack.c.b16 %v3630, %v3626
        %v4983 = vpack.c.b16 %v3635, %v3631
        %v4984 = vpack.c.b16 %v3636, %v3632
        %v4985 = vpack.c.b16 %v3637, %v3633
        %v4986 = vpack.c.b16 %v3638, %v3634
        %v4987 = vpack.c.b16 %v3643, %v3639
        %v4988 = vpack.c.b16 %v3644, %v3640
        %v4989 = vpack.c.b16 %v3645, %v3641
        %v4990 = vpack.c.b16 %v3646, %v3642
        %v4991 = vpack.c.b16 %v3651, %v3647
        %v4992 = vpack.c.b16 %v3652, %v3648
        %v4993 = vpack.c.b16 %v3653, %v3649
        %v4994 = vpack.c.b16 %v3654, %v3650
        %v4995 = vpack.c.b16 %v3659, %v3655
        %v4996 = vpack.c.b16 %v3660, %v3656
        %v4997 = vpack.c.b16 %v3661, %v3657
        %v4998 = vpack.c.b16 %v3662, %v3658
        %v4999 = vpack.c.b16 %v3667, %v3663
        %v5000 = vpack.c.b16 %v3668, %v3664
        %v5001 = vpack.c.b16 %v3669, %v3665
        %v5002 = vpack.c.b16 %v3670, %v3666
        %v5003 = vpack.c.b16 %v3675, %v3671
        %v5004 = vpack.c.b16 %v3676, %v3672
        %v5005 = vpack.c.b16 %v3677, %v3673
        %v5006 = vpack.c.b16 %v3678, %v3674
        %v5007 = vpack.c.b16 %v3683, %v3679
        %v5008 = vpack.c.b16 %v3684, %v3680
        %v5009 = vpack.c.b16 %v3685, %v3681
        %v5010 = vpack.c.b16 %v3686, %v3682
        %v5011 = vpack.c.b16 %v3691, %v3687
        %v5012 = vpack.c.b16 %v3692, %v3688
        %v5013 = vpack.c.b16 %v3693, %v3689
        %v5014 = vpack.c.b16 %v3694, %v3690
        %v5015 = vpack.c.b16 %v3699, %v3695
        %v5016 = vpack.c.b16 %v3700, %v3696
        %v5017 = vpack.c.b16 %v3701, %v3697
        %v5018 = vpack.c.b16 %v3702, %v3698
        %v5019 = vpack.c.b16 %v3707, %v3703
        %v5020 = vpack.c.b16 %v3708, %v3704
        %v5021 = vpack.c.b16 %v3709, %v3705
        %v5022 = vpack.c.b16 %v3710, %v3706
        %v5023 = vpack.c.b16 %v3715, %v3711
        %v5024 = vpack.c.b16 %v3716, %v3712
        %v5025 = vpack.c.b16 %v3717, %v3713
        %v5026 = vpack.c.b16 %v3718, %v3714
        %v5027 = vpack.c.b16 %v3723, %v3719
        %v5028 = vpack.c.b16 %v3724, %v3720
        %v5029 = vpack.c.b16 %v3725, %v3721
        %v5030 = vpack.c.b16 %v3726, %v3722
        %v5031 = vpack.c.b16 %v3731, %v3727
        %v5032 = vpack.c.b16 %v3732, %v3728
        %v5033 = vpack.c.b16 %v3733, %v3729
        %v5034 = vpack.c.b16 %v3734, %v3730
        %v5035 = vpack.c.b16 %v3739, %v3735
        %v5036 = vpack.c.b16 %v3740, %v3736
        %v5037 = vpack.c.b16 %v3741, %v3737
        %v5038 = vpack.c.b16 %v3742, %v3738
        %v5039 = vpack.c.b16 %v3747, %v3743
        %v5040 = vpack.c.b16 %v3748, %v3744
        %v5041 = vpack.c.b16 %v3749, %v3745
        %v5042 = vpack.c.b16 %v3750, %v3746
        %v5043 = vpack.c.b16 %v3755, %v3751
        %v5044 = vpack.c.b16 %v3756, %v3752
        %v5045 = vpack.c.b16 %v3757, %v3753
        %v5046 = vpack.c.b16 %v3758, %v3754
        %v5047 = vpack.c.b16 %v3763, %v3759
        %v5048 = vpack.c.b16 %v3764, %v3760
        %v5049 = vpack.c.b16 %v3765, %v3761
        %v5050 = vpack.c.b16 %v3766, %v3762
        %v5051 = vpack.c.b16 %v3771, %v3767
        %v5052 = vpack.c.b16 %v3772, %v3768
        %v5053 = vpack.c.b16 %v3773, %v3769
        %v5054 = vpack.c.b16 %v3774, %v3770
        %v5055 = vpack.c.b16 %v3779, %v3775
        %v5056 = vpack.c.b16 %v3780, %v3776
        %v5057 = vpack.c.b16 %v3781, %v3777
        %v5058 = vpack.c.b16 %v3782, %v3778
        %v5059 = vpack.c.b16 %v3787, %v3783
        %v5060 = vpack.c.b16 %v3788, %v3784
        %v5061 = vpack.c.b16 %v3789, %v3785
        %v5062 = vpack.c.b16 %v3790, %v3786
        %v5063 = vpack.c.b16 %v3795, %v3791
        %v5064 = vpack.c.b16 %v3796, %v3792
        %v5065 = vpack.c.b16 %v3797, %v3793
        %v5066 = vpack.c.b16 %v3798, %v3794
        %v5067 = vpack.c.b16 %v3803, %v3799
        %v5068 = vpack.c.b16 %v3804, %v3800
        %v5069 = vpack.c.b16 %v3805, %v3801
        %v5070 = vpack.c.b16 %v3806, %v3802
        %v5071 = vpack.c.b16 %v3811, %v3807
        %v5072 = vpack.c.b16 %v3812, %v3808
        %v5073 = vpack.c.b16 %v3813, %v3809
        %v5074 = vpack.c.b16 %v3814, %v3810
        %v5075 = vpack.c.b16 %v3819, %v3815
        %v5076 = vpack.c.b16 %v3820, %v3816
        %v5077 = vpack.c.b16 %v3821, %v3817
        %v5078 = vpack.c.b16 %v3822, %v3818
        %v5079 = vpack.c.b16 %v3827, %v3823
        %v5080 = vpack.c.b16 %v3828, %v3824
        %v5081 = vpack.c.b16 %v3829, %v3825
        %v5082 = vpack.c.b16 %v3830, %v3826
        %v5083 = vpack.c.b16 %v3835, %v3831
        %v5084 = vpack.c.b16 %v3836, %v3832
        %v5085 = vpack.c.b16 %v3837, %v3833
        %v5086 = vpack.c.b16 %v3838, %v3834
        %v5087 = vpack.c.b16 %v3843, %v3839
        %v5088 = vpack.c.b16 %v3844, %v3840
        %v5089 = vpack.c.b16 %v3845, %v3841
        %v5090 = vpack.c.b16 %v3846, %v3842
        %v5091 = vpack.c.b16 %v3851, %v3847
        %v5092 = vpack.c.b16 %v3852, %v3848
        %v5093 = vpack.c.b16 %v3853, %v3849
        %v5094 = vpack.c.b16 %v3854, %v3850
        %v5095 = vpack.c.b16 %v3859, %v3855
        %v5096 = vpack.c.b16 %v3860, %v3856
        %v5097 = vpack.c.b16 %v3861, %v3857
        %v5098 = vpack.c.b16 %v3862, %v3858
        %v5099 = vpack.c.b16 %v3867, %v3863
        %v5100 = vpack.c.b16 %v3868, %v3864
        %v5101 = vpack.c.b16 %v3869, %v3865
        %v5102 = vpack.c.b16 %v3870, %v3866
        %v5103 = vpack.c.b16 %v3875, %v3871
        %v5104 = vpack.c.b16 %v3876, %v3872
        %v5105 = vpack.c.b16 %v3877, %v3873
        %v5106 = vpack.c.b16 %v3878, %v3874
        %v5107 = vpack.c.b16 %v3883, %v3879
        %v5108 = vpack.c.b16 %v3884, %v3880
        %v5109 = vpack.c.b16 %v3885, %v3881
        %v5110 = vpack.c.b16 %v3886, %v3882
        %v5111 = vpack.c.b16 %v3891, %v3887
        %v5112 = vpack.c.b16 %v3892, %v3888
        %v5113 = vpack.c.b16 %v3893, %v3889
        %v5114 = vpack.c.b16 %v3894, %v3890
        %v5115 = vpack.c.b16 %v3899, %v3895
        %v5116 = vpack.c.b16 %v3900, %v3896
        %v5117 = vpack.c.b16 %v3901, %v3897
        %v5118 = vpack.c.b16 %v3902, %v3898
        %v5119 = vpack.c.b16 %v3907, %v3903
        %v5120 = vpack.c.b16 %v3908, %v3904
        %v5121 = vpack.c.b16 %v3909, %v3905
        %v5122 = vpack.c.b16 %v3910, %v3906
        %v5123 = vpack.c.b16 %v3915, %v3911
        %v5124 = vpack.c.b16 %v3916, %v3912
        %v5125 = vpack.c.b16 %v3917, %v3913
        %v5126 = vpack.c.b16 %v3918, %v3914
        %v5127 = vpack.c.b16 %v3923, %v3919
        %v5128 = vpack.c.b16 %v3924, %v3920
        %v5129 = vpack.c.b16 %v3925, %v3921
        %v5130 = vpack.c.b16 %v3926, %v3922
        %v5131 = vpack.c.b16 %v3931, %v3927
        %v5132 = vpack.c.b16 %v3932, %v3928
        %v5133 = vpack.c.b16 %v3933, %v3929
        %v5134 = vpack.c.b16 %v3934, %v3930
        %v5135 = vpack.c.b16 %v3939, %v3935
        %v5136 = vpack.c.b16 %v3940, %v3936
        %v5137 = vpack.c.b16 %v3941, %v3937
        %v5138 = vpack.c.b16 %v3942, %v3938
        %v5139 = vpack.c.b16 %v3947, %v3943
        %v5140 = vpack.c.b16 %v3948, %v3944
        %v5141 = vpack.c.b16 %v3949, %v3945
        %v5142 = vpack.c.b16 %v3950, %v3946
        %v5143 = vpack.c.b16 %v3955, %v3951
        %v5144 = vpack.c.b16 %v3956, %v3952
        %v5145 = vpack.c.b16 %v3957, %v3953
        %v5146 = vpack.c.b16 %v3958, %v3954
        %v5147 = vpack.c.b16 %v3963, %v3959
        %v5148 = vpack.c.b16 %v3964, %v3960
        %v5149 = vpack.c.b16 %v3965, %v3961
        %v5150 = vpack.c.b16 %v3966, %v3962
        %v5151 = vpack.c.b16 %v3971, %v3967
        %v5152 = vpack.c.b16 %v3972, %v3968
        %v5153 = vpack.c.b16 %v3973, %v3969
        %v5154 = vpack.c.b16 %v3974, %v3970
        %v5155 = vpack.c.b16 %v3979, %v3975
        %v5156 = vpack.c.b16 %v3980, %v3976
        %v5157 = vpack.c.b16 %v3981, %v3977
        %v5158 = vpack.c.b16 %v3982, %v3978
        %v5159 = vpack.c.b16 %v3987, %v3983
        %v5160 = vpack.c.b16 %v3988, %v3984
        %v5161 = vpack.c.b16 %v3989, %v3985
        %v5162 = vpack.c.b16 %v3990, %v3986
        %v5163 = vpack.c.b16 %v3995, %v3991
        %v5164 = vpack.c.b16 %v3996, %v3992
        %v5165 = vpack.c.b16 %v3997, %v3993
        %v5166 = vpack.c.b16 %v3998, %v3994
        %v5167 = vpack.c.b16 %v4003, %v3999
        %v5168 = vpack.c.b16 %v4004, %v4000
        %v5169 = vpack.c.b16 %v4005, %v4001
        %v5170 = vpack.c.b16 %v4006, %v4002
        %v5171 = vpack.c.b16 %v4011, %v4007
        %v5172 = vpack.c.b16 %v4012, %v4008
        %v5173 = vpack.c.b16 %v4013, %v4009
        %v5174 = vpack.c.b16 %v4014, %v4010
        %v5175 = vpack.c.b16 %v4019, %v4015
        %v5176 = vpack.c.b16 %v4020, %v4016
        %v5177 = vpack.c.b16 %v4021, %v4017
        %v5178 = vpack.c.b16 %v4022, %v4018
        %v5179 = vpack.c.b16 %v4027, %v4023
        %v5180 = vpack.c.b16 %v4028, %v4024
        %v5181 = vpack.c.b16 %v4029, %v4025
        %v5182 = vpack.c.b16 %v4030, %v4026
        %v5183 = vpack.c.b16 %v4035, %v4031
        %v5184 = vpack.c.b16 %v4036, %v4032
        %v5185 = vpack.c.b16 %v4037, %v4033
        %v5186 = vpack.c.b16 %v4038, %v4034
        %v5187 = vpack.c.b16 %v4043, %v4039
        %v5188 = vpack.c.b16 %v4044, %v4040
        %v5189 = vpack.c.b16 %v4045, %v4041
        %v5190 = vpack.c.b16 %v4046, %v4042
        %v5191 = vpack.c.b16 %v4051, %v4047
        %v5192 = vpack.c.b16 %v4052, %v4048
        %v5193 = vpack.c.b16 %v4053, %v4049
        %v5194 = vpack.c.b16 %v4054, %v4050
        %v5195 = vpack.c.b16 %v4059, %v4055
        %v5196 = vpack.c.b16 %v4060, %v4056
        %v5197 = vpack.c.b16 %v4061, %v4057
        %v5198 = vpack.c.b16 %v4062, %v4058
        %v5199 = vpack.c.b16 %v4067, %v4063
        %v5200 = vpack.c.b16 %v4068, %v4064
        %v5201 = vpack.c.b16 %v4069, %v4065
        %v5202 = vpack.c.b16 %v4070, %v4066
        %v5203 = vpack.c.b16 %v4075, %v4071
        %v5204 = vpack.c.b16 %v4076, %v4072
        %v5205 = vpack.c.b16 %v4077, %v4073
        %v5206 = vpack.c.b16 %v4078, %v4074
        %v5207 = vpack.c.b16 %v4083, %v4079
        %v5208 = vpack.c.b16 %v4084, %v4080
        %v5209 = vpack.c.b16 %v4085, %v4081
        %v5210 = vpack.c.b16 %v4086, %v4082
        %v5211 = vpack.c.b16 %v4091, %v4087
        %v5212 = vpack.c.b16 %v4092, %v4088
        %v5213 = vpack.c.b16 %v4093, %v4089
        %v5214 = vpack.c.b16 %v4094, %v4090
        %v5215 = vpack.c.b16 %v4099, %v4095
        %v5216 = vpack.c.b16 %v4100, %v4096
        %v5217 = vpack.c.b16 %v4101, %v4097
        %v5218 = vpack.c.b16 %v4102, %v4098
        %v5219 = vpack.c.b16 %v4107, %v4103
        %v5220 = vpack.c.b16 %v4108, %v4104
        %v5221 = vpack.c.b16 %v4109, %v4105
        %v5222 = vpack.c.b16 %v4110, %v4106
        %v5223 = vpack.c.b16 %v4115, %v4111
        %v5224 = vpack.c.b16 %v4116, %v4112
        %v5225 = vpack.c.b16 %v4117, %v4113
        %v5226 = vpack.c.b16 %v4118, %v4114
        %v5227 = vpack.c.b16 %v4123, %v4119
        %v5228 = vpack.c.b16 %v4124, %v4120
        %v5229 = vpack.c.b16 %v4125, %v4121
        %v5230 = vpack.c.b16 %v4126, %v4122
        %v5231 = vpack.c.b16 %v4131, %v4127
        %v5232 = vpack.c.b16 %v4132, %v4128
        %v5233 = vpack.c.b16 %v4133, %v4129
        %v5234 = vpack.c.b16 %v4134, %v4130
        %v5235 = vpack.c.b16 %v4139, %v4135
        %v5236 = vpack.c.b16 %v4140, %v4136
        %v5237 = vpack.c.b16 %v4141, %v4137
        %v5238 = vpack.c.b16 %v4142, %v4138
        %v5239 = vpack.c.b16 %v4147, %v4143
        %v5240 = vpack.c.b16 %v4148, %v4144
        %v5241 = vpack.c.b16 %v4149, %v4145
        %v5242 = vpack.c.b16 %v4150, %v4146
        %v5243 = vpack.c.b16 %v4155, %v4151
        %v5244 = vpack.c.b16 %v4156, %v4152
        %v5245 = vpack.c.b16 %v4157, %v4153
        %v5246 = vpack.c.b16 %v4158, %v4154
        %v5247 = vpack.c.b16 %v4163, %v4159
        %v5248 = vpack.c.b16 %v4164, %v4160
        %v5249 = vpack.c.b16 %v4165, %v4161
        %v5250 = vpack.c.b16 %v4166, %v4162
        %v5251 = vpack.c.b16 %v4171, %v4167
        %v5252 = vpack.c.b16 %v4172, %v4168
        %v5253 = vpack.c.b16 %v4173, %v4169
        %v5254 = vpack.c.b16 %v4174, %v4170
        %v5255 = vpack.c.b16 %v4179, %v4175
        %v5256 = vpack.c.b16 %v4180, %v4176
        %v5257 = vpack.c.b16 %v4181, %v4177
        %v5258 = vpack.c.b16 %v4182, %v4178
        %v5259 = vpack.c.b16 %v4187, %v4183
        %v5260 = vpack.c.b16 %v4188, %v4184
        %v5261 = vpack.c.b16 %v4189, %v4185
        %v5262 = vpack.c.b16 %v4190, %v4186
        %v5263 = vpack.c.b16 %v4195, %v4191
        %v5264 = vpack.c.b16 %v4196, %v4192
        %v5265 = vpack.c.b16 %v4197, %v4193
        %v5266 = vpack.c.b16 %v4198, %v4194
        %v5267 = vpack.c.b16 %v4203, %v4199
        %v5268 = vpack.c.b16 %v4204, %v4200
        %v5269 = vpack.c.b16 %v4205, %v4201
        %v5270 = vpack.c.b16 %v4206, %v4202
        %v5271 = vpack.c.b16 %v4211, %v4207
        %v5272 = vpack.c.b16 %v4212, %v4208
        %v5273 = vpack.c.b16 %v4213, %v4209
        %v5274 = vpack.c.b16 %v4214, %v4210
        %v5275 = vpack.c.b16 %v4219, %v4215
        %v5276 = vpack.c.b16 %v4220, %v4216
        %v5277 = vpack.c.b16 %v4221, %v4217
        %v5278 = vpack.c.b16 %v4222, %v4218
        %v5279 = vpack.c.b16 %v4227, %v4223
        %v5280 = vpack.c.b16 %v4228, %v4224
        %v5281 = vpack.c.b16 %v4229, %v4225
        %v5282 = vpack.c.b16 %v4230, %v4226
        %v5283 = vpack.c.b16 %v4235, %v4231
        %v5284 = vpack.c.b16 %v4236, %v4232
        %v5285 = vpack.c.b16 %v4237, %v4233
        %v5286 = vpack.c.b16 %v4238, %v4234
        %v5287 = vpack.c.b16 %v4243, %v4239
        %v5288 = vpack.c.b16 %v4244, %v4240
        %v5289 = vpack.c.b16 %v4245, %v4241
        %v5290 = vpack.c.b16 %v4246, %v4242
        %v5291 = vpack.c.b16 %v4251, %v4247
        %v5292 = vpack.c.b16 %v4252, %v4248
        %v5293 = vpack.c.b16 %v4253, %v4249
        %v5294 = vpack.c.b16 %v4254, %v4250
        %v5295 = vpack.c.b16 %v4259, %v4255
        %v5296 = vpack.c.b16 %v4260, %v4256
        %v5297 = vpack.c.b16 %v4261, %v4257
        %v5298 = vpack.c.b16 %v4262, %v4258
        %v5299 = vpack.c.b16 %v4267, %v4263
        %v5300 = vpack.c.b16 %v4268, %v4264
        %v5301 = vpack.c.b16 %v4269, %v4265
        %v5302 = vpack.c.b16 %v4270, %v4266
        %v5303 = vpack.c.b16 %v4275, %v4271
        %v5304 = vpack.c.b16 %v4276, %v4272
        %v5305 = vpack.c.b16 %v4277, %v4273
        %v5306 = vpack.c.b16 %v4278, %v4274
        %v5307 = vpack.c.b16 %v4283, %v4279
        %v5308 = vpack.c.b16 %v4284, %v4280
        %v5309 = vpack.c.b16 %v4285, %v4281
        %v5310 = vpack.c.b16 %v4286, %v4282
        %v5311 = vpack.c.b16 %v4291, %v4287
        %v5312 = vpack.c.b16 %v4292, %v4288
        %v5313 = vpack.c.b16 %v4293, %v4289
        %v5314 = vpack.c.b16 %v4294, %v4290
        %v5315 = vpack.c.b16 %v4299, %v4295
        %v5316 = vpack.c.b16 %v4300, %v4296
        %v5317 = vpack.c.b16 %v4301, %v4297
        %v5318 = vpack.c.b16 %v4302, %v4298
        %v5319 = vpack.c.b16 %v4307, %v4303
        %v5320 = vpack.c.b16 %v4308, %v4304
        %v5321 = vpack.c.b16 %v4309, %v4305
        %v5322 = vpack.c.b16 %v4310, %v4306
        %v5323 = vpack.c.b16 %v4315, %v4311
        %v5324 = vpack.c.b16 %v4316, %v4312
        %v5325 = vpack.c.b16 %v4317, %v4313
        %v5326 = vpack.c.b16 %v4318, %v4314
        %v5327 = vpack.c.b16 %v4323, %v4319
        %v5328 = vpack.c.b16 %v4324, %v4320
        %v5329 = vpack.c.b16 %v4325, %v4321
        %v5330 = vpack.c.b16 %v4326, %v4322
        %v5331 = vpack.c.b16 %v4331, %v4327
        %v5332 = vpack.c.b16 %v4332, %v4328
        %v5333 = vpack.c.b16 %v4333, %v4329
        %v5334 = vpack.c.b16 %v4334, %v4330
        %v5335 = vpack.c.b16 %v4339, %v4335
        %v5336 = vpack.c.b16 %v4340, %v4336
        %v5337 = vpack.c.b16 %v4341, %v4337
        %v5338 = vpack.c.b16 %v4342, %v4338
        %v5339 = vpack.c.b16 %v4347, %v4343
        %v5340 = vpack.c.b16 %v4348, %v4344
        %v5341 = vpack.c.b16 %v4349, %v4345
        %v5342 = vpack.c.b16 %v4350, %v4346
        %v5343 = vpack.c.b16 %v4355, %v4351
        %v5344 = vpack.c.b16 %v4356, %v4352
        %v5345 = vpack.c.b16 %v4357, %v4353
        %v5346 = vpack.c.b16 %v4358, %v4354
        %v5347 = vpack.c.b16 %v4363, %v4359
        %v5348 = vpack.c.b16 %v4364, %v4360
        %v5349 = vpack.c.b16 %v4365, %v4361
        %v5350 = vpack.c.b16 %v4366, %v4362
        %v5351 = vpack.c.b16 %v4371, %v4367
        %v5352 = vpack.c.b16 %v4372, %v4368
        %v5353 = vpack.c.b16 %v4373, %v4369
        %v5354 = vpack.c.b16 %v4374, %v4370
        %v5355 = vpack.c.b16 %v4379, %v4375
        %v5356 = vpack.c.b16 %v4380, %v4376
        %v5357 = vpack.c.b16 %v4381, %v4377
        %v5358 = vpack.c.b16 %v4382, %v4378
        %v5359 = vpack.c.b16 %v4387, %v4383
        %v5360 = vpack.c.b16 %v4388, %v4384
        %v5361 = vpack.c.b16 %v4389, %v4385
        %v5362 = vpack.c.b16 %v4390, %v4386
        %v5363 = vpack.c.b16 %v4395, %v4391
        %v5364 = vpack.c.b16 %v4396, %v4392
        %v5365 = vpack.c.b16 %v4397, %v4393
        %v5366 = vpack.c.b16 %v4398, %v4394
        %v5367 = vpack.c.b16 %v4403, %v4399
        %v5368 = vpack.c.b16 %v4404, %v4400
        %v5369 = vpack.c.b16 %v4405, %v4401
        %v5370 = vpack.c.b16 %v4406, %v4402
        %v5371 = vpack.c.b16 %v4411, %v4407
        %v5372 = vpack.c.b16 %v4412, %v4408
        %v5373 = vpack.c.b16 %v4413, %v4409
        %v5374 = vpack.c.b16 %v4414, %v4410
        %6335 = vmatprep.subr.bf16.mxu0 %v4416
        %6336 = vmatpush1.bf16.msra.mxu0 %v4415
        %6337 = vmatprep.subr.bf16.mxu0 %v4420
        %6338 = vmatpush1.bf16.msra.mxu0 %v4419
        %6339 = vmatprep.subr.bf16.mxu0 %v4424
        %6340 = vmatpush1.bf16.msra.mxu0 %v4423
        %6341 = vmatprep.subr.bf16.mxu0 %v4428
        %6342 = vmatpush1.bf16.msra.mxu0 %v4427
        %6343 = vmatprep.subr.bf16.mxu0 %v4432
        %6344 = vmatpush1.bf16.msra.mxu0 %v4431
        %6345 = vmatprep.subr.bf16.mxu0 %v4436
        %6346 = vmatpush1.bf16.msra.mxu0 %v4435
        %6347 = vmatprep.subr.bf16.mxu0 %v4440
        %6348 = vmatpush1.bf16.msra.mxu0 %v4439
        %6349 = vmatprep.subr.bf16.mxu0 %v4444
        %6350 = vmatpush1.bf16.msra.mxu0 %v4443
        %6351 = vmatprep.subr.bf16.mxu0 %v4448
        %6352 = vmatpush1.bf16.msra.mxu0 %v4447
        %6353 = vmatprep.subr.bf16.mxu0 %v4452
        %6354 = vmatpush1.bf16.msra.mxu0 %v4451
        %6355 = vmatprep.subr.bf16.mxu0 %v4456
        %6356 = vmatpush1.bf16.msra.mxu0 %v4455
        %6357 = vmatprep.subr.bf16.mxu0 %v4460
        %6358 = vmatpush1.bf16.msra.mxu0 %v4459
        %6359 = vmatprep.subr.bf16.mxu0 %v4464
        %6360 = vmatpush1.bf16.msra.mxu0 %v4463
        %6361 = vmatprep.subr.bf16.mxu0 %v4468
        %6362 = vmatpush1.bf16.msra.mxu0 %v4467
        %6363 = vmatprep.subr.bf16.mxu0 %v4472
        %6364 = vmatpush1.bf16.msra.mxu0 %v4471
        %6365 = vmatprep.subr.bf16.mxu0 %v4476
        %6366 = vmatpush1.bf16.msra.mxu0 %v4475
        %6367 = vmatprep.mubr.bf16.mxu0 %v1348
        %6368 = vmatmul.mubr.bf16.gmra.mrb[0].mxu0 %v1334
        %v6369 = vpop.f32.mrb[0].mxu0
        %v6370 = vadd.f32 0.0, %v6369
        %v6371 = vpop.f32.mrb[0].mxu0
        %v6372 = vadd.f32 0.0, %v6371
        %v6373 = vpop.f32.mrb[0].mxu0
        %v6374 = vpop.f32.mrb[0].mxu0
        %6375 = vdwg.mxu0
        %6376 = vmatprep.subr.bf16.mxu0 %v4480
        %6377 = vmatpush1.bf16.msra.mxu0 %v4479
        %6378 = vmatprep.subr.bf16.mxu0 %v4484
        %6379 = vmatpush1.bf16.msra.mxu0 %v4483
        %6380 = vmatprep.subr.bf16.mxu0 %v4488
        %6381 = vmatpush1.bf16.msra.mxu0 %v4487
        %6382 = vmatprep.subr.bf16.mxu0 %v4492
        %6383 = vmatpush1.bf16.msra.mxu0 %v4491
        %6384 = vmatprep.subr.bf16.mxu0 %v4496
        %6385 = vmatpush1.bf16.msra.mxu0 %v4495
        %6386 = vmatprep.subr.bf16.mxu0 %v4500
        %6387 = vmatpush1.bf16.msra.mxu0 %v4499
        %6388 = vmatprep.subr.bf16.mxu0 %v4504
        %6389 = vmatpush1.bf16.msra.mxu0 %v4503
        %6390 = vmatprep.subr.bf16.mxu0 %v4508
        %6391 = vmatpush1.bf16.msra.mxu0 %v4507
        %6392 = vmatprep.subr.bf16.mxu0 %v4512
        %6393 = vmatpush1.bf16.msra.mxu0 %v4511
        %6394 = vmatprep.subr.bf16.mxu0 %v4516
        %6395 = vmatpush1.bf16.msra.mxu0 %v4515
        %6396 = vmatprep.subr.bf16.mxu0 %v4520
        %6397 = vmatpush1.bf16.msra.mxu0 %v4519
        %6398 = vmatprep.subr.bf16.mxu0 %v4524
        %6399 = vmatpush1.bf16.msra.mxu0 %v4523
        %6400 = vmatprep.subr.bf16.mxu0 %v4528
        %6401 = vmatpush1.bf16.msra.mxu0 %v4527
        %6402 = vmatprep.subr.bf16.mxu0 %v4532
        %6403 = vmatpush1.bf16.msra.mxu0 %v4531
        %6404 = vmatprep.subr.bf16.mxu0 %v4536
        %6405 = vmatpush1.bf16.msra.mxu0 %v4535
        %6406 = vmatprep.subr.bf16.mxu0 %v4540
        %6407 = vmatpush1.bf16.msra.mxu0 %v4539
        %6408 = vmatprep.mubr.bf16.mxu0 %v1358
        %6409 = vmatmul.mubr.bf16.gmra.mrb[0].mxu0 %v1356
        %v6410 = vpop.f32.mrb[0].mxu0
        %v6411 = vadd.f32 %v6370, %v6410
        %v6412 = vpop.f32.mrb[0].mxu0
        %v6413 = vadd.f32 %v6372, %v6412
        %v6414 = vpop.f32.mrb[0].mxu0
        %v6415 = vpop.f32.mrb[0].mxu0
        %6416 = vdwg.mxu0
        %6417 = vmatprep.subr.bf16.mxu0 %v4544
        %6418 = vmatpush1.bf16.msra.mxu0 %v4543
        %6419 = vmatprep.subr.bf16.mxu0 %v4548
        %6420 = vmatpush1.bf16.msra.mxu0 %v4547
        %6421 = vmatprep.subr.bf16.mxu0 %v4552
        %6422 = vmatpush1.bf16.msra.mxu0 %v4551
        %6423 = vmatprep.subr.bf16.mxu0 %v4556
        %6424 = vmatpush1.bf16.msra.mxu0 %v4555
        %6425 = vmatprep.subr.bf16.mxu0 %v4560
        %6426 = vmatpush1.bf16.msra.mxu0 %v4559
        %6427 = vmatprep.subr.bf16.mxu0 %v4564
        %6428 = vmatpush1.bf16.msra.mxu0 %v4563
        %6429 = vmatprep.subr.bf16.mxu0 %v4568
        %6430 = vmatpush1.bf16.msra.mxu0 %v4567
        %6431 = vmatprep.subr.bf16.mxu0 %v4572
        %6432 = vmatpush1.bf16.msra.mxu0 %v4571
        %6433 = vmatprep.subr.bf16.mxu0 %v4576
        %6434 = vmatpush1.bf16.msra.mxu0 %v4575
        %6435 = vmatprep.subr.bf16.mxu0 %v4580
        %6436 = vmatpush1.bf16.msra.mxu0 %v4579
        %6437 = vmatprep.subr.bf16.mxu0 %v4584
        %6438 = vmatpush1.bf16.msra.mxu0 %v4583
        %6439 = vmatprep.subr.bf16.mxu0 %v4588
        %6440 = vmatpush1.bf16.msra.mxu0 %v4587
        %6441 = vmatprep.subr.bf16.mxu0 %v4592
        %6442 = vmatpush1.bf16.msra.mxu0 %v4591
        %6443 = vmatprep.subr.bf16.mxu0 %v4596
        %6444 = vmatpush1.bf16.msra.mxu0 %v4595
        %6445 = vmatprep.subr.bf16.mxu0 %v4600
        %6446 = vmatpush1.bf16.msra.mxu0 %v4599
        %6447 = vmatprep.subr.bf16.mxu0 %v4604
        %6448 = vmatpush1.bf16.msra.mxu0 %v4603
        %6449 = vmatprep.mubr.bf16.mxu0 %v1355
        %6450 = vmatmul.mubr.bf16.gmra.mrb[0].mxu0 %v1341
        %v6451 = vpop.f32.mrb[0].mxu0
        %v6452 = vadd.f32 %v6411, %v6451
        %v6453 = vpop.f32.mrb[0].mxu0
        %v6454 = vadd.f32 %v6413, %v6453
        %v6455 = vpop.f32.mrb[0].mxu0
        %v6456 = vpop.f32.mrb[0].mxu0
        %6457 = vdwg.mxu0
        %6458 = vmatprep.subr.bf16.mxu0 %v4608
        %6459 = vmatpush1.bf16.msra.mxu0 %v4607
        %6460 = vmatprep.subr.bf16.mxu0 %v4612
        %6461 = vmatpush1.bf16.msra.mxu0 %v4611
        %6462 = vmatprep.subr.bf16.mxu0 %v4616
        %6463 = vmatpush1.bf16.msra.mxu0 %v4615
        %6464 = vmatprep.subr.bf16.mxu0 %v4620
        %6465 = vmatpush1.bf16.msra.mxu0 %v4619
        %6466 = vmatprep.subr.bf16.mxu0 %v4624
        %6467 = vmatpush1.bf16.msra.mxu0 %v4623
        %6468 = vmatprep.subr.bf16.mxu0 %v4628
        %6469 = vmatpush1.bf16.msra.mxu0 %v4627
        %6470 = vmatprep.subr.bf16.mxu0 %v4632
        %6471 = vmatpush1.bf16.msra.mxu0 %v4631
        %6472 = vmatprep.subr.bf16.mxu0 %v4636
        %6473 = vmatpush1.bf16.msra.mxu0 %v4635
        %6474 = vmatprep.subr.bf16.mxu0 %v4640
        %6475 = vmatpush1.bf16.msra.mxu0 %v4639
        %6476 = vmatprep.subr.bf16.mxu0 %v4644
        %6477 = vmatpush1.bf16.msra.mxu0 %v4643
        %6478 = vmatprep.subr.bf16.mxu0 %v4648
        %6479 = vmatpush1.bf16.msra.mxu0 %v4647
        %6480 = vmatprep.subr.bf16.mxu0 %v4652
        %6481 = vmatpush1.bf16.msra.mxu0 %v4651
        %6482 = vmatprep.subr.bf16.mxu0 %v4656
        %6483 = vmatpush1.bf16.msra.mxu0 %v4655
        %6484 = vmatprep.subr.bf16.mxu0 %v4660
        %6485 = vmatpush1.bf16.msra.mxu0 %v4659
        %6486 = vmatprep.subr.bf16.mxu0 %v4664
        %6487 = vmatpush1.bf16.msra.mxu0 %v4663
        %6488 = vmatprep.subr.bf16.mxu0 %v4668
        %6489 = vmatpush1.bf16.msra.mxu0 %v4667
        %6490 = vmatprep.mubr.bf16.mxu0 %v1359
        %6491 = vmatmul.mubr.bf16.gmra.mrb[0].mxu0 %v1357
        %v6492 = vpop.f32.mrb[0].mxu0
        %v6493 = vadd.f32 %v6452, %v6492
        %v6494 = vpop.f32.mrb[0].mxu0
        %v6495 = vadd.f32 %v6454, %v6494
        %v6496 = vpop.f32.mrb[0].mxu0
        %v6497 = vpop.f32.mrb[0].mxu0
        %6498 = vdwg.mxu0
        %6499 = vmatprep.subr.bf16.mxu0 %v4672
        %6500 = vmatpush1.bf16.msra.mxu0 %v4671
        %6501 = vmatprep.subr.bf16.mxu0 %v4676
        %6502 = vmatpush1.bf16.msra.mxu0 %v4675
        %6503 = vmatprep.subr.bf16.mxu0 %v4680
        %6504 = vmatpush1.bf16.msra.mxu0 %v4679
        %6505 = vmatprep.subr.bf16.mxu0 %v4684
        %6506 = vmatpush1.bf16.msra.mxu0 %v4683
        %6507 = vmatprep.subr.bf16.mxu0 %v4688
        %6508 = vmatpush1.bf16.msra.mxu0 %v4687
        %6509 = vmatprep.subr.bf16.mxu0 %v4692
        %6510 = vmatpush1.bf16.msra.mxu0 %v4691
        %6511 = vmatprep.subr.bf16.mxu0 %v4696
        %6512 = vmatpush1.bf16.msra.mxu0 %v4695
        %6513 = vmatprep.subr.bf16.mxu0 %v4700
        %6514 = vmatpush1.bf16.msra.mxu0 %v4699
        %6515 = vmatprep.subr.bf16.mxu0 %v4704
        %6516 = vmatpush1.bf16.msra.mxu0 %v4703
        %6517 = vmatprep.subr.bf16.mxu0 %v4708
        %6518 = vmatpush1.bf16.msra.mxu0 %v4707
        %6519 = vmatprep.subr.bf16.mxu0 %v4712
        %6520 = vmatpush1.bf16.msra.mxu0 %v4711
        %6521 = vmatprep.subr.bf16.mxu0 %v4716
        %6522 = vmatpush1.bf16.msra.mxu0 %v4715
        %6523 = vmatprep.subr.bf16.mxu0 %v4720
        %6524 = vmatpush1.bf16.msra.mxu0 %v4719
        %6525 = vmatprep.subr.bf16.mxu0 %v4724
        %6526 = vmatpush1.bf16.msra.mxu0 %v4723
        %6527 = vmatprep.subr.bf16.mxu0 %v4728
        %6528 = vmatpush1.bf16.msra.mxu0 %v4727
        %6529 = vmatprep.subr.bf16.mxu0 %v4732
        %6530 = vmatpush1.bf16.msra.mxu0 %v4731
        %6531 = vmatprep.mubr.bf16.mxu0 %v1397
        %6532 = vmatmul.mubr.bf16.gmra.mrb[0].mxu0 %v1383
        %v6533 = vpop.f32.mrb[0].mxu0
        %v6534 = vadd.f32 %v6493, %v6533
        %v6535 = vpop.f32.mrb[0].mxu0
        %v6536 = vadd.f32 %v6495, %v6535
        %v6537 = vpop.f32.mrb[0].mxu0
        %v6538 = vpop.f32.mrb[0].mxu0
        %6539 = vdwg.mxu0
        %6540 = vmatprep.subr.bf16.mxu0 %v4736
        %6541 = vmatpush1.bf16.msra.mxu0 %v4735
        %6542 = vmatprep.subr.bf16.mxu0 %v4740
        %6543 = vmatpush1.bf16.msra.mxu0 %v4739
        %6544 = vmatprep.subr.bf16.mxu0 %v4744
        %6545 = vmatpush1.bf16.msra.mxu0 %v4743
        %6546 = vmatprep.subr.bf16.mxu0 %v4748
        %6547 = vmatpush1.bf16.msra.mxu0 %v4747
        %6548 = vmatprep.subr.bf16.mxu0 %v4752
        %6549 = vmatpush1.bf16.msra.mxu0 %v4751
        %6550 = vmatprep.subr.bf16.mxu0 %v4756
        %6551 = vmatpush1.bf16.msra.mxu0 %v4755
        %6552 = vmatprep.subr.bf16.mxu0 %v4760
        %6553 = vmatpush1.bf16.msra.mxu0 %v4759
        %6554 = vmatprep.subr.bf16.mxu0 %v4764
        %6555 = vmatpush1.bf16.msra.mxu0 %v4763
        %6556 = vmatprep.subr.bf16.mxu0 %v4768
        %6557 = vmatpush1.bf16.msra.mxu0 %v4767
        %6558 = vmatprep.subr.bf16.mxu0 %v4772
        %6559 = vmatpush1.bf16.msra.mxu0 %v4771
        %6560 = vmatprep.subr.bf16.mxu0 %v4776
        %6561 = vmatpush1.bf16.msra.mxu0 %v4775
        %6562 = vmatprep.subr.bf16.mxu0 %v4780
        %6563 = vmatpush1.bf16.msra.mxu0 %v4779
        %6564 = vmatprep.subr.bf16.mxu0 %v4784
        %6565 = vmatpush1.bf16.msra.mxu0 %v4783
        %6566 = vmatprep.subr.bf16.mxu0 %v4788
        %6567 = vmatpush1.bf16.msra.mxu0 %v4787
        %6568 = vmatprep.subr.bf16.mxu0 %v4792
        %6569 = vmatpush1.bf16.msra.mxu0 %v4791
        %6570 = vmatprep.subr.bf16.mxu0 %v4796
        %6571 = vmatpush1.bf16.msra.mxu0 %v4795
        %6572 = vmatprep.mubr.bf16.mxu0 %v1407
        %6573 = vmatmul.mubr.bf16.gmra.mrb[0].mxu0 %v1405
        %v6574 = vpop.f32.mrb[0].mxu0
        %v6575 = vadd.f32 %v6534, %v6574
        %v6576 = vpop.f32.mrb[0].mxu0
        %v6577 = vadd.f32 %v6536, %v6576
        %v6578 = vpop.f32.mrb[0].mxu0
        %v6579 = vpop.f32.mrb[0].mxu0
        %6580 = vdwg.mxu0
        %6581 = vmatprep.subr.bf16.mxu0 %v4800
        %6582 = vmatpush1.bf16.msra.mxu0 %v4799
        %6583 = vmatprep.subr.bf16.mxu0 %v4804
        %6584 = vmatpush1.bf16.msra.mxu0 %v4803
        %6585 = vmatprep.subr.bf16.mxu0 %v4808
        %6586 = vmatpush1.bf16.msra.mxu0 %v4807
        %6587 = vmatprep.subr.bf16.mxu0 %v4812
        %6588 = vmatpush1.bf16.msra.mxu0 %v4811
        %6589 = vmatprep.subr.bf16.mxu0 %v4816
        %6590 = vmatpush1.bf16.msra.mxu0 %v4815
        %6591 = vmatprep.subr.bf16.mxu0 %v4820
        %6592 = vmatpush1.bf16.msra.mxu0 %v4819
        %6593 = vmatprep.subr.bf16.mxu0 %v4824
        %6594 = vmatpush1.bf16.msra.mxu0 %v4823
        %6595 = vmatprep.subr.bf16.mxu0 %v4828
        %6596 = vmatpush1.bf16.msra.mxu0 %v4827
        %6597 = vmatprep.subr.bf16.mxu0 %v4832
        %6598 = vmatpush1.bf16.msra.mxu0 %v4831
        %6599 = vmatprep.subr.bf16.mxu0 %v4836
        %6600 = vmatpush1.bf16.msra.mxu0 %v4835
        %6601 = vmatprep.subr.bf16.mxu0 %v4840
        %6602 = vmatpush1.bf16.msra.mxu0 %v4839
        %6603 = vmatprep.subr.bf16.mxu0 %v4844
        %6604 = vmatpush1.bf16.msra.mxu0 %v4843
        %6605 = vmatprep.subr.bf16.mxu0 %v4848
        %6606 = vmatpush1.bf16.msra.mxu0 %v4847
        %6607 = vmatprep.subr.bf16.mxu0 %v4852
        %6608 = vmatpush1.bf16.msra.mxu0 %v4851
        %6609 = vmatprep.subr.bf16.mxu0 %v4856
        %6610 = vmatpush1.bf16.msra.mxu0 %v4855
        %6611 = vmatprep.subr.bf16.mxu0 %v4860
        %6612 = vmatpush1.bf16.msra.mxu0 %v4859
        %6613 = vmatprep.mubr.bf16.mxu0 %v1404
        %6614 = vmatmul.mubr.bf16.gmra.mrb[0].mxu0 %v1390
        %v6615 = vpop.f32.mrb[0].mxu0
        %v6616 = vadd.f32 %v6575, %v6615
        %v6617 = vpop.f32.mrb[0].mxu0
        %v6618 = vadd.f32 %v6577, %v6617
        %v6619 = vpop.f32.mrb[0].mxu0
        %v6620 = vpop.f32.mrb[0].mxu0
        %6621 = vdwg.mxu0
        %6622 = vmatprep.subr.bf16.mxu0 %v4864
        %6623 = vmatpush1.bf16.msra.mxu0 %v4863
        %6624 = vmatprep.subr.bf16.mxu0 %v4868
        %6625 = vmatpush1.bf16.msra.mxu0 %v4867
        %6626 = vmatprep.subr.bf16.mxu0 %v4872
        %6627 = vmatpush1.bf16.msra.mxu0 %v4871
        %6628 = vmatprep.subr.bf16.mxu0 %v4876
        %6629 = vmatpush1.bf16.msra.mxu0 %v4875
        %6630 = vmatprep.subr.bf16.mxu0 %v4880
        %6631 = vmatpush1.bf16.msra.mxu0 %v4879
        %6632 = vmatprep.subr.bf16.mxu0 %v4884
        %6633 = vmatpush1.bf16.msra.mxu0 %v4883
        %6634 = vmatprep.subr.bf16.mxu0 %v4888
        %6635 = vmatpush1.bf16.msra.mxu0 %v4887
        %6636 = vmatprep.subr.bf16.mxu0 %v4892
        %6637 = vmatpush1.bf16.msra.mxu0 %v4891
        %6638 = vmatprep.subr.bf16.mxu0 %v4896
        %6639 = vmatpush1.bf16.msra.mxu0 %v4895
        %6640 = vmatprep.subr.bf16.mxu0 %v4900
        %6641 = vmatpush1.bf16.msra.mxu0 %v4899
        %6642 = vmatprep.subr.bf16.mxu0 %v4904
        %6643 = vmatpush1.bf16.msra.mxu0 %v4903
        %6644 = vmatprep.subr.bf16.mxu0 %v4908
        %6645 = vmatpush1.bf16.msra.mxu0 %v4907
        %6646 = vmatprep.subr.bf16.mxu0 %v4912
        %6647 = vmatpush1.bf16.msra.mxu0 %v4911
        %6648 = vmatprep.subr.bf16.mxu0 %v4916
        %6649 = vmatpush1.bf16.msra.mxu0 %v4915
        %6650 = vmatprep.subr.bf16.mxu0 %v4920
        %6651 = vmatpush1.bf16.msra.mxu0 %v4919
        %6652 = vmatprep.subr.bf16.mxu0 %v4924
        %6653 = vmatpush1.bf16.msra.mxu0 %v4923
        %6654 = vmatprep.mubr.bf16.mxu0 %v1408
        %6655 = vmatmul.mubr.bf16.gmra.mrb[0].mxu0 %v1406
        %v6656 = vpop.f32.mrb[0].mxu0
        %v6657 = vadd.f32 %v6616, %v6656
        %v6658 = vpop.f32.mrb[0].mxu0
        %v6659 = vadd.f32 %v6618, %v6658
        %v6660 = vpop.f32.mrb[0].mxu0
        %v6661 = vpop.f32.mrb[0].mxu0
        %6662 = vdwg.mxu0
        %6663 = vmatprep.subr.bf16.mxu0 %v4928
        %6664 = vmatpush1.bf16.msra.mxu0 %v4927
        %6665 = vmatprep.subr.bf16.mxu0 %v4932
        %6666 = vmatpush1.bf16.msra.mxu0 %v4931
        %6667 = vmatprep.subr.bf16.mxu0 %v4936
        %6668 = vmatpush1.bf16.msra.mxu0 %v4935
        %6669 = vmatprep.subr.bf16.mxu0 %v4940
        %6670 = vmatpush1.bf16.msra.mxu0 %v4939
        %6671 = vmatprep.subr.bf16.mxu0 %v4944
        %6672 = vmatpush1.bf16.msra.mxu0 %v4943
        %6673 = vmatprep.subr.bf16.mxu0 %v4948
        %6674 = vmatpush1.bf16.msra.mxu0 %v4947
        %6675 = vmatprep.subr.bf16.mxu0 %v4952
        %6676 = vmatpush1.bf16.msra.mxu0 %v4951
        %6677 = vmatprep.subr.bf16.mxu0 %v4956
        %6678 = vmatpush1.bf16.msra.mxu0 %v4955
        %6679 = vmatprep.subr.bf16.mxu0 %v4960
        %6680 = vmatpush1.bf16.msra.mxu0 %v4959
        %6681 = vmatprep.subr.bf16.mxu0 %v4964
        %6682 = vmatpush1.bf16.msra.mxu0 %v4963
        %6683 = vmatprep.subr.bf16.mxu0 %v4968
        %6684 = vmatpush1.bf16.msra.mxu0 %v4967
        %6685 = vmatprep.subr.bf16.mxu0 %v4972
        %6686 = vmatpush1.bf16.msra.mxu0 %v4971
        %6687 = vmatprep.subr.bf16.mxu0 %v4976
        %6688 = vmatpush1.bf16.msra.mxu0 %v4975
        %6689 = vmatprep.subr.bf16.mxu0 %v4980
        %6690 = vmatpush1.bf16.msra.mxu0 %v4979
        %6691 = vmatprep.subr.bf16.mxu0 %v4984
        %6692 = vmatpush1.bf16.msra.mxu0 %v4983
        %6693 = vmatprep.subr.bf16.mxu0 %v4988
        %6694 = vmatpush1.bf16.msra.mxu0 %v4987
        %6695 = vmatprep.mubr.bf16.mxu0 %v1446
        %6696 = vmatmul.mubr.bf16.gmra.mrb[0].mxu0 %v1432
        %v6697 = vpop.f32.mrb[0].mxu0
        %v6698 = vadd.f32 %v6657, %v6697
        %v6699 = vpop.f32.mrb[0].mxu0
        %v6700 = vadd.f32 %v6659, %v6699
        %v6701 = vpop.f32.mrb[0].mxu0
        %v6702 = vpop.f32.mrb[0].mxu0
        %6703 = vdwg.mxu0
        %6704 = vmatprep.subr.bf16.mxu0 %v4992
        %6705 = vmatpush1.bf16.msra.mxu0 %v4991
        %6706 = vmatprep.subr.bf16.mxu0 %v4996
        %6707 = vmatpush1.bf16.msra.mxu0 %v4995
        %6708 = vmatprep.subr.bf16.mxu0 %v5000
        %6709 = vmatpush1.bf16.msra.mxu0 %v4999
        %6710 = vmatprep.subr.bf16.mxu0 %v5004
        %6711 = vmatpush1.bf16.msra.mxu0 %v5003
        %6712 = vmatprep.subr.bf16.mxu0 %v5008
        %6713 = vmatpush1.bf16.msra.mxu0 %v5007
        %6714 = vmatprep.subr.bf16.mxu0 %v5012
        %6715 = vmatpush1.bf16.msra.mxu0 %v5011
        %6716 = vmatprep.subr.bf16.mxu0 %v5016
        %6717 = vmatpush1.bf16.msra.mxu0 %v5015
        %6718 = vmatprep.subr.bf16.mxu0 %v5020
        %6719 = vmatpush1.bf16.msra.mxu0 %v5019
        %6720 = vmatprep.subr.bf16.mxu0 %v5024
        %6721 = vmatpush1.bf16.msra.mxu0 %v5023
        %6722 = vmatprep.subr.bf16.mxu0 %v5028
        %6723 = vmatpush1.bf16.msra.mxu0 %v5027
        %6724 = vmatprep.subr.bf16.mxu0 %v5032
        %6725 = vmatpush1.bf16.msra.mxu0 %v5031
        %6726 = vmatprep.subr.bf16.mxu0 %v5036
        %6727 = vmatpush1.bf16.msra.mxu0 %v5035
        %6728 = vmatprep.subr.bf16.mxu0 %v5040
        %6729 = vmatpush1.bf16.msra.mxu0 %v5039
        %6730 = vmatprep.subr.bf16.mxu0 %v5044
        %6731 = vmatpush1.bf16.msra.mxu0 %v5043
        %6732 = vmatprep.subr.bf16.mxu0 %v5048
        %6733 = vmatpush1.bf16.msra.mxu0 %v5047
        %6734 = vmatprep.subr.bf16.mxu0 %v5052
        %6735 = vmatpush1.bf16.msra.mxu0 %v5051
        %6736 = vmatprep.mubr.bf16.mxu0 %v1456
        %6737 = vmatmul.mubr.bf16.gmra.mrb[0].mxu0 %v1454
        %v6738 = vpop.f32.mrb[0].mxu0
        %v6739 = vadd.f32 %v6698, %v6738
        %v6740 = vpop.f32.mrb[0].mxu0
        %v6741 = vadd.f32 %v6700, %v6740
        %v6742 = vpop.f32.mrb[0].mxu0
        %v6743 = vpop.f32.mrb[0].mxu0
        %6744 = vdwg.mxu0
        %6745 = vmatprep.subr.bf16.mxu0 %v5056
        %6746 = vmatpush1.bf16.msra.mxu0 %v5055
        %6747 = vmatprep.subr.bf16.mxu0 %v5060
        %6748 = vmatpush1.bf16.msra.mxu0 %v5059
        %6749 = vmatprep.subr.bf16.mxu0 %v5064
        %6750 = vmatpush1.bf16.msra.mxu0 %v5063
        %6751 = vmatprep.subr.bf16.mxu0 %v5068
        %6752 = vmatpush1.bf16.msra.mxu0 %v5067
        %6753 = vmatprep.subr.bf16.mxu0 %v5072
        %6754 = vmatpush1.bf16.msra.mxu0 %v5071
        %6755 = vmatprep.subr.bf16.mxu0 %v5076
        %6756 = vmatpush1.bf16.msra.mxu0 %v5075
        %6757 = vmatprep.subr.bf16.mxu0 %v5080
        %6758 = vmatpush1.bf16.msra.mxu0 %v5079
        %6759 = vmatprep.subr.bf16.mxu0 %v5084
        %6760 = vmatpush1.bf16.msra.mxu0 %v5083
        %6761 = vmatprep.subr.bf16.mxu0 %v5088
        %6762 = vmatpush1.bf16.msra.mxu0 %v5087
        %6763 = vmatprep.subr.bf16.mxu0 %v5092
        %6764 = vmatpush1.bf16.msra.mxu0 %v5091
        %6765 = vmatprep.subr.bf16.mxu0 %v5096
        %6766 = vmatpush1.bf16.msra.mxu0 %v5095
        %6767 = vmatprep.subr.bf16.mxu0 %v5100
        %6768 = vmatpush1.bf16.msra.mxu0 %v5099
        %6769 = vmatprep.subr.bf16.mxu0 %v5104
        %6770 = vmatpush1.bf16.msra.mxu0 %v5103
        %6771 = vmatprep.subr.bf16.mxu0 %v5108
        %6772 = vmatpush1.bf16.msra.mxu0 %v5107
        %6773 = vmatprep.subr.bf16.mxu0 %v5112
        %6774 = vmatpush1.bf16.msra.mxu0 %v5111
        %6775 = vmatprep.subr.bf16.mxu0 %v5116
        %6776 = vmatpush1.bf16.msra.mxu0 %v5115
        %6777 = vmatprep.mubr.bf16.mxu0 %v1453
        %6778 = vmatmul.mubr.bf16.gmra.mrb[0].mxu0 %v1439
        %v6779 = vpop.f32.mrb[0].mxu0
        %v6780 = vadd.f32 %v6739, %v6779
        %v6781 = vpop.f32.mrb[0].mxu0
        %v6782 = vadd.f32 %v6741, %v6781
        %v6783 = vpop.f32.mrb[0].mxu0
        %v6784 = vpop.f32.mrb[0].mxu0
        %6785 = vdwg.mxu0
        %6786 = vmatprep.subr.bf16.mxu0 %v5120
        %6787 = vmatpush1.bf16.msra.mxu0 %v5119
        %6788 = vmatprep.subr.bf16.mxu0 %v5124
        %6789 = vmatpush1.bf16.msra.mxu0 %v5123
        %6790 = vmatprep.subr.bf16.mxu0 %v5128
        %6791 = vmatpush1.bf16.msra.mxu0 %v5127
        %6792 = vmatprep.subr.bf16.mxu0 %v5132
        %6793 = vmatpush1.bf16.msra.mxu0 %v5131
        %6794 = vmatprep.subr.bf16.mxu0 %v5136
        %6795 = vmatpush1.bf16.msra.mxu0 %v5135
        %6796 = vmatprep.subr.bf16.mxu0 %v5140
        %6797 = vmatpush1.bf16.msra.mxu0 %v5139
        %6798 = vmatprep.subr.bf16.mxu0 %v5144
        %6799 = vmatpush1.bf16.msra.mxu0 %v5143
        %6800 = vmatprep.subr.bf16.mxu0 %v5148
        %6801 = vmatpush1.bf16.msra.mxu0 %v5147
        %6802 = vmatprep.subr.bf16.mxu0 %v5152
        %6803 = vmatpush1.bf16.msra.mxu0 %v5151
        %6804 = vmatprep.subr.bf16.mxu0 %v5156
        %6805 = vmatpush1.bf16.msra.mxu0 %v5155
        %6806 = vmatprep.subr.bf16.mxu0 %v5160
        %6807 = vmatpush1.bf16.msra.mxu0 %v5159
        %6808 = vmatprep.subr.bf16.mxu0 %v5164
        %6809 = vmatpush1.bf16.msra.mxu0 %v5163
        %6810 = vmatprep.subr.bf16.mxu0 %v5168
        %6811 = vmatpush1.bf16.msra.mxu0 %v5167
        %6812 = vmatprep.subr.bf16.mxu0 %v5172
        %6813 = vmatpush1.bf16.msra.mxu0 %v5171
        %6814 = vmatprep.subr.bf16.mxu0 %v5176
        %6815 = vmatpush1.bf16.msra.mxu0 %v5175
        %6816 = vmatprep.subr.bf16.mxu0 %v5180
        %6817 = vmatpush1.bf16.msra.mxu0 %v5179
        %6818 = vmatprep.mubr.bf16.mxu0 %v1457
        %6819 = vmatmul.mubr.bf16.gmra.mrb[0].mxu0 %v1455
        %v6820 = vpop.f32.mrb[0].mxu0
        %v6821 = vadd.f32 %v6780, %v6820
        %v6822 = vpop.f32.mrb[0].mxu0
        %v6823 = vadd.f32 %v6782, %v6822
        %v6824 = vpop.f32.mrb[0].mxu0
        %v6825 = vpop.f32.mrb[0].mxu0
        %6826 = vdwg.mxu0
        %6827 = vmatprep.subr.bf16.mxu0 %v5184
        %6828 = vmatpush1.bf16.msra.mxu0 %v5183
        %6829 = vmatprep.subr.bf16.mxu0 %v5188
        %6830 = vmatpush1.bf16.msra.mxu0 %v5187
        %6831 = vmatprep.subr.bf16.mxu0 %v5192
        %6832 = vmatpush1.bf16.msra.mxu0 %v5191
        %6833 = vmatprep.subr.bf16.mxu0 %v5196
        %6834 = vmatpush1.bf16.msra.mxu0 %v5195
        %6835 = vmatprep.subr.bf16.mxu0 %v5200
        %6836 = vmatpush1.bf16.msra.mxu0 %v5199
        %6837 = vmatprep.subr.bf16.mxu0 %v5204
        %6838 = vmatpush1.bf16.msra.mxu0 %v5203
        %6839 = vmatprep.subr.bf16.mxu0 %v5208
        %6840 = vmatpush1.bf16.msra.mxu0 %v5207
        %6841 = vmatprep.subr.bf16.mxu0 %v5212
        %6842 = vmatpush1.bf16.msra.mxu0 %v5211
        %6843 = vmatprep.subr.bf16.mxu0 %v5216
        %6844 = vmatpush1.bf16.msra.mxu0 %v5215
        %6845 = vmatprep.subr.bf16.mxu0 %v5220
        %6846 = vmatpush1.bf16.msra.mxu0 %v5219
        %6847 = vmatprep.subr.bf16.mxu0 %v5224
        %6848 = vmatpush1.bf16.msra.mxu0 %v5223
        %6849 = vmatprep.subr.bf16.mxu0 %v5228
        %6850 = vmatpush1.bf16.msra.mxu0 %v5227
        %6851 = vmatprep.subr.bf16.mxu0 %v5232
        %6852 = vmatpush1.bf16.msra.mxu0 %v5231
        %6853 = vmatprep.subr.bf16.mxu0 %v5236
        %6854 = vmatpush1.bf16.msra.mxu0 %v5235
        %6855 = vmatprep.subr.bf16.mxu0 %v5240
        %6856 = vmatpush1.bf16.msra.mxu0 %v5239
        %6857 = vmatprep.subr.bf16.mxu0 %v5244
        %6858 = vmatpush1.bf16.msra.mxu0 %v5243
        %6859 = vmatprep.mubr.bf16.mxu0 %v1495
        %6860 = vmatmul.mubr.bf16.gmra.mrb[0].mxu0 %v1481
        %v6861 = vpop.f32.mrb[0].mxu0
        %v6862 = vadd.f32 %v6821, %v6861
        %v6863 = vpop.f32.mrb[0].mxu0
        %v6864 = vadd.f32 %v6823, %v6863
        %v6865 = vpop.f32.mrb[0].mxu0
        %v6866 = vpop.f32.mrb[0].mxu0
        %6867 = vdwg.mxu0
        %6868 = vmatprep.subr.bf16.mxu0 %v5248
        %6869 = vmatpush1.bf16.msra.mxu0 %v5247
        %6870 = vmatprep.subr.bf16.mxu0 %v5252
        %6871 = vmatpush1.bf16.msra.mxu0 %v5251
        %6872 = vmatprep.subr.bf16.mxu0 %v5256
        %6873 = vmatpush1.bf16.msra.mxu0 %v5255
        %6874 = vmatprep.subr.bf16.mxu0 %v5260
        %6875 = vmatpush1.bf16.msra.mxu0 %v5259
        %6876 = vmatprep.subr.bf16.mxu0 %v5264
        %6877 = vmatpush1.bf16.msra.mxu0 %v5263
        %6878 = vmatprep.subr.bf16.mxu0 %v5268
        %6879 = vmatpush1.bf16.msra.mxu0 %v5267
        %6880 = vmatprep.subr.bf16.mxu0 %v5272
        %6881 = vmatpush1.bf16.msra.mxu0 %v5271
        %6882 = vmatprep.subr.bf16.mxu0 %v5276
        %6883 = vmatpush1.bf16.msra.mxu0 %v5275
        %6884 = vmatprep.subr.bf16.mxu0 %v5280
        %6885 = vmatpush1.bf16.msra.mxu0 %v5279
        %6886 = vmatprep.subr.bf16.mxu0 %v5284
        %6887 = vmatpush1.bf16.msra.mxu0 %v5283
        %6888 = vmatprep.subr.bf16.mxu0 %v5288
        %6889 = vmatpush1.bf16.msra.mxu0 %v5287
        %6890 = vmatprep.subr.bf16.mxu0 %v5292
        %6891 = vmatpush1.bf16.msra.mxu0 %v5291
        %6892 = vmatprep.subr.bf16.mxu0 %v5296
        %6893 = vmatpush1.bf16.msra.mxu0 %v5295
        %6894 = vmatprep.subr.bf16.mxu0 %v5300
        %6895 = vmatpush1.bf16.msra.mxu0 %v5299
        %6896 = vmatprep.subr.bf16.mxu0 %v5304
        %6897 = vmatpush1.bf16.msra.mxu0 %v5303
        %6898 = vmatprep.subr.bf16.mxu0 %v5308
        %6899 = vmatpush1.bf16.msra.mxu0 %v5307
        %6900 = vmatprep.mubr.bf16.mxu0 %v1504
        %6901 = vmatmul.mubr.bf16.gmra.mrb[0].mxu0 %v1503
        %v6902 = vpop.f32.mrb[0].mxu0
        %v6903 = vadd.f32 %v6862, %v6902
        %v6904 = vpop.f32.mrb[0].mxu0
        %v6905 = vadd.f32 %v6864, %v6904
        %v6906 = vpop.f32.mrb[0].mxu0
        %v6907 = vpop.f32.mrb[0].mxu0
        %6908 = vdwg.mxu0
        %6909 = vmatprep.subr.bf16.mxu0 %v5312
        %6910 = vmatpush1.bf16.msra.mxu0 %v5311
        %6911 = vmatprep.subr.bf16.mxu0 %v5316
        %6912 = vmatpush1.bf16.msra.mxu0 %v5315
        %6913 = vmatprep.subr.bf16.mxu0 %v5320
        %6914 = vmatpush1.bf16.msra.mxu0 %v5319
        %6915 = vmatprep.subr.bf16.mxu0 %v5324
        %6916 = vmatpush1.bf16.msra.mxu0 %v5323
        %6917 = vmatprep.subr.bf16.mxu0 %v5328
        %6918 = vmatpush1.bf16.msra.mxu0 %v5327
        %6919 = vmatprep.subr.bf16.mxu0 %v5332
        %6920 = vmatpush1.bf16.msra.mxu0 %v5331
        %6921 = vmatprep.subr.bf16.mxu0 %v5336
        %6922 = vmatpush1.bf16.msra.mxu0 %v5335
        %6923 = vmatprep.subr.bf16.mxu0 %v5340
        %6924 = vmatpush1.bf16.msra.mxu0 %v5339
        %6925 = vmatprep.subr.bf16.mxu0 %v5344
        %6926 = vmatpush1.bf16.msra.mxu0 %v5343
        %6927 = vmatprep.subr.bf16.mxu0 %v5348
        %6928 = vmatpush1.bf16.msra.mxu0 %v5347
        %6929 = vmatprep.subr.bf16.mxu0 %v5352
        %6930 = vmatpush1.bf16.msra.mxu0 %v5351
        %6931 = vmatprep.subr.bf16.mxu0 %v5356
        %6932 = vmatpush1.bf16.msra.mxu0 %v5355
        %6933 = vmatprep.subr.bf16.mxu0 %v5360
        %6934 = vmatpush1.bf16.msra.mxu0 %v5359
        %6935 = vmatprep.subr.bf16.mxu0 %v5364
        %6936 = vmatpush1.bf16.msra.mxu0 %v5363
        %6937 = vmatprep.subr.bf16.mxu0 %v5368
        %6938 = vmatpush1.bf16.msra.mxu0 %v5367
        %6939 = vmatprep.subr.bf16.mxu0 %v5372
        %6940 = vmatpush1.bf16.msra.mxu0 %v5371
        %6941 = vmatprep.mubr.bf16.mxu0 %v1502
        %6942 = vmatmul.mubr.bf16.gmra.mrb[0].mxu0 %v1488
        %v6943 = vpop.f32.mrb[0].mxu0
        %v6944 = vadd.f32 %v6903, %v6943
        %v6945 = vpop.f32.mrb[0].mxu0
        %v6946 = vadd.f32 %v6905, %v6945
        %v6947 = vpop.f32.mrb[0].mxu0
        %v6948 = vpop.f32.mrb[0].mxu0
        %6949 = vdwg.mxu0
        %6950 = vmatprep.subr.bf16.mxu0 %v4418
        %6951 = vmatpush1.bf16.msra.mxu0 %v4417
        %6952 = vmatprep.subr.bf16.mxu0 %v4422
        %6953 = vmatpush1.bf16.msra.mxu0 %v4421
        %6954 = vmatprep.subr.bf16.mxu0 %v4426
        %6955 = vmatpush1.bf16.msra.mxu0 %v4425
        %6956 = vmatprep.subr.bf16.mxu0 %v4430
        %6957 = vmatpush1.bf16.msra.mxu0 %v4429
        %6958 = vmatprep.subr.bf16.mxu0 %v4434
        %6959 = vmatpush1.bf16.msra.mxu0 %v4433
        %6960 = vmatprep.subr.bf16.mxu0 %v4438
        %6961 = vmatpush1.bf16.msra.mxu0 %v4437
        %6962 = vmatprep.subr.bf16.mxu0 %v4442
        %6963 = vmatpush1.bf16.msra.mxu0 %v4441
        %6964 = vmatprep.subr.bf16.mxu0 %v4446
        %6965 = vmatpush1.bf16.msra.mxu0 %v4445
        %6966 = vmatprep.subr.bf16.mxu0 %v4450
        %6967 = vmatpush1.bf16.msra.mxu0 %v4449
        %6968 = vmatprep.subr.bf16.mxu0 %v4454
        %6969 = vmatpush1.bf16.msra.mxu0 %v4453
        %6970 = vmatprep.subr.bf16.mxu0 %v4458
        %6971 = vmatpush1.bf16.msra.mxu0 %v4457
        %6972 = vmatprep.subr.bf16.mxu0 %v4462
        %6973 = vmatpush1.bf16.msra.mxu0 %v4461
        %6974 = vmatprep.subr.bf16.mxu0 %v4466
        %6975 = vmatpush1.bf16.msra.mxu0 %v4465
        %6976 = vmatprep.subr.bf16.mxu0 %v4470
        %6977 = vmatpush1.bf16.msra.mxu0 %v4469
        %6978 = vmatprep.subr.bf16.mxu0 %v4474
        %6979 = vmatpush1.bf16.msra.mxu0 %v4473
        %6980 = vmatprep.subr.bf16.mxu0 %v4478
        %6981 = vmatpush1.bf16.msra.mxu0 %v4477
        %6982 = vmatprep.mubr.bf16.mxu0 %v1348
        %6983 = vmatmul.mubr.bf16.gmra.mrb[0].mxu0 %v1334
        %v6984 = vpop.f32.mrb[0].mxu0
        %v6985 = vadd.f32 0.0, %v6984
        %v6986 = vpop.f32.mrb[0].mxu0
        %v6987 = vadd.f32 0.0, %v6986
        %v6988 = vpop.f32.mrb[0].mxu0
        %v6989 = vpop.f32.mrb[0].mxu0
        %6990 = vdwg.mxu0
        %6991 = vmatprep.subr.bf16.mxu0 %v4482
        %6992 = vmatpush1.bf16.msra.mxu0 %v4481
        %6993 = vmatprep.subr.bf16.mxu0 %v4486
        %6994 = vmatpush1.bf16.msra.mxu0 %v4485
        %6995 = vmatprep.subr.bf16.mxu0 %v4490
        %6996 = vmatpush1.bf16.msra.mxu0 %v4489
        %6997 = vmatprep.subr.bf16.mxu0 %v4494
        %6998 = vmatpush1.bf16.msra.mxu0 %v4493
        %6999 = vmatprep.subr.bf16.mxu0 %v4498
        %7000 = vmatpush1.bf16.msra.mxu0 %v4497
        %7001 = vmatprep.subr.bf16.mxu0 %v4502
        %7002 = vmatpush1.bf16.msra.mxu0 %v4501
        %7003 = vmatprep.subr.bf16.mxu0 %v4506
        %7004 = vmatpush1.bf16.msra.mxu0 %v4505
        %7005 = vmatprep.subr.bf16.mxu0 %v4510
        %7006 = vmatpush1.bf16.msra.mxu0 %v4509
        %7007 = vmatprep.subr.bf16.mxu0 %v4514
        %7008 = vmatpush1.bf16.msra.mxu0 %v4513
        %7009 = vmatprep.subr.bf16.mxu0 %v4518
        %7010 = vmatpush1.bf16.msra.mxu0 %v4517
        %7011 = vmatprep.subr.bf16.mxu0 %v4522
        %7012 = vmatpush1.bf16.msra.mxu0 %v4521
        %7013 = vmatprep.subr.bf16.mxu0 %v4526
        %7014 = vmatpush1.bf16.msra.mxu0 %v4525
        %7015 = vmatprep.subr.bf16.mxu0 %v4530
        %7016 = vmatpush1.bf16.msra.mxu0 %v4529
        %7017 = vmatprep.subr.bf16.mxu0 %v4534
        %7018 = vmatpush1.bf16.msra.mxu0 %v4533
        %7019 = vmatprep.subr.bf16.mxu0 %v4538
        %7020 = vmatpush1.bf16.msra.mxu0 %v4537
        %7021 = vmatprep.subr.bf16.mxu0 %v4542
        %7022 = vmatpush1.bf16.msra.mxu0 %v4541
        %7023 = vmatprep.mubr.bf16.mxu0 %v1358
        %7024 = vmatmul.mubr.bf16.gmra.mrb[0].mxu0 %v1356
        %v7025 = vpop.f32.mrb[0].mxu0
        %v7026 = vadd.f32 %v6985, %v7025
        %v7027 = vpop.f32.mrb[0].mxu0
        %v7028 = vadd.f32 %v6987, %v7027
        %v7029 = vpop.f32.mrb[0].mxu0
        %v7030 = vpop.f32.mrb[0].mxu0
        %7031 = vdwg.mxu0
        %7032 = vmatprep.subr.bf16.mxu0 %v4546
        %7033 = vmatpush1.bf16.msra.mxu0 %v4545
        %7034 = vmatprep.subr.bf16.mxu0 %v4550
        %7035 = vmatpush1.bf16.msra.mxu0 %v4549
        %7036 = vmatprep.subr.bf16.mxu0 %v4554
        %7037 = vmatpush1.bf16.msra.mxu0 %v4553
        %7038 = vmatprep.subr.bf16.mxu0 %v4558
        %7039 = vmatpush1.bf16.msra.mxu0 %v4557
        %7040 = vmatprep.subr.bf16.mxu0 %v4562
        %7041 = vmatpush1.bf16.msra.mxu0 %v4561
        %7042 = vmatprep.subr.bf16.mxu0 %v4566
        %7043 = vmatpush1.bf16.msra.mxu0 %v4565
        %7044 = vmatprep.subr.bf16.mxu0 %v4570
        %7045 = vmatpush1.bf16.msra.mxu0 %v4569
        %7046 = vmatprep.subr.bf16.mxu0 %v4574
        %7047 = vmatpush1.bf16.msra.mxu0 %v4573
        %7048 = vmatprep.subr.bf16.mxu0 %v4578
        %7049 = vmatpush1.bf16.msra.mxu0 %v4577
        %7050 = vmatprep.subr.bf16.mxu0 %v4582
        %7051 = vmatpush1.bf16.msra.mxu0 %v4581
        %7052 = vmatprep.subr.bf16.mxu0 %v4586
        %7053 = vmatpush1.bf16.msra.mxu0 %v4585
        %7054 = vmatprep.subr.bf16.mxu0 %v4590
        %7055 = vmatpush1.bf16.msra.mxu0 %v4589
        %7056 = vmatprep.subr.bf16.mxu0 %v4594
        %7057 = vmatpush1.bf16.msra.mxu0 %v4593
        %7058 = vmatprep.subr.bf16.mxu0 %v4598
        %7059 = vmatpush1.bf16.msra.mxu0 %v4597
        %7060 = vmatprep.subr.bf16.mxu0 %v4602
        %7061 = vmatpush1.bf16.msra.mxu0 %v4601
        %7062 = vmatprep.subr.bf16.mxu0 %v4606
        %7063 = vmatpush1.bf16.msra.mxu0 %v4605
        %7064 = vmatprep.mubr.bf16.mxu0 %v1355
        %7065 = vmatmul.mubr.bf16.gmra.mrb[0].mxu0 %v1341
        %v7066 = vpop.f32.mrb[0].mxu0
        %v7067 = vadd.f32 %v7026, %v7066
        %v7068 = vpop.f32.mrb[0].mxu0
        %v7069 = vadd.f32 %v7028, %v7068
        %v7070 = vpop.f32.mrb[0].mxu0
        %v7071 = vpop.f32.mrb[0].mxu0
        %7072 = vdwg.mxu0
        %7073 = vmatprep.subr.bf16.mxu0 %v4610
        %7074 = vmatpush1.bf16.msra.mxu0 %v4609
        %7075 = vmatprep.subr.bf16.mxu0 %v4614
        %7076 = vmatpush1.bf16.msra.mxu0 %v4613
        %7077 = vmatprep.subr.bf16.mxu0 %v4618
        %7078 = vmatpush1.bf16.msra.mxu0 %v4617
        %7079 = vmatprep.subr.bf16.mxu0 %v4622
        %7080 = vmatpush1.bf16.msra.mxu0 %v4621
        %7081 = vmatprep.subr.bf16.mxu0 %v4626
        %7082 = vmatpush1.bf16.msra.mxu0 %v4625
        %7083 = vmatprep.subr.bf16.mxu0 %v4630
        %7084 = vmatpush1.bf16.msra.mxu0 %v4629
        %7085 = vmatprep.subr.bf16.mxu0 %v4634
        %7086 = vmatpush1.bf16.msra.mxu0 %v4633
        %7087 = vmatprep.subr.bf16.mxu0 %v4638
        %7088 = vmatpush1.bf16.msra.mxu0 %v4637
        %7089 = vmatprep.subr.bf16.mxu0 %v4642
        %7090 = vmatpush1.bf16.msra.mxu0 %v4641
        %7091 = vmatprep.subr.bf16.mxu0 %v4646
        %7092 = vmatpush1.bf16.msra.mxu0 %v4645
        %7093 = vmatprep.subr.bf16.mxu0 %v4650
        %7094 = vmatpush1.bf16.msra.mxu0 %v4649
        %7095 = vmatprep.subr.bf16.mxu0 %v4654
        %7096 = vmatpush1.bf16.msra.mxu0 %v4653
        %7097 = vmatprep.subr.bf16.mxu0 %v4658
        %7098 = vmatpush1.bf16.msra.mxu0 %v4657
        %7099 = vmatprep.subr.bf16.mxu0 %v4662
        %7100 = vmatpush1.bf16.msra.mxu0 %v4661
        %7101 = vmatprep.subr.bf16.mxu0 %v4666
        %7102 = vmatpush1.bf16.msra.mxu0 %v4665
        %7103 = vmatprep.subr.bf16.mxu0 %v4670
        %7104 = vmatpush1.bf16.msra.mxu0 %v4669
        %7105 = vmatprep.mubr.bf16.mxu0 %v1359
        %7106 = vmatmul.mubr.bf16.gmra.mrb[0].mxu0 %v1357
        %v7107 = vpop.f32.mrb[0].mxu0
        %v7108 = vadd.f32 %v7067, %v7107
        %v7109 = vpop.f32.mrb[0].mxu0
        %v7110 = vadd.f32 %v7069, %v7109
        %v7111 = vpop.f32.mrb[0].mxu0
        %v7112 = vpop.f32.mrb[0].mxu0
        %7113 = vdwg.mxu0
        %7114 = vmatprep.subr.bf16.mxu0 %v4674
        %7115 = vmatpush1.bf16.msra.mxu0 %v4673
        %7116 = vmatprep.subr.bf16.mxu0 %v4678
        %7117 = vmatpush1.bf16.msra.mxu0 %v4677
        %7118 = vmatprep.subr.bf16.mxu0 %v4682
        %7119 = vmatpush1.bf16.msra.mxu0 %v4681
        %7120 = vmatprep.subr.bf16.mxu0 %v4686
        %7121 = vmatpush1.bf16.msra.mxu0 %v4685
        %7122 = vmatprep.subr.bf16.mxu0 %v4690
        %7123 = vmatpush1.bf16.msra.mxu0 %v4689
        %7124 = vmatprep.subr.bf16.mxu0 %v4694
        %7125 = vmatpush1.bf16.msra.mxu0 %v4693
        %7126 = vmatprep.subr.bf16.mxu0 %v4698
        %7127 = vmatpush1.bf16.msra.mxu0 %v4697
        %7128 = vmatprep.subr.bf16.mxu0 %v4702
        %7129 = vmatpush1.bf16.msra.mxu0 %v4701
        %7130 = vmatprep.subr.bf16.mxu0 %v4706
        %7131 = vmatpush1.bf16.msra.mxu0 %v4705
        %7132 = vmatprep.subr.bf16.mxu0 %v4710
        %7133 = vmatpush1.bf16.msra.mxu0 %v4709
        %7134 = vmatprep.subr.bf16.mxu0 %v4714
        %7135 = vmatpush1.bf16.msra.mxu0 %v4713
        %7136 = vmatprep.subr.bf16.mxu0 %v4718
        %7137 = vmatpush1.bf16.msra.mxu0 %v4717
        %7138 = vmatprep.subr.bf16.mxu0 %v4722
        %7139 = vmatpush1.bf16.msra.mxu0 %v4721
        %7140 = vmatprep.subr.bf16.mxu0 %v4726
        %7141 = vmatpush1.bf16.msra.mxu0 %v4725
        %7142 = vmatprep.subr.bf16.mxu0 %v4730
        %7143 = vmatpush1.bf16.msra.mxu0 %v4729
        %7144 = vmatprep.subr.bf16.mxu0 %v4734
        %7145 = vmatpush1.bf16.msra.mxu0 %v4733
        %7146 = vmatprep.mubr.bf16.mxu0 %v1397
        %7147 = vmatmul.mubr.bf16.gmra.mrb[0].mxu0 %v1383
        %v7148 = vpop.f32.mrb[0].mxu0
        %v7149 = vadd.f32 %v7108, %v7148
        %v7150 = vpop.f32.mrb[0].mxu0
        %v7151 = vadd.f32 %v7110, %v7150
        %v7152 = vpop.f32.mrb[0].mxu0
        %v7153 = vpop.f32.mrb[0].mxu0
        %7154 = vdwg.mxu0
        %7155 = vmatprep.subr.bf16.mxu0 %v4738
        %7156 = vmatpush1.bf16.msra.mxu0 %v4737
        %7157 = vmatprep.subr.bf16.mxu0 %v4742
        %7158 = vmatpush1.bf16.msra.mxu0 %v4741
        %7159 = vmatprep.subr.bf16.mxu0 %v4746
        %7160 = vmatpush1.bf16.msra.mxu0 %v4745
        %7161 = vmatprep.subr.bf16.mxu0 %v4750
        %7162 = vmatpush1.bf16.msra.mxu0 %v4749
        %7163 = vmatprep.subr.bf16.mxu0 %v4754
        %7164 = vmatpush1.bf16.msra.mxu0 %v4753
        %7165 = vmatprep.subr.bf16.mxu0 %v4758
        %7166 = vmatpush1.bf16.msra.mxu0 %v4757
        %7167 = vmatprep.subr.bf16.mxu0 %v4762
        %7168 = vmatpush1.bf16.msra.mxu0 %v4761
        %7169 = vmatprep.subr.bf16.mxu0 %v4766
        %7170 = vmatpush1.bf16.msra.mxu0 %v4765
        %7171 = vmatprep.subr.bf16.mxu0 %v4770
        %7172 = vmatpush1.bf16.msra.mxu0 %v4769
        %7173 = vmatprep.subr.bf16.mxu0 %v4774
        %7174 = vmatpush1.bf16.msra.mxu0 %v4773
        %7175 = vmatprep.subr.bf16.mxu0 %v4778
        %7176 = vmatpush1.bf16.msra.mxu0 %v4777
        %7177 = vmatprep.subr.bf16.mxu0 %v4782
        %7178 = vmatpush1.bf16.msra.mxu0 %v4781
        %7179 = vmatprep.subr.bf16.mxu0 %v4786
        %7180 = vmatpush1.bf16.msra.mxu0 %v4785
        %7181 = vmatprep.subr.bf16.mxu0 %v4790
        %7182 = vmatpush1.bf16.msra.mxu0 %v4789
        %7183 = vmatprep.subr.bf16.mxu0 %v4794
        %7184 = vmatpush1.bf16.msra.mxu0 %v4793
        %7185 = vmatprep.subr.bf16.mxu0 %v4798
        %7186 = vmatpush1.bf16.msra.mxu0 %v4797
        %7187 = vmatprep.mubr.bf16.mxu0 %v1407
        %7188 = vmatmul.mubr.bf16.gmra.mrb[0].mxu0 %v1405
        %v7189 = vpop.f32.mrb[0].mxu0
        %v7190 = vadd.f32 %v7149, %v7189
        %v7191 = vpop.f32.mrb[0].mxu0
        %v7192 = vadd.f32 %v7151, %v7191
        %v7193 = vpop.f32.mrb[0].mxu0
        %v7194 = vpop.f32.mrb[0].mxu0
        %7195 = vdwg.mxu0
        %7196 = vmatprep.subr.bf16.mxu0 %v4802
        %7197 = vmatpush1.bf16.msra.mxu0 %v4801
        %7198 = vmatprep.subr.bf16.mxu0 %v4806
        %7199 = vmatpush1.bf16.msra.mxu0 %v4805
        %7200 = vmatprep.subr.bf16.mxu0 %v4810
        %7201 = vmatpush1.bf16.msra.mxu0 %v4809
        %7202 = vmatprep.subr.bf16.mxu0 %v4814
        %7203 = vmatpush1.bf16.msra.mxu0 %v4813
        %7204 = vmatprep.subr.bf16.mxu0 %v4818
        %7205 = vmatpush1.bf16.msra.mxu0 %v4817
        %7206 = vmatprep.subr.bf16.mxu0 %v4822
        %7207 = vmatpush1.bf16.msra.mxu0 %v4821
        %7208 = vmatprep.subr.bf16.mxu0 %v4826
        %7209 = vmatpush1.bf16.msra.mxu0 %v4825
        %7210 = vmatprep.subr.bf16.mxu0 %v4830
        %7211 = vmatpush1.bf16.msra.mxu0 %v4829
        %7212 = vmatprep.subr.bf16.mxu0 %v4834
        %7213 = vmatpush1.bf16.msra.mxu0 %v4833
        %7214 = vmatprep.subr.bf16.mxu0 %v4838
        %7215 = vmatpush1.bf16.msra.mxu0 %v4837
        %7216 = vmatprep.subr.bf16.mxu0 %v4842
        %7217 = vmatpush1.bf16.msra.mxu0 %v4841
        %7218 = vmatprep.subr.bf16.mxu0 %v4846
        %7219 = vmatpush1.bf16.msra.mxu0 %v4845
        %7220 = vmatprep.subr.bf16.mxu0 %v4850
        %7221 = vmatpush1.bf16.msra.mxu0 %v4849
        %7222 = vmatprep.subr.bf16.mxu0 %v4854
        %7223 = vmatpush1.bf16.msra.mxu0 %v4853
        %7224 = vmatprep.subr.bf16.mxu0 %v4858
        %7225 = vmatpush1.bf16.msra.mxu0 %v4857
        %7226 = vmatprep.subr.bf16.mxu0 %v4862
        %7227 = vmatpush1.bf16.msra.mxu0 %v4861
        %7228 = vmatprep.mubr.bf16.mxu0 %v1404
        %7229 = vmatmul.mubr.bf16.gmra.mrb[0].mxu0 %v1390
        %v7230 = vpop.f32.mrb[0].mxu0
        %v7231 = vadd.f32 %v7190, %v7230
        %v7232 = vpop.f32.mrb[0].mxu0
        %v7233 = vadd.f32 %v7192, %v7232
        %v7234 = vpop.f32.mrb[0].mxu0
        %v7235 = vpop.f32.mrb[0].mxu0
        %7236 = vdwg.mxu0
        %7237 = vmatprep.subr.bf16.mxu0 %v4866
        %7238 = vmatpush1.bf16.msra.mxu0 %v4865
        %7239 = vmatprep.subr.bf16.mxu0 %v4870
        %7240 = vmatpush1.bf16.msra.mxu0 %v4869
        %7241 = vmatprep.subr.bf16.mxu0 %v4874
        %7242 = vmatpush1.bf16.msra.mxu0 %v4873
        %7243 = vmatprep.subr.bf16.mxu0 %v4878
        %7244 = vmatpush1.bf16.msra.mxu0 %v4877
        %7245 = vmatprep.subr.bf16.mxu0 %v4882
        %7246 = vmatpush1.bf16.msra.mxu0 %v4881
        %7247 = vmatprep.subr.bf16.mxu0 %v4886
        %7248 = vmatpush1.bf16.msra.mxu0 %v4885
        %7249 = vmatprep.subr.bf16.mxu0 %v4890
        %7250 = vmatpush1.bf16.msra.mxu0 %v4889
        %7251 = vmatprep.subr.bf16.mxu0 %v4894
        %7252 = vmatpush1.bf16.msra.mxu0 %v4893
        %7253 = vmatprep.subr.bf16.mxu0 %v4898
        %7254 = vmatpush1.bf16.msra.mxu0 %v4897
        %7255 = vmatprep.subr.bf16.mxu0 %v4902
        %7256 = vmatpush1.bf16.msra.mxu0 %v4901
        %7257 = vmatprep.subr.bf16.mxu0 %v4906
        %7258 = vmatpush1.bf16.msra.mxu0 %v4905
        %7259 = vmatprep.subr.bf16.mxu0 %v4910
        %7260 = vmatpush1.bf16.msra.mxu0 %v4909
        %7261 = vmatprep.subr.bf16.mxu0 %v4914
        %7262 = vmatpush1.bf16.msra.mxu0 %v4913
        %7263 = vmatprep.subr.bf16.mxu0 %v4918
        %7264 = vmatpush1.bf16.msra.mxu0 %v4917
        %7265 = vmatprep.subr.bf16.mxu0 %v4922
        %7266 = vmatpush1.bf16.msra.mxu0 %v4921
        %7267 = vmatprep.subr.bf16.mxu0 %v4926
        %7268 = vmatpush1.bf16.msra.mxu0 %v4925
        %7269 = vmatprep.mubr.bf16.mxu0 %v1408
        %7270 = vmatmul.mubr.bf16.gmra.mrb[0].mxu0 %v1406
        %v7271 = vpop.f32.mrb[0].mxu0
        %v7272 = vadd.f32 %v7231, %v7271
        %v7273 = vpop.f32.mrb[0].mxu0
        %v7274 = vadd.f32 %v7233, %v7273
        %v7275 = vpop.f32.mrb[0].mxu0
        %v7276 = vpop.f32.mrb[0].mxu0
        %7277 = vdwg.mxu0
        %7278 = vmatprep.subr.bf16.mxu0 %v4930
        %7279 = vmatpush1.bf16.msra.mxu0 %v4929
        %7280 = vmatprep.subr.bf16.mxu0 %v4934
        %7281 = vmatpush1.bf16.msra.mxu0 %v4933
        %7282 = vmatprep.subr.bf16.mxu0 %v4938
        %7283 = vmatpush1.bf16.msra.mxu0 %v4937
        %7284 = vmatprep.subr.bf16.mxu0 %v4942
        %7285 = vmatpush1.bf16.msra.mxu0 %v4941
        %7286 = vmatprep.subr.bf16.mxu0 %v4946
        %7287 = vmatpush1.bf16.msra.mxu0 %v4945
        %7288 = vmatprep.subr.bf16.mxu0 %v4950
        %7289 = vmatpush1.bf16.msra.mxu0 %v4949
        %7290 = vmatprep.subr.bf16.mxu0 %v4954
        %7291 = vmatpush1.bf16.msra.mxu0 %v4953
        %7292 = vmatprep.subr.bf16.mxu0 %v4958
        %7293 = vmatpush1.bf16.msra.mxu0 %v4957
        %7294 = vmatprep.subr.bf16.mxu0 %v4962
        %7295 = vmatpush1.bf16.msra.mxu0 %v4961
        %7296 = vmatprep.subr.bf16.mxu0 %v4966
        %7297 = vmatpush1.bf16.msra.mxu0 %v4965
        %7298 = vmatprep.subr.bf16.mxu0 %v4970
        %7299 = vmatpush1.bf16.msra.mxu0 %v4969
        %7300 = vmatprep.subr.bf16.mxu0 %v4974
        %7301 = vmatpush1.bf16.msra.mxu0 %v4973
        %7302 = vmatprep.subr.bf16.mxu0 %v4978
        %7303 = vmatpush1.bf16.msra.mxu0 %v4977
        %7304 = vmatprep.subr.bf16.mxu0 %v4982
        %7305 = vmatpush1.bf16.msra.mxu0 %v4981
        %7306 = vmatprep.subr.bf16.mxu0 %v4986
        %7307 = vmatpush1.bf16.msra.mxu0 %v4985
        %7308 = vmatprep.subr.bf16.mxu0 %v4990
        %7309 = vmatpush1.bf16.msra.mxu0 %v4989
        %7310 = vmatprep.mubr.bf16.mxu0 %v1446
        %7311 = vmatmul.mubr.bf16.gmra.mrb[0].mxu0 %v1432
        %v7312 = vpop.f32.mrb[0].mxu0
        %v7313 = vadd.f32 %v7272, %v7312
        %v7314 = vpop.f32.mrb[0].mxu0
        %v7315 = vadd.f32 %v7274, %v7314
        %v7316 = vpop.f32.mrb[0].mxu0
        %v7317 = vpop.f32.mrb[0].mxu0
        %7318 = vdwg.mxu0
        %7319 = vmatprep.subr.bf16.mxu0 %v4994
        %7320 = vmatpush1.bf16.msra.mxu0 %v4993
        %7321 = vmatprep.subr.bf16.mxu0 %v4998
        %7322 = vmatpush1.bf16.msra.mxu0 %v4997
        %7323 = vmatprep.subr.bf16.mxu0 %v5002
        %7324 = vmatpush1.bf16.msra.mxu0 %v5001
        %7325 = vmatprep.subr.bf16.mxu0 %v5006
        %7326 = vmatpush1.bf16.msra.mxu0 %v5005
        %7327 = vmatprep.subr.bf16.mxu0 %v5010
        %7328 = vmatpush1.bf16.msra.mxu0 %v5009
        %7329 = vmatprep.subr.bf16.mxu0 %v5014
        %7330 = vmatpush1.bf16.msra.mxu0 %v5013
        %7331 = vmatprep.subr.bf16.mxu0 %v5018
        %7332 = vmatpush1.bf16.msra.mxu0 %v5017
        %7333 = vmatprep.subr.bf16.mxu0 %v5022
        %7334 = vmatpush1.bf16.msra.mxu0 %v5021
        %7335 = vmatprep.subr.bf16.mxu0 %v5026
        %7336 = vmatpush1.bf16.msra.mxu0 %v5025
        %7337 = vmatprep.subr.bf16.mxu0 %v5030
        %7338 = vmatpush1.bf16.msra.mxu0 %v5029
        %7339 = vmatprep.subr.bf16.mxu0 %v5034
        %7340 = vmatpush1.bf16.msra.mxu0 %v5033
        %7341 = vmatprep.subr.bf16.mxu0 %v5038
        %7342 = vmatpush1.bf16.msra.mxu0 %v5037
        %7343 = vmatprep.subr.bf16.mxu0 %v5042
        %7344 = vmatpush1.bf16.msra.mxu0 %v5041
        %7345 = vmatprep.subr.bf16.mxu0 %v5046
        %7346 = vmatpush1.bf16.msra.mxu0 %v5045
        %7347 = vmatprep.subr.bf16.mxu0 %v5050
        %7348 = vmatpush1.bf16.msra.mxu0 %v5049
        %7349 = vmatprep.subr.bf16.mxu0 %v5054
        %7350 = vmatpush1.bf16.msra.mxu0 %v5053
        %7351 = vmatprep.mubr.bf16.mxu0 %v1456
        %7352 = vmatmul.mubr.bf16.gmra.mrb[0].mxu0 %v1454
        %v7353 = vpop.f32.mrb[0].mxu0
        %v7354 = vadd.f32 %v7313, %v7353
        %v7355 = vpop.f32.mrb[0].mxu0
        %v7356 = vadd.f32 %v7315, %v7355
        %v7357 = vpop.f32.mrb[0].mxu0
        %v7358 = vpop.f32.mrb[0].mxu0
        %7359 = vdwg.mxu0
        %7360 = vmatprep.subr.bf16.mxu0 %v5058
        %7361 = vmatpush1.bf16.msra.mxu0 %v5057
        %7362 = vmatprep.subr.bf16.mxu0 %v5062
        %7363 = vmatpush1.bf16.msra.mxu0 %v5061
        %7364 = vmatprep.subr.bf16.mxu0 %v5066
        %7365 = vmatpush1.bf16.msra.mxu0 %v5065
        %7366 = vmatprep.subr.bf16.mxu0 %v5070
        %7367 = vmatpush1.bf16.msra.mxu0 %v5069
        %7368 = vmatprep.subr.bf16.mxu0 %v5074
        %7369 = vmatpush1.bf16.msra.mxu0 %v5073
        %7370 = vmatprep.subr.bf16.mxu0 %v5078
        %7371 = vmatpush1.bf16.msra.mxu0 %v5077
        %7372 = vmatprep.subr.bf16.mxu0 %v5082
        %7373 = vmatpush1.bf16.msra.mxu0 %v5081
        %7374 = vmatprep.subr.bf16.mxu0 %v5086
        %7375 = vmatpush1.bf16.msra.mxu0 %v5085
        %7376 = vmatprep.subr.bf16.mxu0 %v5090
        %7377 = vmatpush1.bf16.msra.mxu0 %v5089
        %7378 = vmatprep.subr.bf16.mxu0 %v5094
        %7379 = vmatpush1.bf16.msra.mxu0 %v5093
        %7380 = vmatprep.subr.bf16.mxu0 %v5098
        %7381 = vmatpush1.bf16.msra.mxu0 %v5097
        %7382 = vmatprep.subr.bf16.mxu0 %v5102
        %7383 = vmatpush1.bf16.msra.mxu0 %v5101
        %7384 = vmatprep.subr.bf16.mxu0 %v5106
        %7385 = vmatpush1.bf16.msra.mxu0 %v5105
        %7386 = vmatprep.subr.bf16.mxu0 %v5110
        %7387 = vmatpush1.bf16.msra.mxu0 %v5109
        %7388 = vmatprep.subr.bf16.mxu0 %v5114
        %7389 = vmatpush1.bf16.msra.mxu0 %v5113
        %7390 = vmatprep.subr.bf16.mxu0 %v5118
        %7391 = vmatpush1.bf16.msra.mxu0 %v5117
        %7392 = vmatprep.mubr.bf16.mxu0 %v1453
        %7393 = vmatmul.mubr.bf16.gmra.mrb[0].mxu0 %v1439
        %v7394 = vpop.f32.mrb[0].mxu0
        %v7395 = vadd.f32 %v7354, %v7394
        %v7396 = vpop.f32.mrb[0].mxu0
        %v7397 = vadd.f32 %v7356, %v7396
        %v7398 = vpop.f32.mrb[0].mxu0
        %v7399 = vpop.f32.mrb[0].mxu0
        %7400 = vdwg.mxu0
        %7401 = vmatprep.subr.bf16.mxu0 %v5122
        %7402 = vmatpush1.bf16.msra.mxu0 %v5121
        %7403 = vmatprep.subr.bf16.mxu0 %v5126
        %7404 = vmatpush1.bf16.msra.mxu0 %v5125
        %7405 = vmatprep.subr.bf16.mxu0 %v5130
        %7406 = vmatpush1.bf16.msra.mxu0 %v5129
        %7407 = vmatprep.subr.bf16.mxu0 %v5134
        %7408 = vmatpush1.bf16.msra.mxu0 %v5133
        %7409 = vmatprep.subr.bf16.mxu0 %v5138
        %7410 = vmatpush1.bf16.msra.mxu0 %v5137
        %7411 = vmatprep.subr.bf16.mxu0 %v5142
        %7412 = vmatpush1.bf16.msra.mxu0 %v5141
        %7413 = vmatprep.subr.bf16.mxu0 %v5146
        %7414 = vmatpush1.bf16.msra.mxu0 %v5145
        %7415 = vmatprep.subr.bf16.mxu0 %v5150
        %7416 = vmatpush1.bf16.msra.mxu0 %v5149
        %7417 = vmatprep.subr.bf16.mxu0 %v5154
        %7418 = vmatpush1.bf16.msra.mxu0 %v5153
        %7419 = vmatprep.subr.bf16.mxu0 %v5158
        %7420 = vmatpush1.bf16.msra.mxu0 %v5157
        %7421 = vmatprep.subr.bf16.mxu0 %v5162
        %7422 = vmatpush1.bf16.msra.mxu0 %v5161
        %7423 = vmatprep.subr.bf16.mxu0 %v5166
        %7424 = vmatpush1.bf16.msra.mxu0 %v5165
        %7425 = vmatprep.subr.bf16.mxu0 %v5170
        %7426 = vmatpush1.bf16.msra.mxu0 %v5169
        %7427 = vmatprep.subr.bf16.mxu0 %v5174
        %7428 = vmatpush1.bf16.msra.mxu0 %v5173
        %7429 = vmatprep.subr.bf16.mxu0 %v5178
        %7430 = vmatpush1.bf16.msra.mxu0 %v5177
        %7431 = vmatprep.subr.bf16.mxu0 %v5182
        %7432 = vmatpush1.bf16.msra.mxu0 %v5181
        %7433 = vmatprep.mubr.bf16.mxu0 %v1457
        %7434 = vmatmul.mubr.bf16.gmra.mrb[0].mxu0 %v1455
        %v7435 = vpop.f32.mrb[0].mxu0
        %v7436 = vadd.f32 %v7395, %v7435
        %v7437 = vpop.f32.mrb[0].mxu0
        %v7438 = vadd.f32 %v7397, %v7437
        %v7439 = vpop.f32.mrb[0].mxu0
        %v7440 = vpop.f32.mrb[0].mxu0
        %7441 = vdwg.mxu0
        %7442 = vmatprep.subr.bf16.mxu0 %v5186
        %7443 = vmatpush1.bf16.msra.mxu0 %v5185
        %7444 = vmatprep.subr.bf16.mxu0 %v5190
        %7445 = vmatpush1.bf16.msra.mxu0 %v5189
        %7446 = vmatprep.subr.bf16.mxu0 %v5194
        %7447 = vmatpush1.bf16.msra.mxu0 %v5193
        %7448 = vmatprep.subr.bf16.mxu0 %v5198
        %7449 = vmatpush1.bf16.msra.mxu0 %v5197
        %7450 = vmatprep.subr.bf16.mxu0 %v5202
        %7451 = vmatpush1.bf16.msra.mxu0 %v5201
        %7452 = vmatprep.subr.bf16.mxu0 %v5206
        %7453 = vmatpush1.bf16.msra.mxu0 %v5205
        %7454 = vmatprep.subr.bf16.mxu0 %v5210
        %7455 = vmatpush1.bf16.msra.mxu0 %v5209
        %7456 = vmatprep.subr.bf16.mxu0 %v5214
        %7457 = vmatpush1.bf16.msra.mxu0 %v5213
        %7458 = vmatprep.subr.bf16.mxu0 %v5218
        %7459 = vmatpush1.bf16.msra.mxu0 %v5217
        %7460 = vmatprep.subr.bf16.mxu0 %v5222
        %7461 = vmatpush1.bf16.msra.mxu0 %v5221
        %7462 = vmatprep.subr.bf16.mxu0 %v5226
        %7463 = vmatpush1.bf16.msra.mxu0 %v5225
        %7464 = vmatprep.subr.bf16.mxu0 %v5230
        %7465 = vmatpush1.bf16.msra.mxu0 %v5229
        %7466 = vmatprep.subr.bf16.mxu0 %v5234
        %7467 = vmatpush1.bf16.msra.mxu0 %v5233
        %7468 = vmatprep.subr.bf16.mxu0 %v5238
        %7469 = vmatpush1.bf16.msra.mxu0 %v5237
        %7470 = vmatprep.subr.bf16.mxu0 %v5242
        %7471 = vmatpush1.bf16.msra.mxu0 %v5241
        %7472 = vmatprep.subr.bf16.mxu0 %v5246
        %7473 = vmatpush1.bf16.msra.mxu0 %v5245
        %7474 = vmatprep.mubr.bf16.mxu0 %v1495
        %7475 = vmatmul.mubr.bf16.gmra.mrb[0].mxu0 %v1481
        %v7476 = vpop.f32.mrb[0].mxu0
        %v7477 = vadd.f32 %v7436, %v7476
        %v7478 = vpop.f32.mrb[0].mxu0
        %v7479 = vadd.f32 %v7438, %v7478
        %v7480 = vpop.f32.mrb[0].mxu0
        %v7481 = vpop.f32.mrb[0].mxu0
        %7482 = vdwg.mxu0
        %7483 = vmatprep.subr.bf16.mxu0 %v5250
        %7484 = vmatpush1.bf16.msra.mxu0 %v5249
        %7485 = vmatprep.subr.bf16.mxu0 %v5254
        %7486 = vmatpush1.bf16.msra.mxu0 %v5253
        %7487 = vmatprep.subr.bf16.mxu0 %v5258
        %7488 = vmatpush1.bf16.msra.mxu0 %v5257
        %7489 = vmatprep.subr.bf16.mxu0 %v5262
        %7490 = vmatpush1.bf16.msra.mxu0 %v5261
        %7491 = vmatprep.subr.bf16.mxu0 %v5266
        %7492 = vmatpush1.bf16.msra.mxu0 %v5265
        %7493 = vmatprep.subr.bf16.mxu0 %v5270
        %7494 = vmatpush1.bf16.msra.mxu0 %v5269
        %7495 = vmatprep.subr.bf16.mxu0 %v5274
        %7496 = vmatpush1.bf16.msra.mxu0 %v5273
        %7497 = vmatprep.subr.bf16.mxu0 %v5278
        %7498 = vmatpush1.bf16.msra.mxu0 %v5277
        %7499 = vmatprep.subr.bf16.mxu0 %v5282
        %7500 = vmatpush1.bf16.msra.mxu0 %v5281
        %7501 = vmatprep.subr.bf16.mxu0 %v5286
        %7502 = vmatpush1.bf16.msra.mxu0 %v5285
        %7503 = vmatprep.subr.bf16.mxu0 %v5290
        %7504 = vmatpush1.bf16.msra.mxu0 %v5289
        %7505 = vmatprep.subr.bf16.mxu0 %v5294
        %7506 = vmatpush1.bf16.msra.mxu0 %v5293
        %7507 = vmatprep.subr.bf16.mxu0 %v5298
        %7508 = vmatpush1.bf16.msra.mxu0 %v5297
        %7509 = vmatprep.subr.bf16.mxu0 %v5302
        %7510 = vmatpush1.bf16.msra.mxu0 %v5301
        %7511 = vmatprep.subr.bf16.mxu0 %v5306
        %7512 = vmatpush1.bf16.msra.mxu0 %v5305
        %7513 = vmatprep.subr.bf16.mxu0 %v5310
        %7514 = vmatpush1.bf16.msra.mxu0 %v5309
        %7515 = vmatprep.mubr.bf16.mxu0 %v1504
        %7516 = vmatmul.mubr.bf16.gmra.mrb[0].mxu0 %v1503
        %v7517 = vpop.f32.mrb[0].mxu0
        %v7518 = vadd.f32 %v7477, %v7517
        %v7519 = vpop.f32.mrb[0].mxu0
        %v7520 = vadd.f32 %v7479, %v7519
        %v7521 = vpop.f32.mrb[0].mxu0
        %v7522 = vpop.f32.mrb[0].mxu0
        %7523 = vdwg.mxu0
        %7524 = vmatprep.subr.bf16.mxu0 %v5314
        %7525 = vmatpush1.bf16.msra.mxu0 %v5313
        %7526 = vmatprep.subr.bf16.mxu0 %v5318
        %7527 = vmatpush1.bf16.msra.mxu0 %v5317
        %7528 = vmatprep.subr.bf16.mxu0 %v5322
        %7529 = vmatpush1.bf16.msra.mxu0 %v5321
        %7530 = vmatprep.subr.bf16.mxu0 %v5326
        %7531 = vmatpush1.bf16.msra.mxu0 %v5325
        %7532 = vmatprep.subr.bf16.mxu0 %v5330
        %7533 = vmatpush1.bf16.msra.mxu0 %v5329
        %7534 = vmatprep.subr.bf16.mxu0 %v5334
        %7535 = vmatpush1.bf16.msra.mxu0 %v5333
        %7536 = vmatprep.subr.bf16.mxu0 %v5338
        %7537 = vmatpush1.bf16.msra.mxu0 %v5337
        %7538 = vmatprep.subr.bf16.mxu0 %v5342
        %7539 = vmatpush1.bf16.msra.mxu0 %v5341
        %7540 = vmatprep.subr.bf16.mxu0 %v5346
        %7541 = vmatpush1.bf16.msra.mxu0 %v5345
        %7542 = vmatprep.subr.bf16.mxu0 %v5350
        %7543 = vmatpush1.bf16.msra.mxu0 %v5349
        %7544 = vmatprep.subr.bf16.mxu0 %v5354
        %7545 = vmatpush1.bf16.msra.mxu0 %v5353
        %7546 = vmatprep.subr.bf16.mxu0 %v5358
        %7547 = vmatpush1.bf16.msra.mxu0 %v5357
        %7548 = vmatprep.subr.bf16.mxu0 %v5362
        %7549 = vmatpush1.bf16.msra.mxu0 %v5361
        %7550 = vmatprep.subr.bf16.mxu0 %v5366
        %7551 = vmatpush1.bf16.msra.mxu0 %v5365
        %7552 = vmatprep.subr.bf16.mxu0 %v5370
        %7553 = vmatpush1.bf16.msra.mxu0 %v5369
        %7554 = vmatprep.subr.bf16.mxu0 %v5374
        %7555 = vmatpush1.bf16.msra.mxu0 %v5373
        %7556 = vmatprep.mubr.bf16.mxu0 %v1502
        %7557 = vmatmul.mubr.bf16.gmra.mrb[0].mxu0 %v1488
        %v7558 = vpop.f32.mrb[0].mxu0
        %v7559 = vadd.f32 %v7518, %v7558
        %v7560 = vpop.f32.mrb[0].mxu0
        %v7561 = vadd.f32 %v7520, %v7560
        %v7562 = vpop.f32.mrb[0].mxu0
        %v7563 = vpop.f32.mrb[0].mxu0
        %7564 = vdwg.mxu0
        %v7569 = vcombine.low %v6944, %v6946
        %v7570 = vcombine.low %v7559, %v7561
        %v7572 = vunpack.c.l.s4 1983009808
        %v7573 = vunpack.c.0.s8 %v7572
        %v7574 = vlaneseq
        %v7575 = vshrl.u32 %v7574, 7
        %v7576 = vsub.s32 %v7573, %v7575
        %v7577 = vrot.slane %v7569, %v7576
        %v7579 = vunpack.c.l.s4 1983009808
        %v7580 = vunpack.c.0.s8 %v7579
        %v7581 = vlaneseq
        %v7582 = vshrl.u32 %v7581, 7
        %v7583 = vsub.s32 %v7580, %v7582
        %v7584 = vrot.slane %v7570, %v7583
        %v7585 = vcombine.low %v7577, %v7584
        %v7587 = vadd.f32 %v346, %v7585
        %7588 = vst [vmem:[#allocation2] sm:$0xff] %v7587
        %p7589 = scmp.eq.s32.totalorder %s29, 1
        // Predicated region
        $region53: #{tpu_custom_call.1} parent=35 // pred_check
          %p7590 = pneg %p7589
        $region54: #{tpu_custom_call.1} parent=35 // pred_check_branch
          %7592 = sbr.rel (%p7590) target = $region56
        $region55: #{tpu_custom_call.1} parent=35 // pred_region
          %v7593 = vld [vmem:[#allocation2] sm:$0xff]
          %v7594 = vld [vmem:[%s282] sm:$0xf]
          %v7596 = vlaneseq
          %v7597 = vshrl.u32 %v7596, 7
          %v7598 = vsub.s32 0, %v7597
          %v7599 = vrot.slane %v7594, %v7598
          %v7600 = vlaneseq
          %v7601 = vshrl.u32 %v7600, 7
          %v7602 = vsub.s32 1, %v7601
          %v7603 = vrot.slane %v7594, %v7602
          %v7604 = vlaneseq
          %v7605 = vshrl.u32 %v7604, 7
          %v7606 = vsub.s32 2, %v7605
          %v7607 = vrot.slane %v7594, %v7606
          %v7608 = vlaneseq
          %v7609 = vshrl.u32 %v7608, 7
          %v7610 = vsub.s32 3, %v7609
          %v7611 = vrot.slane %v7594, %v7610
          %v7612 = vcombine.low %v7599, %v7603
          %v7613 = vcombine.low %v7607, %v7611
          %v7615 = vunpack.c.l.s4 1983009808
          %v7616 = vunpack.c.0.s8 %v7615
          %v7617 = vlaneseq
          %v7618 = vshrl.u32 %v7617, 7
          %v7619 = vsub.s32 %v7616, %v7618
          %v7620 = vrot.slane %v7612, %v7619
          %v7622 = vunpack.c.l.s4 1983009808
          %v7623 = vunpack.c.0.s8 %v7622
          %v7624 = vlaneseq
          %v7625 = vshrl.u32 %v7624, 7
          %v7626 = vsub.s32 %v7623, %v7625
          %v7627 = vrot.slane %v7613, %v7626
          %v7628 = vcombine.low %v7620, %v7627
          %v7630 = vadd.f32 %v7593, %v7628
          %v7631 = vmax.f32 %v7630, 0.0
          %v7632 = vld [vmem:[%s330] sm:$0xff]
          %v7633 = vld [vmem:[%s330 + $0x8] sm:$0xff]
          %v7634 = vld [vmem:[%s330 + $0x10] sm:$0xff]
          %v7635 = vld [vmem:[%s330 + $0x18] sm:$0xff]
          %v7636 = vld [vmem:[%s330 + $0x20] sm:$0xff]
          %v7637 = vld [vmem:[%s330 + $0x28] sm:$0xff]
          %v7638 = vld [vmem:[%s330 + $0x30] sm:$0xff]
          %v7639 = vld [vmem:[%s330 + $0x38] sm:$0xff]
          %v7640 = vld [vmem:[%s330 + $0x40] sm:$0xff]
          %v7641 = vld [vmem:[%s330 + $0x48] sm:$0xff]
          %v7642 = vld [vmem:[%s330 + $0x50] sm:$0xff]
          %v7643 = vld [vmem:[%s330 + $0x58] sm:$0xff]
          %v7644 = vld [vmem:[%s330 + $0x60] sm:$0xff]
          %v7645 = vld [vmem:[%s330 + $0x68] sm:$0xff]
          %v7646 = vld [vmem:[%s330 + $0x70] sm:$0xff]
          %v7647 = vld [vmem:[%s330 + $0x78] sm:$0xff]
          %v7648 = vld [vmem:[%s330 + $0x80] sm:$0xff]
          %v7649 = vld [vmem:[%s330 + $0x88] sm:$0xff]
          %v7650 = vld [vmem:[%s330 + $0x90] sm:$0xff]
          %v7651 = vld [vmem:[%s330 + $0x98] sm:$0xff]
          %v7652 = vld [vmem:[%s330 + $0xa0] sm:$0xff]
          %v7653 = vld [vmem:[%s330 + $0xa8] sm:$0xff]
          %v7654 = vld [vmem:[%s330 + $0xb0] sm:$0xff]
          %v7655 = vld [vmem:[%s330 + $0xb8] sm:$0xff]
          %v7656 = vld [vmem:[%s330 + $0xc0] sm:$0xff]
          %v7657 = vld [vmem:[%s330 + $0xc8] sm:$0xff]
          %v7658 = vld [vmem:[%s330 + $0xd0] sm:$0xff]
          %v7659 = vld [vmem:[%s330 + $0xd8] sm:$0xff]
          %v7660 = vld [vmem:[%s330 + $0xe0] sm:$0xff]
          %v7661 = vld [vmem:[%s330 + $0xe8] sm:$0xff]
          %v7662 = vld [vmem:[%s330 + $0xf0] sm:$0xff]
          %v7663 = vld [vmem:[%s330 + $0xf8] sm:$0xff]
          %v7664 = vld [vmem:[%s330 + $0x100] sm:$0xff]
          %v7665 = vld [vmem:[%s330 + $0x108] sm:$0xff]
          %v7666 = vld [vmem:[%s330 + $0x110] sm:$0xff]
          %v7667 = vld [vmem:[%s330 + $0x118] sm:$0xff]
          %v7668 = vld [vmem:[%s330 + $0x120] sm:$0xff]
          %v7669 = vld [vmem:[%s330 + $0x128] sm:$0xff]
          %v7670 = vld [vmem:[%s330 + $0x130] sm:$0xff]
          %v7671 = vld [vmem:[%s330 + $0x138] sm:$0xff]
          %v7672 = vld [vmem:[%s330 + $0x140] sm:$0xff]
          %v7673 = vld [vmem:[%s330 + $0x148] sm:$0xff]
          %v7674 = vld [vmem:[%s330 + $0x150] sm:$0xff]
          %v7675 = vld [vmem:[%s330 + $0x158] sm:$0xff]
          %v7676 = vld [vmem:[%s330 + $0x160] sm:$0xff]
          %v7677 = vld [vmem:[%s330 + $0x168] sm:$0xff]
          %v7678 = vld [vmem:[%s330 + $0x170] sm:$0xff]
          %v7679 = vld [vmem:[%s330 + $0x178] sm:$0xff]
          %v7680 = vld [vmem:[%s330 + $0x180] sm:$0xff]
          %v7681 = vld [vmem:[%s330 + $0x188] sm:$0xff]
          %v7682 = vld [vmem:[%s330 + $0x190] sm:$0xff]
          %v7683 = vld [vmem:[%s330 + $0x198] sm:$0xff]
          %v7684 = vld [vmem:[%s330 + $0x1a0] sm:$0xff]
          %v7685 = vld [vmem:[%s330 + $0x1a8] sm:$0xff]
          %v7686 = vld [vmem:[%s330 + $0x1b0] sm:$0xff]
          %v7687 = vld [vmem:[%s330 + $0x1b8] sm:$0xff]
          %v7688 = vld [vmem:[%s330 + $0x1c0] sm:$0xff]
          %v7689 = vld [vmem:[%s330 + $0x1c8] sm:$0xff]
          %v7690 = vld [vmem:[%s330 + $0x1d0] sm:$0xff]
          %v7691 = vld [vmem:[%s330 + $0x1d8] sm:$0xff]
          %v7692 = vld [vmem:[%s330 + $0x1e0] sm:$0xff]
          %v7693 = vld [vmem:[%s330 + $0x1e8] sm:$0xff]
          %v7694 = vld [vmem:[%s330 + $0x1f0] sm:$0xff]
          %v7695 = vld [vmem:[%s330 + $0x1f8] sm:$0xff]
          %v7697 = vcombine.high %v7631, %v7631
          %v7699 = vunpack.c.l.s4 1983009808
          %v7700 = vunpack.c.0.s8 %v7699
          %v7701 = vlaneseq
          %v7702 = vshrl.u32 %v7701, 7
          %v7703 = vsub.s32 %v7700, %v7702
          %v7704 = vrot.slane %v7631, %v7703
          %v7706 = vunpack.c.l.s4 1983009808
          %v7707 = vunpack.c.0.s8 %v7706
          %v7708 = vlaneseq
          %v7709 = vshrl.u32 %v7708, 7
          %v7710 = vsub.s32 %v7707, %v7709
          %v7711 = vrot.slane %v7697, %v7710
          %v7712 = vcombine.high %v7704, %v7704
          %v7713 = vcombine.high %v7711, %v7711
          %7718 = vmatprep.subr.mxu0 0.0
          %7719 = vmatpush1.msra.mxu0 %v7632
          %7720 = vmatprep.subr.mxu0 0.0
          %7721 = vmatpush1.msra.mxu0 %v7633
          %7722 = vmatprep.subr.mxu0 0.0
          %7723 = vmatpush1.msra.mxu0 %v7634
          %7724 = vmatprep.subr.mxu0 0.0
          %7725 = vmatpush1.msra.mxu0 %v7635
          %7726 = vmatprep.subr.mxu0 0.0
          %7727 = vmatpush1.msra.mxu0 %v7636
          %7728 = vmatprep.subr.mxu0 0.0
          %7729 = vmatpush1.msra.mxu0 %v7637
          %7730 = vmatprep.subr.mxu0 0.0
          %7731 = vmatpush1.msra.mxu0 %v7638
          %7732 = vmatprep.subr.mxu0 0.0
          %7733 = vmatpush1.msra.mxu0 %v7639
          %7734 = vmatprep.subr.mxu0 0.0
          %7735 = vmatpush1.msra.mxu0 %v7640
          %7736 = vmatprep.subr.mxu0 0.0
          %7737 = vmatpush1.msra.mxu0 %v7641
          %7738 = vmatprep.subr.mxu0 0.0
          %7739 = vmatpush1.msra.mxu0 %v7642
          %7740 = vmatprep.subr.mxu0 0.0
          %7741 = vmatpush1.msra.mxu0 %v7643
          %7742 = vmatprep.subr.mxu0 0.0
          %7743 = vmatpush1.msra.mxu0 %v7644
          %7744 = vmatprep.subr.mxu0 0.0
          %7745 = vmatpush1.msra.mxu0 %v7645
          %7746 = vmatprep.subr.mxu0 0.0
          %7747 = vmatpush1.msra.mxu0 %v7646
          %7748 = vmatprep.subr.mxu0 0.0
          %7749 = vmatpush1.msra.mxu0 %v7647
          %7750 = vmatprep.subr.mxu0 0.0
          %7751 = vmatpush1.msra.mxu0 %v7648
          %7752 = vmatprep.subr.mxu0 0.0
          %7753 = vmatpush1.msra.mxu0 %v7649
          %7754 = vmatprep.subr.mxu0 0.0
          %7755 = vmatpush1.msra.mxu0 %v7650
          %7756 = vmatprep.subr.mxu0 0.0
          %7757 = vmatpush1.msra.mxu0 %v7651
          %7758 = vmatprep.subr.mxu0 0.0
          %7759 = vmatpush1.msra.mxu0 %v7652
          %7760 = vmatprep.subr.mxu0 0.0
          %7761 = vmatpush1.msra.mxu0 %v7653
          %7762 = vmatprep.subr.mxu0 0.0
          %7763 = vmatpush1.msra.mxu0 %v7654
          %7764 = vmatprep.subr.mxu0 0.0
          %7765 = vmatpush1.msra.mxu0 %v7655
          %7766 = vmatprep.subr.mxu0 0.0
          %7767 = vmatpush1.msra.mxu0 %v7656
          %7768 = vmatprep.subr.mxu0 0.0
          %7769 = vmatpush1.msra.mxu0 %v7657
          %7770 = vmatprep.subr.mxu0 0.0
          %7771 = vmatpush1.msra.mxu0 %v7658
          %7772 = vmatprep.subr.mxu0 0.0
          %7773 = vmatpush1.msra.mxu0 %v7659
          %7774 = vmatprep.subr.mxu0 0.0
          %7775 = vmatpush1.msra.mxu0 %v7660
          %7776 = vmatprep.subr.mxu0 0.0
          %7777 = vmatpush1.msra.mxu0 %v7661
          %7778 = vmatprep.subr.mxu0 0.0
          %7779 = vmatpush1.msra.mxu0 %v7662
          %7780 = vmatprep.subr.mxu0 0.0
          %7781 = vmatpush1.msra.mxu0 %v7663
          %7782 = vmatprep.mubr.f32.mxu0 %v7712
          %7783 = vmatmul.mubr.f32.gmra.mrb[0].mxu0 %v7704
          %v7784 = vpop.f32.mrb[0].mxu0
          %v7785 = vadd.f32 0.0, %v7784
          %v7786 = vpop.f32.mrb[0].mxu0
          %7787 = vdwg.mxu0
          %7788 = vmatprep.subr.mxu0 0.0
          %7789 = vmatpush1.msra.mxu0 %v7664
          %7790 = vmatprep.subr.mxu0 0.0
          %7791 = vmatpush1.msra.mxu0 %v7665
          %7792 = vmatprep.subr.mxu0 0.0
          %7793 = vmatpush1.msra.mxu0 %v7666
          %7794 = vmatprep.subr.mxu0 0.0
          %7795 = vmatpush1.msra.mxu0 %v7667
          %7796 = vmatprep.subr.mxu0 0.0
          %7797 = vmatpush1.msra.mxu0 %v7668
          %7798 = vmatprep.subr.mxu0 0.0
          %7799 = vmatpush1.msra.mxu0 %v7669
          %7800 = vmatprep.subr.mxu0 0.0
          %7801 = vmatpush1.msra.mxu0 %v7670
          %7802 = vmatprep.subr.mxu0 0.0
          %7803 = vmatpush1.msra.mxu0 %v7671
          %7804 = vmatprep.subr.mxu0 0.0
          %7805 = vmatpush1.msra.mxu0 %v7672
          %7806 = vmatprep.subr.mxu0 0.0
          %7807 = vmatpush1.msra.mxu0 %v7673
          %7808 = vmatprep.subr.mxu0 0.0
          %7809 = vmatpush1.msra.mxu0 %v7674
          %7810 = vmatprep.subr.mxu0 0.0
          %7811 = vmatpush1.msra.mxu0 %v7675
          %7812 = vmatprep.subr.mxu0 0.0
          %7813 = vmatpush1.msra.mxu0 %v7676
          %7814 = vmatprep.subr.mxu0 0.0
          %7815 = vmatpush1.msra.mxu0 %v7677
          %7816 = vmatprep.subr.mxu0 0.0
          %7817 = vmatpush1.msra.mxu0 %v7678
          %7818 = vmatprep.subr.mxu0 0.0
          %7819 = vmatpush1.msra.mxu0 %v7679
          %7820 = vmatprep.subr.mxu0 0.0
          %7821 = vmatpush1.msra.mxu0 %v7680
          %7822 = vmatprep.subr.mxu0 0.0
          %7823 = vmatpush1.msra.mxu0 %v7681
          %7824 = vmatprep.subr.mxu0 0.0
          %7825 = vmatpush1.msra.mxu0 %v7682
          %7826 = vmatprep.subr.mxu0 0.0
          %7827 = vmatpush1.msra.mxu0 %v7683
          %7828 = vmatprep.subr.mxu0 0.0
          %7829 = vmatpush1.msra.mxu0 %v7684
          %7830 = vmatprep.subr.mxu0 0.0
          %7831 = vmatpush1.msra.mxu0 %v7685
          %7832 = vmatprep.subr.mxu0 0.0
          %7833 = vmatpush1.msra.mxu0 %v7686
          %7834 = vmatprep.subr.mxu0 0.0
          %7835 = vmatpush1.msra.mxu0 %v7687
          %7836 = vmatprep.subr.mxu0 0.0
          %7837 = vmatpush1.msra.mxu0 %v7688
          %7838 = vmatprep.subr.mxu0 0.0
          %7839 = vmatpush1.msra.mxu0 %v7689
          %7840 = vmatprep.subr.mxu0 0.0
          %7841 = vmatpush1.msra.mxu0 %v7690
          %7842 = vmatprep.subr.mxu0 0.0
          %7843 = vmatpush1.msra.mxu0 %v7691
          %7844 = vmatprep.subr.mxu0 0.0
          %7845 = vmatpush1.msra.mxu0 %v7692
          %7846 = vmatprep.subr.mxu0 0.0
          %7847 = vmatpush1.msra.mxu0 %v7693
          %7848 = vmatprep.subr.mxu0 0.0
          %7849 = vmatpush1.msra.mxu0 %v7694
          %7850 = vmatprep.subr.mxu0 0.0
          %7851 = vmatpush1.msra.mxu0 %v7695
          %7852 = vmatprep.mubr.f32.mxu0 %v7713
          %7853 = vmatmul.mubr.f32.gmra.mrb[0].mxu0 %v7711
          %v7854 = vpop.f32.mrb[0].mxu0
          %v7855 = vadd.f32 %v7785, %v7854
          %v7856 = vpop.f32.mrb[0].mxu0
          %7857 = vdwg.mxu0
          %vm7858 = vcmask 25600
          %7859 = vst.msk [vmem:[%s321] sm:$0x3] %vm7858, %v7855
        $region56: #{tpu_custom_call.1} parent=35 // pred_fallthru
          _
        %s7860 = sand.u32 %s150, 1
        %s7861 = scalar_lea.sflag [#allocation5], %s7860
        %s7862 = sand.u32 %s150, 1
        %s7863 = smul.addr %s7862, 2
        %s7864 = scalar_lea.vmem [#allocation9], %s7863
        // Predicated region
        $region57: #{tpu_custom_call.1} parent=35 // pred_check
          %p7865 = pneg %p160
        $region58: #{tpu_custom_call.1} parent=35 // pred_check_branch
          %7867 = sbr.rel (%p7865) target = $region60
        $region59: #{tpu_custom_call.1} parent=35 // pred_region
          %s7869 = ssub.s32 32, 32
          %7870 = vsyncadd %s7861, %s7869
          %s7871 = smul.addr %s28, 32
          %s7872 = scalar_lea.hbm %s4, %s7871
          %s7874 = sshll.u32 %s7864, 4
          %s7875 = int_to_ptr.vmem [resolvable:$true] %s7874
          %7877 = dma.vmem_to_hbm [thread:$0]  %s7875, 32, %s7872, %s7861
        $region60: #{tpu_custom_call.1} parent=35 // pred_fallthru
          _
      $region36: #{tpu_custom_call.1} parent=5 // pred_fallthru
        _
      %p7878 = scmp.le.s32.totalorder 2, %s19
      // Predicated region
      $region61: #{tpu_custom_call.1} parent=5 // pred_check
        %p7879 = pneg %p7878
      $region62: #{tpu_custom_call.1} parent=5 // pred_check_branch
        %7881 = sbr.rel (%p7879) target = $region64
      $region63: #{tpu_custom_call.1} parent=5 // pred_region
        %s7882 = ssub.s32 %s19, 2
        // Predicated region
        $region65: #{tpu_custom_call.1} parent=63 // pred_check
          %p7883 = pneg %p166
        $region66: #{tpu_custom_call.1} parent=63 // pred_check_branch
          %7885 = sbr.rel (%p7883) target = $region68
        $region67: #{tpu_custom_call.1} parent=63 // pred_region
          %s7886 = sand.u32 %s151, 1
          %s7887 = scalar_lea.sflag [#allocation5], %s7886
          %s7888 = sand.u32 %s151, 1
          %s7889 = smul.addr %s7888, 2
          %s7890 = scalar_lea.vmem [#allocation9], %s7889
          %7891 = dma.done %s7887, 32
        $region68: #{tpu_custom_call.1} parent=63 // pred_fallthru
          _
      $region64: #{tpu_custom_call.1} parent=5 // pred_fallthru
        _
    $region6: #{tpu_custom_call.1} parent=1 // loop_footer
      %s23 = sadd.s32 1, %s19
    $region7: #{tpu_custom_call.1} parent=1 // loop_footer_branch
      %18 = sbr.rel target = $region3
    $region8: #{tpu_custom_call.1} parent=1 // loop_exit
      _
    %7892 = vsyncpa [#allocation4], 1
    %s7893 = scalar_lea.sflag [#allocation4], 1
    %7894 = vsyncpa %s7893, 1
    %7895 = vsyncpa [#allocation7], 1
    %s7896 = scalar_lea.sflag [#allocation7], 1
    %7897 = vsyncpa %s7896, 1
    %7898 = vsyncpa [#allocation5], 1
    %s7899 = scalar_lea.sflag [#allocation5], 1
    %7900 = vsyncpa %s7899, 1

</llo_original>
